<compile_context>
chip_gen: v7x
topology: tpu7x:2x2x1
jax: 0.10.0
libtpu: 0.0.40
codegen_flags: <defaults>
</compile_context>

<pallas_src>
import jax
import jax.numpy as jnp
import numpy as np
from jax import lax
from jax.experimental import pallas as pl
from jax.experimental.pallas import tpu as pltpu


# ---------------------------------------------------------------------------
# Fused kernel: frontend (embedding_fc -> softmax -> relu(+attn) -> row_fc)
# followed by conv1/conv2/conv3, one batch tile per grid step.
# Conv layout: rows = (batch, image-row i), lanes = (image-col j, channel c).
# ---------------------------------------------------------------------------
def fused_kernel(attn_ref, emb_ref, mask_ref, wet_ref, be_ref, wrt_ref, br_ref,
                 w1_ref, b1_ref, w2_ref, b2_ref, w3_ref, b3_ref,
                 out_ref, xcat_ref):
    Bt, L, H = emb_ref.shape
    BL = Bt * L

    # Host-precomputed row-edge masks (zero the row that wrapped across the
    # top/bottom image edge after the sublane roll).  Hoisted once, reused by
    # all three conv layers.
    m_up = mask_ref[:, 0:1]          # 0.0 where image-row i == 0
    m_dn = mask_ref[:, 1:2]          # 0.0 where image-row i == L - 1

    # ---- frontend ---------------------------------------------------------
    emb = emb_ref[...].reshape(BL, H)                                   # bf16
    ef = jnp.dot(emb, wet_ref[...],
                 preferred_element_type=jnp.float32) + be_ref[...]      # (BL, L)
    ef = ef - jnp.max(ef, axis=-1, keepdims=True)
    e = jnp.exp(ef)
    sm = e / jnp.sum(e, axis=-1, keepdims=True)                         # exact denom
    comb = jnp.maximum(sm + attn_ref[...].reshape(BL, L), 0.0)          # /2 folded into wrt
    row = jnp.dot(comb.astype(jnp.bfloat16), wrt_ref[...],
                  preferred_element_type=jnp.float32) + br_ref[...]     # (BL, L) f32

    # ---- 3x3 SAME conv as a single K = 3*L*Cin matmul ----------------------
    def conv3x3(x, w_ref, b_ref):
        # x: (BL, wd) f32 with wd = L*Cin.  Stage [x(i-1) | x(i) | x(i+1)]
        # along lanes in the reusable scratch, then one MXU matmul against the
        # dy-stacked banded weight (3*L*Cin, L*Cout).
        wd = x.shape[-1]
        xcat_ref[:, 0:wd] = pltpu.roll(x, shift=1, axis=0) * m_up        # x[b, i-1]
        xcat_ref[:, wd:2 * wd] = x                                       # x[b, i]
        xcat_ref[:, 2 * wd:3 * wd] = pltpu.roll(x, shift=BL - 1, axis=0) * m_dn  # x[b, i+1]
        lhs = xcat_ref[:, 0:3 * wd].astype(jnp.bfloat16)                 # one cast per layer
        return jnp.dot(lhs, w_ref[...],
                       preferred_element_type=jnp.float32) + b_ref[...]

    x1 = jnp.maximum(conv3x3(row, w1_ref, b1_ref), 0.0)                  # (BL, L*C1)
    x2 = jnp.maximum(conv3x3(x1, w2_ref, b2_ref), 0.0)                   # (BL, L*C2)
    logits = conv3x3(x2, w3_ref, b3_ref)                                 # (BL, L)

    out_ref[...] = logits.reshape(Bt, L, L)


# ---------------------------------------------------------------------------
# Host-side weight preparation
# ---------------------------------------------------------------------------
def _banded_conv_weights(w, L):
    """Stacked banded matrix for a 3x3 SAME conv in the rows=(b,i), lanes=(j,c)
    layout, with the dy = -1/0/+1 row-offset slabs stacked along K.

    w: (Cout, Cin, 3, 3) torch-layout weight.
    Returns (3*L*Cin, L*Cout) f32 with
      Wb[t*L*Cin + jp*Cin + c, j*Cout + d] = w[d, c, t, (jp - j) + 1]
    for |jp - j| <= 1 (zero elsewhere).
    """
    w = np.asarray(w, np.float32)
    Cout, Cin, _, _ = w.shape
    out = np.zeros((3, L * Cin, L * Cout), np.float32)
    for t in range(3):                       # kernel row ky (input row i + t - 1)
        for dx in (-1, 0, 1):                # kernel col kx - 1
            blk = w[:, :, t, dx + 1].T       # (Cin, Cout)
            for j in range(L):
                jp = j + dx
                if 0 <= jp < L:
                    out[t, jp * Cin:(jp + 1) * Cin,
                        j * Cout:(j + 1) * Cout] = blk
    return out.reshape(3 * L * Cin, L * Cout)


def _vmem_bytes(Bt, L, H, C1, C2):
    """Rough per-step VMEM footprint (bytes) used to size the batch tile."""
    BL = Bt * L
    resident = (2 * (3 * L * L * C1 + 3 * L * C1 * L * C2 + 3 * L * C2 * L)  # conv w (bf16)
                + 2 * (H * L + L * L)                                         # wet, wrt (bf16)
                + 4 * (2 * L + L * C1 + L * C2 + L)                           # biases (f32)
                + 4 * BL * 2)                                                 # row masks
    streamed = 2 * (BL * L * 4 + BL * H * 2 + BL * L * 4)    # attn/emb/out, double-buffered
    scratch = BL * 3 * L * max(1, C1, C2) * 4                # f32 staging buffer
    live = 16 * BL * L * max(1, C1, C2)                      # transient value temps (approx)
    return resident + streamed + scratch + live


def _pick_batch_tile(B, L, H, C1, C2, budget=40 * 1024 * 1024):
    """Largest batch tile whose footprint fits a cross-generation VMEM budget.

    Weights are resident, so fewer/larger tiles are better (less per-step
    overhead, fuller MXU M dimension).  Once a tile already supplies >= 256
    rows, prefer an even grid length so both v7x TensorCores get work.
    """
    divisors = [d for d in range(1, B + 1) if B % d == 0]
    fitting = [d for d in divisors if _vmem_bytes(d, L, H, C1, C2) <= budget]
    if not fitting:
        return 1
    balanced = [d for d in fitting if d * L >= 256 and (B // d) % 2 == 0]
    if balanced:
        return max(balanced)
    return max(fitting)


# ---------------------------------------------------------------------------
# Wrapper
# ---------------------------------------------------------------------------
def contact_prediction_forward(params, embeddings, attentions):
    attn_last = attentions[-1]                            # (B, NH, L, L)
    B, _, L, _ = attn_last.shape
    H = embeddings.shape[-1]
    C1 = params["w1"].shape[0]
    C2 = params["w2"].shape[0]

    # Head mean as a plain XLA reduce -> kernel streams only (B, L, L).
    attn_mean = jnp.mean(attn_last, axis=1).astype(jnp.float32)
    # Embeddings are consumed only as a bf16 MXU operand: pre-cast so the
    # largest streamed DMA moves half the bytes.
    emb_bf = embeddings.astype(jnp.bfloat16)

    # Frontend weights ("/2" of the reference folded into row_fc weights).
    wet = params["We"].T.astype(jnp.bfloat16)             # (H, L)
    be = params["be"].reshape(1, L).astype(jnp.float32)
    wrt = (0.5 * params["Wr"]).T.astype(jnp.bfloat16)     # (L, L)
    br = params["br"].reshape(1, L).astype(jnp.float32)

    # Conv weights: dy-stacked banded matrices -> one matmul per layer.
    w1f = jnp.asarray(_banded_conv_weights(params["w1"], L), jnp.bfloat16)  # (3L,     L*C1)
    w2f = jnp.asarray(_banded_conv_weights(params["w2"], L), jnp.bfloat16)  # (3L*C1,  L*C2)
    w3f = jnp.asarray(_banded_conv_weights(params["w3"], L), jnp.bfloat16)  # (3L*C2,  L)
    b1 = jnp.tile(params["b1"], L).reshape(1, L * C1).astype(jnp.float32)
    b2 = jnp.tile(params["b2"], L).reshape(1, L * C2).astype(jnp.float32)
    b3 = jnp.tile(params["b3"], L).reshape(1, L).astype(jnp.float32)

    Bt = _pick_batch_tile(B, L, H, C1, C2)
    grid = (B // Bt,)
    BL = Bt * L

    # Row-edge masks for the dy = -1 / +1 shifted copies (precomputed host-side
    # -> one broadcast multiply per shifted copy, no in-kernel iota/compares).
    i_idx = np.arange(BL) % L
    rowmask = jnp.asarray(
        np.stack([(i_idx != 0), (i_idx != L - 1)], axis=1).astype(np.float32))

    def const_spec(shape):
        # Weight/bias/mask blocks never change across grid steps: constant
        # index_map + single buffering (halves their resident VMEM).
        return pl.BlockSpec(shape, lambda b: (0,) * len(shape),
                            pipeline_mode=pl.Buffered(1))

    vmem_limit = int(min(56 * 1024 * 1024,
                         max(32 * 1024 * 1024,
                             int(1.4 * _vmem_bytes(Bt, L, H, C1, C2)))))

    out = pl.pallas_call(
        fused_kernel,
        out_shape=jax.ShapeDtypeStruct((B, L, L), jnp.float32),
        grid=grid,
        in_specs=[
            pl.BlockSpec((Bt, L, L), lambda b: (b, 0, 0)),   # attention head-mean (f32)
            pl.BlockSpec((Bt, L, H), lambda b: (b, 0, 0)),   # embeddings (bf16)
            const_spec((BL, 2)),                             # row-edge masks
            const_spec((H, L)),                              # We^T (bf16)
            const_spec((1, L)),                              # be
            const_spec((L, L)),                              # 0.5 * Wr^T (bf16)
            const_spec((1, L)),                              # br
            const_spec((3 * L, L * C1)),                     # conv1 banded, dy-stacked
            const_spec((1, L * C1)),                         # b1 (tiled per j)
            const_spec((3 * L * C1, L * C2)),                # conv2 banded
            const_spec((1, L * C2)),                         # b2
            const_spec((3 * L * C2, L)),                     # conv3 banded
            const_spec((1, L)),                              # b3
        ],
        out_specs=pl.BlockSpec((Bt, L, L), lambda b: (b, 0, 0)),
        scratch_shapes=[
            pltpu.VMEM((BL, 3 * L * max(1, C1, C2)), jnp.float32),  # shift staging
        ],
        compiler_params=pltpu.CompilerParams(
            dimension_semantics=("parallel",),
            vmem_limit_bytes=vmem_limit),
    )(attn_mean, emb_bf, rowmask, wet, be, wrt, br,
      w1f, b1, w2f, b2, w3f, b3)

    return out


# ---------------------------------------------------------------------------
# Deterministic parameter init (mirrors the module's __init__ shapes + Xavier)
# ---------------------------------------------------------------------------
def init_params(key, hidden_size, input_len):
    def xavier(k, shape, fan_in, fan_out):
        a = float(np.sqrt(6.0 / (fan_in + fan_out)))
        return jax.random.uniform(k, shape, jnp.float32, -a, a)

    L, H = input_len, hidden_size
    k = jax.random.split(key, 5)
    return {
        "We": xavier(k[0], (L, H), H, L),          # embedding_fc.weight
        "be": jnp.zeros((L,), jnp.float32),
        "Wr": xavier(k[1], (L, L), L, L),          # row_fc.weight
        "br": jnp.zeros((L,), jnp.float32),
        "w1": xavier(k[2], (16, 1, 3, 3), 1 * 9, 16 * 9),
        "b1": jnp.zeros((16,), jnp.float32),
        "w2": xavier(k[3], (32, 16, 3, 3), 16 * 9, 32 * 9),
        "b2": jnp.zeros((32,), jnp.float32),
        "w3": xavier(k[4], (1, 32, 3, 3), 32 * 9, 1 * 9),
        "b3": jnp.zeros((1,), jnp.float32),
    }


# ---------------------------------------------------------------------------
# Pure-JAX reference (mirrors the PyTorch forward exactly) for a sanity check
# ---------------------------------------------------------------------------
def reference_forward(params, embeddings, attentions):
    att = jnp.mean(attentions[-1], axis=1)
    ef = jnp.einsum("blh,oh->blo", embeddings, params["We"],
                    precision=lax.Precision.HIGHEST) + params["be"]
    ef = jax.nn.softmax(ef, axis=-1)
    comb = jnp.maximum(ef + att, 0.0) / 2.0
    row = jnp.einsum("blk,ok->blo", comb, params["Wr"],
                     precision=lax.Precision.HIGHEST) + params["br"]
    x = row[:, None, :, :]

    def conv(x, w, b):
        y = lax.conv_general_dilated(
            x, w, (1, 1), "SAME",
            dimension_numbers=("NCHW", "OIHW", "NCHW"),
            precision=lax.Precision.HIGHEST)
        return y + b[None, :, None, None]

    x = jax.nn.relu(conv(x, params["w1"], params["b1"]))
    x = jax.nn.relu(conv(x, params["w2"], params["b2"]))
    x = conv(x, params["w3"], params["b3"])
    return x[:, 0]


# ---------------------------------------------------------------------------
if __name__ == "__main__":
    B, NH, L, H, NUM_LAYERS = 2, 4, 16, 32, 2

    key = jax.random.PRNGKey(0)
    kp, ke, ka = jax.random.split(key, 3)
    params = init_params(kp, hidden_size=H, input_len=L)

    embeddings = jax.random.normal(ke, (B, L, H), jnp.float32)
    attn_keys = jax.random.split(ka, NUM_LAYERS)
    attentions = tuple(
        jax.nn.softmax(jax.random.normal(k, (B, NH, L, L), jnp.float32), axis=-1)
        for k in attn_keys
    )

    out = jax.block_until_ready(
        contact_prediction_forward(params, embeddings, attentions))

    ref = reference_forward(params, embeddings, attentions)
    np.testing.assert_allclose(np.asarray(out), np.asarray(ref),
                               rtol=2e-2, atol=2e-3)
    print("KERNEL_OK")
</pallas_src>

<mosaic_0001>
module attributes {stable_mosaic.version = 11 : i64} {
  func.func @fused_kernel(%arg0: i32, %arg1: memref<2x16x16xf32, #tpu.memory_space<vmem>>, %arg2: memref<2x16x32xbf16, #tpu.memory_space<vmem>>, %arg3: memref<32x2xf32, #tpu.memory_space<vmem>>, %arg4: memref<32x16xbf16, #tpu.memory_space<vmem>>, %arg5: memref<1x16xf32, #tpu.memory_space<vmem>>, %arg6: memref<16x16xbf16, #tpu.memory_space<vmem>>, %arg7: memref<1x16xf32, #tpu.memory_space<vmem>>, %arg8: memref<48x256xbf16, #tpu.memory_space<vmem>>, %arg9: memref<1x256xf32, #tpu.memory_space<vmem>>, %arg10: memref<768x512xbf16, #tpu.memory_space<vmem>>, %arg11: memref<1x512xf32, #tpu.memory_space<vmem>>, %arg12: memref<1536x16xbf16, #tpu.memory_space<vmem>>, %arg13: memref<1x16xf32, #tpu.memory_space<vmem>>, %arg14: memref<2x16x16xf32, #tpu.memory_space<vmem>>, %arg15: memref<32x1536xf32, #tpu.memory_space<vmem>>) attributes {dimension_semantics = [#tpu.dimension_semantics<parallel>], iteration_bounds = array<i64: 1>, scalar_prefetch = 0 : i64, scratch_operands = 1 : i64, tpu.core_type = #tpu.core_type<tc>, window_params = [{transform_indices = @transform_0, window_bounds = array<i64: 2, 16, 16>}, {transform_indices = @transform_1, window_bounds = array<i64: 2, 16, 32>}, {pipeline_mode = #tpu.pipeline_mode<synchronous>, transform_indices = @transform_2, window_bounds = array<i64: 32, 2>}, {pipeline_mode = #tpu.pipeline_mode<synchronous>, transform_indices = @transform_3, window_bounds = array<i64: 32, 16>}, {pipeline_mode = #tpu.pipeline_mode<synchronous>, transform_indices = @transform_4, window_bounds = array<i64: 1, 16>}, {pipeline_mode = #tpu.pipeline_mode<synchronous>, transform_indices = @transform_5, window_bounds = array<i64: 16, 16>}, {pipeline_mode = #tpu.pipeline_mode<synchronous>, transform_indices = @transform_6, window_bounds = array<i64: 1, 16>}, {pipeline_mode = #tpu.pipeline_mode<synchronous>, transform_indices = @transform_7, window_bounds = array<i64: 48, 256>}, {pipeline_mode = #tpu.pipeline_mode<synchronous>, transform_indices = @transform_8, window_bounds = array<i64: 1, 256>}, {pipeline_mode = #tpu.pipeline_mode<synchronous>, transform_indices = @transform_9, window_bounds = array<i64: 768, 512>}, {pipeline_mode = #tpu.pipeline_mode<synchronous>, transform_indices = @transform_10, window_bounds = array<i64: 1, 512>}, {pipeline_mode = #tpu.pipeline_mode<synchronous>, transform_indices = @transform_11, window_bounds = array<i64: 1536, 16>}, {pipeline_mode = #tpu.pipeline_mode<synchronous>, transform_indices = @transform_12, window_bounds = array<i64: 1, 16>}, {transform_indices = @transform_13, window_bounds = array<i64: 2, 16, 16>}]} {
    %c0 = arith.constant 0 : index
    %c0_0 = arith.constant 0 : index
    %0 = vector.load %arg3[%c0, %c0_0] : memref<32x2xf32, #tpu.memory_space<vmem>>, vector<32x1xf32>
    %c0_1 = arith.constant 0 : index
    %c1 = arith.constant 1 : index
    %1 = vector.load %arg3[%c0_1, %c1] : memref<32x2xf32, #tpu.memory_space<vmem>>, vector<32x1xf32>
    %c0_2 = arith.constant 0 : index
    %c0_3 = arith.constant 0 : index
    %c0_4 = arith.constant 0 : index
    %2 = vector.load %arg2[%c0_2, %c0_3, %c0_4] : memref<2x16x32xbf16, #tpu.memory_space<vmem>>, vector<2x16x32xbf16>
    %3 = vector.shape_cast %2 : vector<2x16x32xbf16> to vector<32x32xbf16>
    %c0_5 = arith.constant 0 : index
    %c0_6 = arith.constant 0 : index
    %4 = vector.load %arg4[%c0_5, %c0_6] : memref<32x16xbf16, #tpu.memory_space<vmem>>, vector<32x16xbf16>
    %cst = arith.constant dense<0.000000e+00> : vector<32x16xf32>
    %5 = tpu.matmul %3, %4, %cst {dimension_numbers = #tpu.dot_dimension_numbers<[1], [0], [0], [1], [0, 0, 1, 1], [], []>} : vector<32x32xbf16>, vector<32x16xbf16>, vector<32x16xf32> -> vector<32x16xf32>
    %c0_7 = arith.constant 0 : index
    %c0_8 = arith.constant 0 : index
    %6 = vector.load %arg5[%c0_7, %c0_8] : memref<1x16xf32, #tpu.memory_space<vmem>>, vector<1x16xf32>
    %7 = vector.broadcast %6 : vector<1x16xf32> to vector<32x16xf32>
    %8 = arith.addf %5, %7 : vector<32x16xf32>
    %cst_9 = arith.constant dense<0xFF800000> : vector<32xf32>
    %9 = vector.multi_reduction <maximumf>, %8, %cst_9 [1] : vector<32x16xf32> to vector<32xf32>
    %10 = vector.shape_cast %9 : vector<32xf32> to vector<32x1xf32>
    %11 = vector.broadcast %10 : vector<32x1xf32> to vector<32x16xf32>
    %12 = arith.subf %8, %11 : vector<32x16xf32>
    %13 = math.exp %12 : vector<32x16xf32>
    %cst_10 = arith.constant dense<0.000000e+00> : vector<32xf32>
    %14 = vector.multi_reduction <add>, %13, %cst_10 [1] : vector<32x16xf32> to vector<32xf32>
    %15 = vector.shape_cast %14 : vector<32xf32> to vector<32x1xf32>
    %16 = vector.broadcast %15 : vector<32x1xf32> to vector<32x16xf32>
    %17 = arith.divf %13, %16 : vector<32x16xf32>
    %c0_11 = arith.constant 0 : index
    %c0_12 = arith.constant 0 : index
    %c0_13 = arith.constant 0 : index
    %18 = vector.load %arg1[%c0_11, %c0_12, %c0_13] : memref<2x16x16xf32, #tpu.memory_space<vmem>>, vector<2x16x16xf32>
    %19 = vector.shape_cast %18 : vector<2x16x16xf32> to vector<32x16xf32>
    %20 = arith.addf %17, %19 : vector<32x16xf32>
    %cst_14 = arith.constant 0.000000e+00 : f32
    %21 = vector.broadcast %cst_14 : f32 to vector<32x16xf32>
    %22 = arith.maximumf %20, %21 : vector<32x16xf32>
    %23 = arith.truncf %22 : vector<32x16xf32> to vector<32x16xbf16>
    %c0_15 = arith.constant 0 : index
    %c0_16 = arith.constant 0 : index
    %24 = vector.load %arg6[%c0_15, %c0_16] : memref<16x16xbf16, #tpu.memory_space<vmem>>, vector<16x16xbf16>
    %cst_17 = arith.constant dense<0.000000e+00> : vector<32x16xf32>
    %25 = tpu.matmul %23, %24, %cst_17 {dimension_numbers = #tpu.dot_dimension_numbers<[1], [0], [0], [1], [0, 0, 1, 1], [], []>} : vector<32x16xbf16>, vector<16x16xbf16>, vector<32x16xf32> -> vector<32x16xf32>
    %c0_18 = arith.constant 0 : index
    %c0_19 = arith.constant 0 : index
    %26 = vector.load %arg7[%c0_18, %c0_19] : memref<1x16xf32, #tpu.memory_space<vmem>>, vector<1x16xf32>
    %27 = vector.broadcast %26 : vector<1x16xf32> to vector<32x16xf32>
    %28 = arith.addf %25, %27 : vector<32x16xf32>
    %c1_i32 = arith.constant 1 : i32
    %29 = tpu.dynamic_rotate %28 by %c1_i32 dim 0 : vector<32x16xf32>, i32 -> vector<32x16xf32>
    %30 = vector.broadcast %0 : vector<32x1xf32> to vector<32x16xf32>
    %31 = arith.mulf %29, %30 : vector<32x16xf32>
    %c0_20 = arith.constant 0 : index
    %c0_21 = arith.constant 0 : index
    %32 = vector.load %arg15[%c0_20, %c0_21] : memref<32x1536xf32, #tpu.memory_space<vmem>>, vector<32x16xf32>
    tpu.vector_store %arg15[%c0_20, %c0_21], %31 {strides = array<i32>} : memref<32x1536xf32, #tpu.memory_space<vmem>>, vector<32x16xf32>,
    %c0_22 = arith.constant 0 : index
    %c16 = arith.constant 16 : index
    %33 = vector.load %arg15[%c0_22, %c16] : memref<32x1536xf32, #tpu.memory_space<vmem>>, vector<32x16xf32>
    tpu.vector_store %arg15[%c0_22, %c16], %28 {strides = array<i32>} : memref<32x1536xf32, #tpu.memory_space<vmem>>, vector<32x16xf32>,
    %c31_i32 = arith.constant 31 : i32
    %34 = tpu.dynamic_rotate %28 by %c31_i32 dim 0 : vector<32x16xf32>, i32 -> vector<32x16xf32>
    %35 = vector.broadcast %1 : vector<32x1xf32> to vector<32x16xf32>
    %36 = arith.mulf %34, %35 : vector<32x16xf32>
    %c0_23 = arith.constant 0 : index
    %c32 = arith.constant 32 : index
    %37 = vector.load %arg15[%c0_23, %c32] : memref<32x1536xf32, #tpu.memory_space<vmem>>, vector<32x16xf32>
    tpu.vector_store %arg15[%c0_23, %c32], %36 {strides = array<i32>} : memref<32x1536xf32, #tpu.memory_space<vmem>>, vector<32x16xf32>,
    %c0_24 = arith.constant 0 : index
    %c0_25 = arith.constant 0 : index
    %38 = vector.load %arg15[%c0_24, %c0_25] : memref<32x1536xf32, #tpu.memory_space<vmem>>, vector<32x48xf32>
    %39 = arith.truncf %38 : vector<32x48xf32> to vector<32x48xbf16>
    %c0_26 = arith.constant 0 : index
    %c0_27 = arith.constant 0 : index
    %40 = vector.load %arg8[%c0_26, %c0_27] : memref<48x256xbf16, #tpu.memory_space<vmem>>, vector<48x256xbf16>
    %cst_28 = arith.constant dense<0.000000e+00> : vector<32x256xf32>
    %41 = tpu.matmul %39, %40, %cst_28 {dimension_numbers = #tpu.dot_dimension_numbers<[1], [0], [0], [1], [0, 0, 1, 1], [], []>} : vector<32x48xbf16>, vector<48x256xbf16>, vector<32x256xf32> -> vector<32x256xf32>
    %c0_29 = arith.constant 0 : index
    %c0_30 = arith.constant 0 : index
    %42 = vector.load %arg9[%c0_29, %c0_30] : memref<1x256xf32, #tpu.memory_space<vmem>>, vector<1x256xf32>
    %43 = vector.broadcast %42 : vector<1x256xf32> to vector<32x256xf32>
    %44 = arith.addf %41, %43 : vector<32x256xf32>
    %cst_31 = arith.constant 0.000000e+00 : f32
    %45 = vector.broadcast %cst_31 : f32 to vector<32x256xf32>
    %46 = arith.maximumf %44, %45 : vector<32x256xf32>
    %c1_i32_32 = arith.constant 1 : i32
    %47 = tpu.dynamic_rotate %46 by %c1_i32_32 dim 0 : vector<32x256xf32>, i32 -> vector<32x256xf32>
    %48 = vector.broadcast %0 : vector<32x1xf32> to vector<32x256xf32>
    %49 = arith.mulf %47, %48 : vector<32x256xf32>
    %c0_33 = arith.constant 0 : index
    %c0_34 = arith.constant 0 : index
    %50 = vector.load %arg15[%c0_33, %c0_34] : memref<32x1536xf32, #tpu.memory_space<vmem>>, vector<32x256xf32>
    tpu.vector_store %arg15[%c0_33, %c0_34], %49 {strides = array<i32>} : memref<32x1536xf32, #tpu.memory_space<vmem>>, vector<32x256xf32>,
    %c0_35 = arith.constant 0 : index
    %c256 = arith.constant 256 : index
    %51 = vector.load %arg15[%c0_35, %c256] : memref<32x1536xf32, #tpu.memory_space<vmem>>, vector<32x256xf32>
    tpu.vector_store %arg15[%c0_35, %c256], %46 {strides = array<i32>} : memref<32x1536xf32, #tpu.memory_space<vmem>>, vector<32x256xf32>,
    %c31_i32_36 = arith.constant 31 : i32
    %52 = tpu.dynamic_rotate %46 by %c31_i32_36 dim 0 : vector<32x256xf32>, i32 -> vector<32x256xf32>
    %53 = vector.broadcast %1 : vector<32x1xf32> to vector<32x256xf32>
    %54 = arith.mulf %52, %53 : vector<32x256xf32>
    %c0_37 = arith.constant 0 : index
    %c512 = arith.constant 512 : index
    %55 = vector.load %arg15[%c0_37, %c512] : memref<32x1536xf32, #tpu.memory_space<vmem>>, vector<32x256xf32>
    tpu.vector_store %arg15[%c0_37, %c512], %54 {strides = array<i32>} : memref<32x1536xf32, #tpu.memory_space<vmem>>, vector<32x256xf32>,
    %c0_38 = arith.constant 0 : index
    %c0_39 = arith.constant 0 : index
    %56 = vector.load %arg15[%c0_38, %c0_39] : memref<32x1536xf32, #tpu.memory_space<vmem>>, vector<32x768xf32>
    %57 = arith.truncf %56 : vector<32x768xf32> to vector<32x768xbf16>
    %c0_40 = arith.constant 0 : index
    %c0_41 = arith.constant 0 : index
    %58 = vector.load %arg10[%c0_40, %c0_41] : memref<768x512xbf16, #tpu.memory_space<vmem>>, vector<768x512xbf16>
    %cst_42 = arith.constant dense<0.000000e+00> : vector<32x512xf32>
    %59 = tpu.matmul %57, %58, %cst_42 {dimension_numbers = #tpu.dot_dimension_numbers<[1], [0], [0], [1], [0, 0, 1, 1], [], []>} : vector<32x768xbf16>, vector<768x512xbf16>, vector<32x512xf32> -> vector<32x512xf32>
    %c0_43 = arith.constant 0 : index
    %c0_44 = arith.constant 0 : index
    %60 = vector.load %arg11[%c0_43, %c0_44] : memref<1x512xf32, #tpu.memory_space<vmem>>, vector<1x512xf32>
    %61 = vector.broadcast %60 : vector<1x512xf32> to vector<32x512xf32>
    %62 = arith.addf %59, %61 : vector<32x512xf32>
    %cst_45 = arith.constant 0.000000e+00 : f32
    %63 = vector.broadcast %cst_45 : f32 to vector<32x512xf32>
    %64 = arith.maximumf %62, %63 : vector<32x512xf32>
    %c1_i32_46 = arith.constant 1 : i32
    %65 = tpu.dynamic_rotate %64 by %c1_i32_46 dim 0 : vector<32x512xf32>, i32 -> vector<32x512xf32>
    %66 = vector.broadcast %0 : vector<32x1xf32> to vector<32x512xf32>
    %67 = arith.mulf %65, %66 : vector<32x512xf32>
    %c0_47 = arith.constant 0 : index
    %c0_48 = arith.constant 0 : index
    %68 = vector.load %arg15[%c0_47, %c0_48] : memref<32x1536xf32, #tpu.memory_space<vmem>>, vector<32x512xf32>
    tpu.vector_store %arg15[%c0_47, %c0_48], %67 {strides = array<i32>} : memref<32x1536xf32, #tpu.memory_space<vmem>>, vector<32x512xf32>,
    %c0_49 = arith.constant 0 : index
    %c512_50 = arith.constant 512 : index
    %69 = vector.load %arg15[%c0_49, %c512_50] : memref<32x1536xf32, #tpu.memory_space<vmem>>, vector<32x512xf32>
    tpu.vector_store %arg15[%c0_49, %c512_50], %64 {strides = array<i32>} : memref<32x1536xf32, #tpu.memory_space<vmem>>, vector<32x512xf32>,
    %c31_i32_51 = arith.constant 31 : i32
    %70 = tpu.dynamic_rotate %64 by %c31_i32_51 dim 0 : vector<32x512xf32>, i32 -> vector<32x512xf32>
    %71 = vector.broadcast %1 : vector<32x1xf32> to vector<32x512xf32>
    %72 = arith.mulf %70, %71 : vector<32x512xf32>
    %c0_52 = arith.constant 0 : index
    %c1024 = arith.constant 1024 : index
    %73 = vector.load %arg15[%c0_52, %c1024] : memref<32x1536xf32, #tpu.memory_space<vmem>>, vector<32x512xf32>
    tpu.vector_store %arg15[%c0_52, %c1024], %72 {strides = array<i32>} : memref<32x1536xf32, #tpu.memory_space<vmem>>, vector<32x512xf32>,
    %c0_53 = arith.constant 0 : index
    %c0_54 = arith.constant 0 : index
    %74 = vector.load %arg15[%c0_53, %c0_54] : memref<32x1536xf32, #tpu.memory_space<vmem>>, vector<32x1536xf32>
    %75 = arith.truncf %74 : vector<32x1536xf32> to vector<32x1536xbf16>
    %c0_55 = arith.constant 0 : index
    %c0_56 = arith.constant 0 : index
    %76 = vector.load %arg12[%c0_55, %c0_56] : memref<1536x16xbf16, #tpu.memory_space<vmem>>, vector<1536x16xbf16>
    %cst_57 = arith.constant dense<0.000000e+00> : vector<32x16xf32>
    %77 = tpu.matmul %75, %76, %cst_57 {dimension_numbers = #tpu.dot_dimension_numbers<[1], [0], [0], [1], [0, 0, 1, 1], [], []>} : vector<32x1536xbf16>, vector<1536x16xbf16>, vector<32x16xf32> -> vector<32x16xf32>
    %c0_58 = arith.constant 0 : index
    %c0_59 = arith.constant 0 : index
    %78 = vector.load %arg13[%c0_58, %c0_59] : memref<1x16xf32, #tpu.memory_space<vmem>>, vector<1x16xf32>
    %79 = vector.broadcast %78 : vector<1x16xf32> to vector<32x16xf32>
    %80 = arith.addf %77, %79 : vector<32x16xf32>
    %81 = vector.shape_cast %80 : vector<32x16xf32> to vector<2x16x16xf32>
    %c0_60 = arith.constant 0 : index
    %c0_61 = arith.constant 0 : index
    %c0_62 = arith.constant 0 : index
    %82 = vector.load %arg14[%c0_60, %c0_61, %c0_62] : memref<2x16x16xf32, #tpu.memory_space<vmem>>, vector<2x16x16xf32>
    tpu.vector_store %arg14[%c0_60, %c0_61, %c0_62], %81 {strides = array<i32>} : memref<2x16x16xf32, #tpu.memory_space<vmem>>, vector<2x16x16xf32>,
    return
  }
  func.func @transform_0(%arg0: i32) -> (i32, i32, i32) {
    %c0_i32 = arith.constant 0 : i32
    %c0_i32_0 = arith.constant 0 : i32
    %c0_i32_1 = arith.constant 0 : i32
    return %arg0, %c0_i32, %c0_i32_0 : i32, i32, i32
  }
  func.func @transform_1(%arg0: i32) -> (i32, i32, i32) {
    %c0_i32 = arith.constant 0 : i32
    %c0_i32_0 = arith.constant 0 : i32
    %c0_i32_1 = arith.constant 0 : i32
    return %arg0, %c0_i32, %c0_i32_0 : i32, i32, i32
  }
  func.func @transform_2(%arg0: i32) -> (i32, i32) {
    %c0_i32 = arith.constant 0 : i32
    %c0_i32_0 = arith.constant 0 : i32
    %c0_i32_1 = arith.constant 0 : i32
    return %c0_i32, %c0_i32_0 : i32, i32
  }
  func.func @transform_3(%arg0: i32) -> (i32, i32) {
    %c0_i32 = arith.constant 0 : i32
    %c0_i32_0 = arith.constant 0 : i32
    %c0_i32_1 = arith.constant 0 : i32
    return %c0_i32, %c0_i32_0 : i32, i32
  }
  func.func @transform_4(%arg0: i32) -> (i32, i32) {
    %c0_i32 = arith.constant 0 : i32
    %c0_i32_0 = arith.constant 0 : i32
    %c0_i32_1 = arith.constant 0 : i32
    return %c0_i32, %c0_i32_0 : i32, i32
  }
  func.func @transform_5(%arg0: i32) -> (i32, i32) {
    %c0_i32 = arith.constant 0 : i32
    %c0_i32_0 = arith.constant 0 : i32
    %c0_i32_1 = arith.constant 0 : i32
    return %c0_i32, %c0_i32_0 : i32, i32
  }
  func.func @transform_6(%arg0: i32) -> (i32, i32) {
    %c0_i32 = arith.constant 0 : i32
    %c0_i32_0 = arith.constant 0 : i32
    %c0_i32_1 = arith.constant 0 : i32
    return %c0_i32, %c0_i32_0 : i32, i32
  }
  func.func @transform_7(%arg0: i32) -> (i32, i32) {
    %c0_i32 = arith.constant 0 : i32
    %c0_i32_0 = arith.constant 0 : i32
    %c0_i32_1 = arith.constant 0 : i32
    return %c0_i32, %c0_i32_0 : i32, i32
  }
  func.func @transform_8(%arg0: i32) -> (i32, i32) {
    %c0_i32 = arith.constant 0 : i32
    %c0_i32_0 = arith.constant 0 : i32
    %c0_i32_1 = arith.constant 0 : i32
    return %c0_i32, %c0_i32_0 : i32, i32
  }
  func.func @transform_9(%arg0: i32) -> (i32, i32) {
    %c0_i32 = arith.constant 0 : i32
    %c0_i32_0 = arith.constant 0 : i32
    %c0_i32_1 = arith.constant 0 : i32
    return %c0_i32, %c0_i32_0 : i32, i32
  }
  func.func @transform_10(%arg0: i32) -> (i32, i32) {
    %c0_i32 = arith.constant 0 : i32
    %c0_i32_0 = arith.constant 0 : i32
    %c0_i32_1 = arith.constant 0 : i32
    return %c0_i32, %c0_i32_0 : i32, i32
  }
  func.func @transform_11(%arg0: i32) -> (i32, i32) {
    %c0_i32 = arith.constant 0 : i32
    %c0_i32_0 = arith.constant 0 : i32
    %c0_i32_1 = arith.constant 0 : i32
    return %c0_i32, %c0_i32_0 : i32, i32
  }
  func.func @transform_12(%arg0: i32) -> (i32, i32) {
    %c0_i32 = arith.constant 0 : i32
    %c0_i32_0 = arith.constant 0 : i32
    %c0_i32_1 = arith.constant 0 : i32
    return %c0_i32, %c0_i32_0 : i32, i32
  }
  func.func @transform_13(%arg0: i32) -> (i32, i32, i32) {
    %c0_i32 = arith.constant 0 : i32
    %c0_i32_0 = arith.constant 0 : i32
    %c0_i32_1 = arith.constant 0 : i32
    return %arg0, %c0_i32, %c0_i32_0 : i32, i32, i32
  }
}

</mosaic_0001>

<llo_original>
// kernel: tpu_custom_call.1
$region0: #{tpu_custom_call.1}
  #allocation0 [shape = 'u32[]', space=smem, size = 0x4, offset = 0x4, fixed_abs, tag = 'smem constant byte address 0x4 - core index']
  #allocation1 [shape = 'u32[144,128]{1,0:T(1,128)}', space=vmem, size = 0x12000, scoped, tag = 'internal scratch']
  #allocation2 [shape = 'f32[32,1536]{1,0:T(8,128)}', space=vmem, size = 0x30000, scoped, tag = 'scratch operand']
  %s0 = inlined_call_operand.vmem [shape: f32[2,16,16], index: 0, kind: input, shape index: {}]
  %s1 = inlined_call_operand.vmem [shape: bf16[2,16,32], index: 1, kind: input, shape index: {}]
  %s2 = inlined_call_operand.vmem [shape: f32[32,2], index: 2, kind: input, shape index: {}]
  %s3 = inlined_call_operand.vmem [shape: bf16[32,16], index: 3, kind: input, shape index: {}]
  %s4 = inlined_call_operand.vmem [shape: f32[1,16], index: 4, kind: input, shape index: {}]
  %s5 = inlined_call_operand.vmem [shape: bf16[16,16], index: 5, kind: input, shape index: {}]
  %s6 = inlined_call_operand.vmem [shape: f32[1,16], index: 6, kind: input, shape index: {}]
  %s7 = inlined_call_operand.vmem [shape: bf16[48,256], index: 7, kind: input, shape index: {}]
  %s8 = inlined_call_operand.vmem [shape: f32[1,256], index: 8, kind: input, shape index: {}]
  %s9 = inlined_call_operand.hbm [shape: bf16[768,512], index: 9, kind: input, shape index: {}]
  %s10 = inlined_call_operand.vmem [shape: f32[1,512], index: 10, kind: input, shape index: {}]
  %s11 = inlined_call_operand.vmem [shape: bf16[1536,16], index: 11, kind: input, shape index: {}]
  %s12 = inlined_call_operand.vmem [shape: f32[1,16], index: 12, kind: input, shape index: {}]
  %s13 = inlined_call_operand.hbm [shape: f32[2,16,16], index: 13, kind: output, shape index: {}]
  %s14 = sld [smem:[#allocation0]]
  $region66: #{tpu_custom_call.1} parent=0
    _
  %s16 = ssub.s32 1, %s14
  %s17 = scalar_select 0, %s16, %s14
  $region1: #{tpu_custom_call.1} parent=0
    #allocation3 [shape = 'u8[786432]{0}', space=vmem, size = 0xc0000, scoped, tag = 'input window, operand 9, single buffered']
    #allocation4 [shape = 's32[1]{0}', space=sflag, size = 0x4, scoped, tag = 'scoped memory for tpu_custom_call.1']
    #allocation5 [shape = 's32[1]{0}', space=sflag, size = 0x4, scoped, tag = 'scoped memory for tpu_custom_call.1']
    #allocation6 [shape = 'u8[16384]{0}', space=vmem, size = 0x4000, scoped, tag = 'output window, operand 0, single buffered']
    %18 = vsyncpa [#allocation4], 0
    %19 = vsyncpa [#allocation5], 0
    // Predicated region
    $region2: #{tpu_custom_call.1} parent=1 // pred_check
      _
    $region3: #{tpu_custom_call.1} parent=1 // pred_check_branch
      %21 = sbr.rel (0) target = $region5
    $region4: #{tpu_custom_call.1} parent=1 // pred_region
      _
    $region5: #{tpu_custom_call.1} parent=1 // pred_fallthru
      _
    // Predicated region
    $region6: #{tpu_custom_call.1} parent=1 // pred_check
      _
    $region7: #{tpu_custom_call.1} parent=1 // pred_check_branch
      %23 = sbr.rel (0) target = $region9
    $region8: #{tpu_custom_call.1} parent=1 // pred_region
      _
    $region9: #{tpu_custom_call.1} parent=1 // pred_fallthru
      _
    // Predicated region
    $region10: #{tpu_custom_call.1} parent=1 // pred_check
      _
    $region11: #{tpu_custom_call.1} parent=1 // pred_check_branch
      %25 = sbr.rel (0) target = $region13
    $region12: #{tpu_custom_call.1} parent=1 // pred_region
      _
    $region13: #{tpu_custom_call.1} parent=1 // pred_fallthru
      _
    // Predicated region
    $region14: #{tpu_custom_call.1} parent=1 // pred_check
      _
    $region15: #{tpu_custom_call.1} parent=1 // pred_check_branch
      %27 = sbr.rel (0) target = $region17
    $region16: #{tpu_custom_call.1} parent=1 // pred_region
      _
    $region17: #{tpu_custom_call.1} parent=1 // pred_fallthru
      _
    // Predicated region
    $region18: #{tpu_custom_call.1} parent=1 // pred_check
      _
    $region19: #{tpu_custom_call.1} parent=1 // pred_check_branch
      %29 = sbr.rel (0) target = $region21
    $region20: #{tpu_custom_call.1} parent=1 // pred_region
      _
    $region21: #{tpu_custom_call.1} parent=1 // pred_fallthru
      _
    // Predicated region
    $region22: #{tpu_custom_call.1} parent=1 // pred_check
      _
    $region23: #{tpu_custom_call.1} parent=1 // pred_check_branch
      %31 = sbr.rel (0) target = $region25
    $region24: #{tpu_custom_call.1} parent=1 // pred_region
      _
    $region25: #{tpu_custom_call.1} parent=1 // pred_fallthru
      _
    // Predicated region
    $region26: #{tpu_custom_call.1} parent=1 // pred_check
      _
    $region27: #{tpu_custom_call.1} parent=1 // pred_check_branch
      %33 = sbr.rel (0) target = $region29
    $region28: #{tpu_custom_call.1} parent=1 // pred_region
      _
    $region29: #{tpu_custom_call.1} parent=1 // pred_fallthru
      _
    // Predicated region
    $region30: #{tpu_custom_call.1} parent=1 // pred_check
      _
    $region31: #{tpu_custom_call.1} parent=1 // pred_check_branch
      %35 = sbr.rel (0) target = $region33
    $region32: #{tpu_custom_call.1} parent=1 // pred_region
      _
    $region33: #{tpu_custom_call.1} parent=1 // pred_fallthru
      _
    // Predicated region
    $region34: #{tpu_custom_call.1} parent=1 // pred_check
      _
    $region35: #{tpu_custom_call.1} parent=1 // pred_check_branch
      %37 = sbr.rel (0) target = $region37
    $region36: #{tpu_custom_call.1} parent=1 // pred_region
      _
    $region37: #{tpu_custom_call.1} parent=1 // pred_fallthru
      _
    // Predicated region
    $region38: #{tpu_custom_call.1} parent=1 // pred_check
      _
    $region39: #{tpu_custom_call.1} parent=1 // pred_check_branch
      %39 = sbr.rel (0) target = $region41
    $region40: #{tpu_custom_call.1} parent=1 // pred_region
      %s41 = ssub.s32 24576, 24576
      %42 = vsyncadd [#allocation4], %s41
      %s43 = sshll.u32 [#allocation3], 4
      %s44 = int_to_ptr.vmem [resolvable:$true] %s43
      %49 = dma.hbm_to_vmem [thread:$0]  %s9, 24576, %s44, [#allocation4], 256, 256, 16
    $region41: #{tpu_custom_call.1} parent=1 // pred_fallthru
      _
    // Predicated region
    $region42: #{tpu_custom_call.1} parent=1 // pred_check
      _
    $region43: #{tpu_custom_call.1} parent=1 // pred_check_branch
      %51 = sbr.rel (0) target = $region45
    $region44: #{tpu_custom_call.1} parent=1 // pred_region
      _
    $region45: #{tpu_custom_call.1} parent=1 // pred_fallthru
      _
    // Predicated region
    $region46: #{tpu_custom_call.1} parent=1 // pred_check
      _
    $region47: #{tpu_custom_call.1} parent=1 // pred_check_branch
      %53 = sbr.rel (0) target = $region49
    $region48: #{tpu_custom_call.1} parent=1 // pred_region
      _
    $region49: #{tpu_custom_call.1} parent=1 // pred_fallthru
      _
    // Predicated region
    $region50: #{tpu_custom_call.1} parent=1 // pred_check
      _
    $region51: #{tpu_custom_call.1} parent=1 // pred_check_branch
      %55 = sbr.rel (0) target = $region53
    $region52: #{tpu_custom_call.1} parent=1 // pred_region
      _
    $region53: #{tpu_custom_call.1} parent=1 // pred_fallthru
      _
    // Predicated region
    $region54: #{tpu_custom_call.1} parent=1 // pred_check
      _
    $region55: #{tpu_custom_call.1} parent=1 // pred_check_branch
      %57 = sbr.rel (0) target = $region57
    $region56: #{tpu_custom_call.1} parent=1 // pred_region
      %58 = dma.done [#allocation4], 24576
    $region57: #{tpu_custom_call.1} parent=1 // pred_fallthru
      _
    %v60 = vld [vmem:[%s2] sm:$0xff]
    %v61 = vld [vmem:[%s2 + $0x8] sm:$0xff]
    %v62 = vld [vmem:[%s2 + $0x10] sm:$0xff]
    %v63 = vld [vmem:[%s2 + $0x18] sm:$0xff]
    %v64 = vld [vmem:[%s1] sm:$0xf]
    %v65 = vld [vmem:[%s1 + $0x4] sm:$0xf]
    %v66 = vld [vmem:[%s1 + $0x8] sm:$0xf]
    %v67 = vld [vmem:[%s1 + $0xc] sm:$0xf]
    %v68 = vld [vmem:[%s3] sm:$0xf]
    %v69 = vld [vmem:[%s3 + $0x4] sm:$0xf]
    %v70 = vld [vmem:[%s3 + $0x8] sm:$0xf]
    %v71 = vld [vmem:[%s3 + $0xc] sm:$0xf]
    %v72 = vld [vmem:[%s4] sm:$0x1]
    %v74 = vlaneseq
    %v75 = vshrl.u32 %v74, 7
    %v76 = vsub.s32 0, %v75
    %v77 = vrot.slane %v72, %v76
    %v83 = vunpack.c.l.b16 %v64
    %v84 = vunpack.c.l.b16 %v65
    %v85 = vunpack.c.l.b16 %v66
    %v86 = vunpack.c.l.b16 %v67
    %v87 = vpack.c.b16 %v84, %v83
    %v88 = vpack.c.b16 %v86, %v85
    %v93 = vunpack.c.l.b16 %v68
    %v94 = vunpack.c.l.b16 %v69
    %v95 = vunpack.c.l.b16 %v70
    %v96 = vunpack.c.l.b16 %v71
    %v97 = vpack.c.b16 %v94, %v93
    %v98 = vpack.c.b16 %v96, %v95
    %vm101 = vcmask 261120
    %v103 = vsel %vm101, %v87, 0
    %v106 = vsel %vm101, %v88, 0
    %108 = vmatprep.subr.bf16.mxu0 0
    %109 = vmatpush1.bf16.msra.mxu0 %v97
    %110 = vmatprep.subr.bf16.mxu0 0
    %111 = vmatpush1.bf16.msra.mxu0 %v98
    %112 = vmatprep.subr.bf16.mxu0 0
    %113 = vmatpush1.bf16.msra.mxu0 0
    %114 = vmatprep.subr.bf16.mxu0 0
    %115 = vmatpush1.bf16.msra.mxu0 0
    %116 = vmatprep.subr.bf16.mxu0 0
    %117 = vmatpush1.bf16.msra.mxu0 0
    %118 = vmatprep.subr.bf16.mxu0 0
    %119 = vmatpush1.bf16.msra.mxu0 0
    %120 = vmatprep.subr.bf16.mxu0 0
    %121 = vmatpush1.bf16.msra.mxu0 0
    %122 = vmatprep.subr.bf16.mxu0 0
    %123 = vmatpush1.bf16.msra.mxu0 0
    %124 = vmatprep.subr.bf16.mxu0 0
    %125 = vmatpush1.bf16.msra.mxu0 0
    %126 = vmatprep.subr.bf16.mxu0 0
    %127 = vmatpush1.bf16.msra.mxu0 0
    %128 = vmatprep.subr.bf16.mxu0 0
    %129 = vmatpush1.bf16.msra.mxu0 0
    %130 = vmatprep.subr.bf16.mxu0 0
    %131 = vmatpush1.bf16.msra.mxu0 0
    %132 = vmatprep.subr.bf16.mxu0 0
    %133 = vmatpush1.bf16.msra.mxu0 0
    %134 = vmatprep.subr.bf16.mxu0 0
    %135 = vmatpush1.bf16.msra.mxu0 0
    %136 = vmatprep.subr.bf16.mxu0 0
    %137 = vmatpush1.bf16.msra.mxu0 0
    %138 = vmatprep.subr.bf16.mxu0 0
    %139 = vmatpush1.bf16.msra.mxu0 0
    %140 = vmatprep.mubr.bf16.mxu0 0
    %141 = vmatmul.mubr.bf16.gmra.mrb[0].mxu0 %v103
    %v142 = vpop.f32.mrb[0].mxu0
    %v143 = vadd.f32 %v77, %v142
    %v144 = vpop.f32.mrb[0].mxu0
    %v145 = vpop.f32.mrb[0].mxu0
    %v146 = vadd.f32 %v77, %v145
    %v147 = vpop.f32.mrb[0].mxu0
    %148 = vmatprep.mubr.bf16.mxu0 0
    %149 = vmatmul.mubr.bf16.gmra.mrb[0].mxu0 %v106
    %v150 = vpop.f32.mrb[0].mxu0
    %v151 = vadd.f32 %v77, %v150
    %v152 = vpop.f32.mrb[0].mxu0
    %v153 = vpop.f32.mrb[0].mxu0
    %v154 = vadd.f32 %v77, %v153
    %v155 = vpop.f32.mrb[0].mxu0
    %156 = vdwg.mxu0
    %vm157 = vcmask 130048
    %v158 = vsel %vm157, %v143, -inf
    %159 = vmax.xlane.f32.xlu0 %v158
    %v160 = vpop.xlane.xlu0 %159
    %v161 = vsel %vm157, %v146, -inf
    %162 = vmax.xlane.f32.xlu0 %v161
    %v163 = vpop.xlane.xlu0 %162
    %v164 = vsel %vm157, %v151, -inf
    %165 = vmax.xlane.f32.xlu0 %v164
    %v166 = vpop.xlane.xlu0 %165
    %v167 = vsel %vm157, %v154, -inf
    %168 = vmax.xlane.f32.xlu0 %v167
    %v169 = vpop.xlane.xlu0 %168
    %v170 = vsub.f32 %v143, %v160
    %v171 = vsub.f32 %v146, %v163
    %v172 = vsub.f32 %v151, %v166
    %v173 = vsub.f32 %v154, %v169
    %v174 = vmul.f32 %v170, 1.442695
    %v175 = vpow.pop %v174
    %v176 = vmul.f32 %v171, 1.442695
    %v177 = vpow.pop %v176
    %v178 = vmul.f32 %v172, 1.442695
    %v179 = vpow.pop %v178
    %v180 = vmul.f32 %v173, 1.442695
    %v181 = vpow.pop %v180
    %v182 = vsel %vm157, %v175, 0.0
    %183 = vadd.xlane.f32.xlu0 %v182
    %v184 = vpop.xlane.xlu0 %183
    %v185 = vsel %vm157, %v177, 0.0
    %186 = vadd.xlane.f32.xlu0 %v185
    %v187 = vpop.xlane.xlu0 %186
    %v188 = vsel %vm157, %v179, 0.0
    %189 = vadd.xlane.f32.xlu0 %v188
    %v190 = vpop.xlane.xlu0 %189
    %v191 = vsel %vm157, %v181, 0.0
    %192 = vadd.xlane.f32.xlu0 %v191
    %v193 = vpop.xlane.xlu0 %192
    %v194 = vrcp.pop %v184
    %v195 = vmul.f32 %v175, %v194
    %v196 = vrcp.pop %v187
    %v197 = vmul.f32 %v177, %v196
    %v198 = vrcp.pop %v190
    %v199 = vmul.f32 %v179, %v198
    %v200 = vrcp.pop %v193
    %v201 = vmul.f32 %v181, %v200
    %v202 = vld [vmem:[%s0] sm:$0xff]
    %v203 = vld [vmem:[%s0 + $0x8] sm:$0xff]
    %v204 = vld [vmem:[%s0 + $0x10] sm:$0xff]
    %v205 = vld [vmem:[%s0 + $0x18] sm:$0xff]
    %v206 = vadd.f32 %v195, %v202
    %v207 = vadd.f32 %v197, %v203
    %v208 = vadd.f32 %v199, %v204
    %v209 = vadd.f32 %v201, %v205
    %v210 = vmax.f32 %v206, 0.0
    %v211 = vmax.f32 %v207, 0.0
    %v212 = vmax.f32 %v208, 0.0
    %v213 = vmax.f32 %v209, 0.0
    %v214 = vpack.c.bf16 %v211, %v210
    %v215 = vpack.c.bf16 %v213, %v212
    %v216 = vld [vmem:[%s5] sm:$0xf]
    %v217 = vld [vmem:[%s5 + $0x4] sm:$0xf]
    %v218 = vld [vmem:[%s6] sm:$0x1]
    %v220 = vlaneseq
    %v221 = vshrl.u32 %v220, 7
    %v222 = vsub.s32 0, %v221
    %v223 = vrot.slane %v218, %v222
    %v227 = vunpack.c.l.b16 %v216
    %v228 = vunpack.c.l.b16 %v217
    %v229 = vpack.c.b16 %v228, %v227
    %v232 = vsel %vm157, %v214, 0
    %v235 = vsel %vm157, %v215, 0
    %237 = vmatprep.subr.bf16.mxu0 0
    %238 = vmatpush1.bf16.msra.mxu0 %v229
    %239 = vmatprep.subr.bf16.mxu0 0
    %240 = vmatpush1.bf16.msra.mxu0 0
    %241 = vmatprep.subr.bf16.mxu0 0
    %242 = vmatpush1.bf16.msra.mxu0 0
    %243 = vmatprep.subr.bf16.mxu0 0
    %244 = vmatpush1.bf16.msra.mxu0 0
    %245 = vmatprep.subr.bf16.mxu0 0
    %246 = vmatpush1.bf16.msra.mxu0 0
    %247 = vmatprep.subr.bf16.mxu0 0
    %248 = vmatpush1.bf16.msra.mxu0 0
    %249 = vmatprep.subr.bf16.mxu0 0
    %250 = vmatpush1.bf16.msra.mxu0 0
    %251 = vmatprep.subr.bf16.mxu0 0
    %252 = vmatpush1.bf16.msra.mxu0 0
    %253 = vmatprep.subr.bf16.mxu0 0
    %254 = vmatpush1.bf16.msra.mxu0 0
    %255 = vmatprep.subr.bf16.mxu0 0
    %256 = vmatpush1.bf16.msra.mxu0 0
    %257 = vmatprep.subr.bf16.mxu0 0
    %258 = vmatpush1.bf16.msra.mxu0 0
    %259 = vmatprep.subr.bf16.mxu0 0
    %260 = vmatpush1.bf16.msra.mxu0 0
    %261 = vmatprep.subr.bf16.mxu0 0
    %262 = vmatpush1.bf16.msra.mxu0 0
    %263 = vmatprep.subr.bf16.mxu0 0
    %264 = vmatpush1.bf16.msra.mxu0 0
    %265 = vmatprep.subr.bf16.mxu0 0
    %266 = vmatpush1.bf16.msra.mxu0 0
    %267 = vmatprep.subr.bf16.mxu0 0
    %268 = vmatpush1.bf16.msra.mxu0 0
    %269 = vmatprep.mubr.bf16.mxu0 0
    %270 = vmatmul.mubr.bf16.gmra.mrb[0].mxu0 %v232
    %v271 = vpop.f32.mrb[0].mxu0
    %v272 = vadd.f32 %v223, %v271
    %v273 = vpop.f32.mrb[0].mxu0
    %v274 = vpop.f32.mrb[0].mxu0
    %v275 = vadd.f32 %v223, %v274
    %v276 = vpop.f32.mrb[0].mxu0
    %277 = vmatprep.mubr.bf16.mxu0 0
    %278 = vmatmul.mubr.bf16.gmra.mrb[0].mxu0 %v235
    %v279 = vpop.f32.mrb[0].mxu0
    %v280 = vadd.f32 %v223, %v279
    %v281 = vpop.f32.mrb[0].mxu0
    %v282 = vpop.f32.mrb[0].mxu0
    %v283 = vadd.f32 %v223, %v282
    %v284 = vpop.f32.mrb[0].mxu0
    %285 = vdwg.mxu0
    %v286 = vrot.slane %v272, 7
    %v287 = vrot.slane %v275, 7
    %v288 = vrot.slane %v280, 7
    %v289 = vrot.slane %v283, 7
    %v290 = vlaneseq
    %v291 = vshrl.u32 %v290, 7
    %vm292 = vcmp.lt.s32.totalorder %v291, 1
    %v293 = vsel %vm292, %v288, %v289
    %v294 = vsel %vm292, %v287, %v288
    %v295 = vsel %vm292, %v286, %v287
    %v296 = vsel %vm292, %v289, %v286
    %298 = vset.pattern.permute.xlu0 0
    %299 = vperm.xlu0 %298, %v60
    %v300 = vpop.permute.xlu0 %299
    %303 = vset.pattern.permute.xlu0 0
    %304 = vperm.xlu0 %303, %v61
    %v305 = vpop.permute.xlu0 %304
    %308 = vset.pattern.permute.xlu0 0
    %309 = vperm.xlu0 %308, %v62
    %v310 = vpop.permute.xlu0 %309
    %313 = vset.pattern.permute.xlu0 0
    %314 = vperm.xlu0 %313, %v63
    %v315 = vpop.permute.xlu0 %314
    %v317 = vmul.f32 %v296, %v300
    %v318 = vmul.f32 %v295, %v305
    %v319 = vmul.f32 %v294, %v310
    %v320 = vmul.f32 %v293, %v315
    %321 = vst.msk [vmem:[#allocation2] sm:$0xff] %vm157, %v317
    %322 = vst.msk [vmem:[#allocation2 + $0x60] sm:$0xff] %vm157, %v318
    %323 = vst.msk [vmem:[#allocation2 + $0xc0] sm:$0xff] %vm157, %v319
    %324 = vst.msk [vmem:[#allocation2 + $0x120] sm:$0xff] %vm157, %v320
    %329 = vrot.lane.b32.xlu0 %v272, 16
    %v330 = vpop.permute.xlu0 %329
    %331 = vrot.lane.b32.xlu0 %v275, 16
    %v332 = vpop.permute.xlu0 %331
    %333 = vrot.lane.b32.xlu0 %v280, 16
    %v334 = vpop.permute.xlu0 %333
    %335 = vrot.lane.b32.xlu0 %v283, 16
    %v336 = vpop.permute.xlu0 %335
    %vm341 = vcmask 261248
    %342 = vst.msk [vmem:[#allocation2] sm:$0xff] %vm341, %v330
    %343 = vst.msk [vmem:[#allocation2 + $0x60] sm:$0xff] %vm341, %v332
    %344 = vst.msk [vmem:[#allocation2 + $0xc0] sm:$0xff] %vm341, %v334
    %345 = vst.msk [vmem:[#allocation2 + $0x120] sm:$0xff] %vm341, %v336
    %v346 = vrot.slane %v272, 1
    %v347 = vrot.slane %v275, 1
    %v348 = vrot.slane %v280, 1
    %v349 = vrot.slane %v283, 1
    %vm350 = vcmp.lt.s32.totalorder %v291, 7
    %v351 = vsel %vm350, %v348, %v349
    %v352 = vsel %vm350, %v347, %v348
    %v353 = vsel %vm350, %v346, %v347
    %v354 = vsel %vm350, %v349, %v346
    %355 = vset.pattern.permute.xlu0 1
    %356 = vperm.xlu0 %355, %v60
    %v357 = vpop.permute.xlu0 %356
    %359 = vset.pattern.permute.xlu0 1
    %360 = vperm.xlu0 %359, %v61
    %v361 = vpop.permute.xlu0 %360
    %363 = vset.pattern.permute.xlu0 1
    %364 = vperm.xlu0 %363, %v62
    %v365 = vpop.permute.xlu0 %364
    %367 = vset.pattern.permute.xlu0 1
    %368 = vperm.xlu0 %367, %v63
    %v369 = vpop.permute.xlu0 %368
    %v371 = vmul.f32 %v353, %v357
    %v372 = vmul.f32 %v352, %v361
    %v373 = vmul.f32 %v351, %v365
    %v374 = vmul.f32 %v354, %v369
    %379 = vrot.lane.b32.xlu0 %v371, 32
    %v380 = vpop.permute.xlu0 %379
    %381 = vrot.lane.b32.xlu0 %v372, 32
    %v382 = vpop.permute.xlu0 %381
    %383 = vrot.lane.b32.xlu0 %v373, 32
    %v384 = vpop.permute.xlu0 %383
    %385 = vrot.lane.b32.xlu0 %v374, 32
    %v386 = vpop.permute.xlu0 %385
    %vm391 = vcmask 392448
    %392 = vst.msk [vmem:[#allocation2] sm:$0xff] %vm391, %v380
    %393 = vst.msk [vmem:[#allocation2 + $0x60] sm:$0xff] %vm391, %v382
    %394 = vst.msk [vmem:[#allocation2 + $0xc0] sm:$0xff] %vm391, %v384
    %395 = vst.msk [vmem:[#allocation2 + $0x120] sm:$0xff] %vm391, %v386
    %v396 = vld [vmem:[#allocation2] sm:$0xff]
    %v397 = vld [vmem:[#allocation2 + $0x60] sm:$0xff]
    %v398 = vld [vmem:[#allocation2 + $0xc0] sm:$0xff]
    %v399 = vld [vmem:[#allocation2 + $0x120] sm:$0xff]
    %v400 = vpack.c.bf16 %v397, %v396
    %v401 = vpack.c.bf16 %v399, %v398
    %v402 = vld [vmem:[%s7] sm:$0xff]
    %v403 = vld [vmem:[%s7 + $0x8] sm:$0xff]
    %v404 = vld [vmem:[%s7 + $0x10] sm:$0xff]
    %v405 = vld [vmem:[%s7 + $0x18] sm:$0xff]
    %v406 = vld [vmem:[%s7 + $0x20] sm:$0xff]
    %v407 = vld [vmem:[%s7 + $0x28] sm:$0xff]
    %v408 = vld [vmem:[%s8] sm:$0x3]
    %v410 = vlaneseq
    %v411 = vshrl.u32 %v410, 7
    %v412 = vsub.s32 0, %v411
    %v413 = vrot.slane %v408, %v412
    %v414 = vlaneseq
    %v415 = vshrl.u32 %v414, 7
    %v416 = vsub.s32 1, %v415
    %v417 = vrot.slane %v408, %v416
    %v426 = vunpack.c.l.b16 %v402
    %v427 = vunpack.c.h.b16 %v402
    %v428 = vunpack.c.l.b16 %v403
    %v429 = vunpack.c.h.b16 %v403
    %v430 = vunpack.c.l.b16 %v404
    %v431 = vunpack.c.h.b16 %v404
    %v432 = vunpack.c.l.b16 %v405
    %v433 = vunpack.c.h.b16 %v405
    %v434 = vunpack.c.l.b16 %v406
    %v435 = vunpack.c.h.b16 %v406
    %v436 = vunpack.c.l.b16 %v407
    %v437 = vunpack.c.h.b16 %v407
    %v438 = vpack.c.b16 %v428, %v426
    %v439 = vpack.c.b16 %v429, %v427
    %v440 = vpack.c.b16 %v432, %v430
    %v441 = vpack.c.b16 %v433, %v431
    %v442 = vpack.c.b16 %v436, %v434
    %v443 = vpack.c.b16 %v437, %v435
    %vm450 = vcmask 392192
    %v452 = vsel %vm450, %v400, 0
    %v455 = vsel %vm450, %v401, 0
    %457 = vmatprep.subr.bf16.mxu0 %v439
    %458 = vmatpush1.bf16.msra.mxu0 %v438
    %459 = vmatprep.subr.bf16.mxu0 %v441
    %460 = vmatpush1.bf16.msra.mxu0 %v440
    %461 = vmatprep.subr.bf16.mxu0 %v443
    %462 = vmatpush1.bf16.msra.mxu0 %v442
    %463 = vmatprep.subr.bf16.mxu0 0
    %464 = vmatpush1.bf16.msra.mxu0 0
    %465 = vmatprep.subr.bf16.mxu0 0
    %466 = vmatpush1.bf16.msra.mxu0 0
    %467 = vmatprep.subr.bf16.mxu0 0
    %468 = vmatpush1.bf16.msra.mxu0 0
    %469 = vmatprep.subr.bf16.mxu0 0
    %470 = vmatpush1.bf16.msra.mxu0 0
    %471 = vmatprep.subr.bf16.mxu0 0
    %472 = vmatpush1.bf16.msra.mxu0 0
    %473 = vmatprep.subr.bf16.mxu0 0
    %474 = vmatpush1.bf16.msra.mxu0 0
    %475 = vmatprep.subr.bf16.mxu0 0
    %476 = vmatpush1.bf16.msra.mxu0 0
    %477 = vmatprep.subr.bf16.mxu0 0
    %478 = vmatpush1.bf16.msra.mxu0 0
    %479 = vmatprep.subr.bf16.mxu0 0
    %480 = vmatpush1.bf16.msra.mxu0 0
    %481 = vmatprep.subr.bf16.mxu0 0
    %482 = vmatpush1.bf16.msra.mxu0 0
    %483 = vmatprep.subr.bf16.mxu0 0
    %484 = vmatpush1.bf16.msra.mxu0 0
    %485 = vmatprep.subr.bf16.mxu0 0
    %486 = vmatpush1.bf16.msra.mxu0 0
    %487 = vmatprep.subr.bf16.mxu0 0
    %488 = vmatpush1.bf16.msra.mxu0 0
    %489 = vmatprep.mubr.bf16.mxu0 0
    %490 = vmatmul.mubr.bf16.gmra.mrb[0].mxu0 %v452
    %v491 = vpop.f32.mrb[0].mxu0
    %v492 = vadd.f32 %v413, %v491
    %v493 = vpop.f32.mrb[0].mxu0
    %v494 = vadd.f32 %v417, %v493
    %v495 = vpop.f32.mrb[0].mxu0
    %v496 = vadd.f32 %v413, %v495
    %v497 = vpop.f32.mrb[0].mxu0
    %v498 = vadd.f32 %v417, %v497
    %499 = vmatprep.mubr.bf16.mxu0 0
    %500 = vmatmul.mubr.bf16.gmra.mrb[0].mxu0 %v455
    %v501 = vpop.f32.mrb[0].mxu0
    %v502 = vadd.f32 %v413, %v501
    %v503 = vpop.f32.mrb[0].mxu0
    %v504 = vadd.f32 %v417, %v503
    %v505 = vpop.f32.mrb[0].mxu0
    %v506 = vadd.f32 %v413, %v505
    %v507 = vpop.f32.mrb[0].mxu0
    %v508 = vadd.f32 %v417, %v507
    %509 = vdwg.mxu0
    %v510 = vmax.f32 %v492, 0.0
    %v511 = vmax.f32 %v494, 0.0
    %v512 = vmax.f32 %v496, 0.0
    %v513 = vmax.f32 %v498, 0.0
    %v514 = vmax.f32 %v502, 0.0
    %v515 = vmax.f32 %v504, 0.0
    %v516 = vmax.f32 %v506, 0.0
    %v517 = vmax.f32 %v508, 0.0
    %v518 = vrot.slane %v510, 7
    %v519 = vrot.slane %v511, 7
    %v520 = vrot.slane %v512, 7
    %v521 = vrot.slane %v513, 7
    %v522 = vrot.slane %v514, 7
    %v523 = vrot.slane %v515, 7
    %v524 = vrot.slane %v516, 7
    %v525 = vrot.slane %v517, 7
    %v526 = vsel %vm292, %v522, %v524
    %v527 = vsel %vm292, %v523, %v525
    %v528 = vsel %vm292, %v520, %v522
    %v529 = vsel %vm292, %v521, %v523
    %v530 = vsel %vm292, %v518, %v520
    %v531 = vsel %vm292, %v519, %v521
    %v532 = vsel %vm292, %v524, %v518
    %v533 = vsel %vm292, %v525, %v519
    %v534 = vmul.f32 %v532, %v300
    %v535 = vmul.f32 %v533, %v300
    %v536 = vmul.f32 %v530, %v305
    %v537 = vmul.f32 %v531, %v305
    %v538 = vmul.f32 %v528, %v310
    %v539 = vmul.f32 %v529, %v310
    %v540 = vmul.f32 %v526, %v315
    %v541 = vmul.f32 %v527, %v315
    %542 = vst [vmem:[#allocation2] sm:$0xff] %v534
    %543 = vst [vmem:[#allocation2 + $0x8] sm:$0xff] %v535
    %544 = vst [vmem:[#allocation2 + $0x60] sm:$0xff] %v536
    %545 = vst [vmem:[#allocation2 + $0x68] sm:$0xff] %v537
    %546 = vst [vmem:[#allocation2 + $0xc0] sm:$0xff] %v538
    %547 = vst [vmem:[#allocation2 + $0xc8] sm:$0xff] %v539
    %548 = vst [vmem:[#allocation2 + $0x120] sm:$0xff] %v540
    %549 = vst [vmem:[#allocation2 + $0x128] sm:$0xff] %v541
    %550 = vst [vmem:[#allocation2 + $0x10] sm:$0xff] %v510
    %551 = vst [vmem:[#allocation2 + $0x18] sm:$0xff] %v511
    %552 = vst [vmem:[#allocation2 + $0x70] sm:$0xff] %v512
    %553 = vst [vmem:[#allocation2 + $0x78] sm:$0xff] %v513
    %554 = vst [vmem:[#allocation2 + $0xd0] sm:$0xff] %v514
    %555 = vst [vmem:[#allocation2 + $0xd8] sm:$0xff] %v515
    %556 = vst [vmem:[#allocation2 + $0x130] sm:$0xff] %v516
    %557 = vst [vmem:[#allocation2 + $0x138] sm:$0xff] %v517
    %v558 = vrot.slane %v510, 1
    %v559 = vrot.slane %v511, 1
    %v560 = vrot.slane %v512, 1
    %v561 = vrot.slane %v513, 1
    %v562 = vrot.slane %v514, 1
    %v563 = vrot.slane %v515, 1
    %v564 = vrot.slane %v516, 1
    %v565 = vrot.slane %v517, 1
    %v566 = vsel %vm350, %v562, %v564
    %v567 = vsel %vm350, %v563, %v565
    %v568 = vsel %vm350, %v560, %v562
    %v569 = vsel %vm350, %v561, %v563
    %v570 = vsel %vm350, %v558, %v560
    %v571 = vsel %vm350, %v559, %v561
    %v572 = vsel %vm350, %v564, %v558
    %v573 = vsel %vm350, %v565, %v559
    %v574 = vmul.f32 %v570, %v357
    %v575 = vmul.f32 %v571, %v357
    %v576 = vmul.f32 %v568, %v361
    %v577 = vmul.f32 %v569, %v361
    %v578 = vmul.f32 %v566, %v365
    %v579 = vmul.f32 %v567, %v365
    %v580 = vmul.f32 %v572, %v369
    %v581 = vmul.f32 %v573, %v369
    %582 = vst [vmem:[#allocation2 + $0x20] sm:$0xff] %v574
    %583 = vst [vmem:[#allocation2 + $0x28] sm:$0xff] %v575
    %584 = vst [vmem:[#allocation2 + $0x80] sm:$0xff] %v576
    %585 = vst [vmem:[#allocation2 + $0x88] sm:$0xff] %v577
    %586 = vst [vmem:[#allocation2 + $0xe0] sm:$0xff] %v578
    %587 = vst [vmem:[#allocation2 + $0xe8] sm:$0xff] %v579
    %588 = vst [vmem:[#allocation2 + $0x140] sm:$0xff] %v580
    %589 = vst [vmem:[#allocation2 + $0x148] sm:$0xff] %v581
    %v590 = vld [vmem:[#allocation2] sm:$0xff]
    %v591 = vld [vmem:[#allocation2 + $0x8] sm:$0xff]
    %v592 = vld [vmem:[#allocation2 + $0x10] sm:$0xff]
    %v593 = vld [vmem:[#allocation2 + $0x18] sm:$0xff]
    %v594 = vld [vmem:[#allocation2 + $0x20] sm:$0xff]
    %v595 = vld [vmem:[#allocation2 + $0x28] sm:$0xff]
    %v596 = vld [vmem:[#allocation2 + $0x60] sm:$0xff]
    %v597 = vld [vmem:[#allocation2 + $0x68] sm:$0xff]
    %v598 = vld [vmem:[#allocation2 + $0x70] sm:$0xff]
    %v599 = vld [vmem:[#allocation2 + $0x78] sm:$0xff]
    %v600 = vld [vmem:[#allocation2 + $0x80] sm:$0xff]
    %v601 = vld [vmem:[#allocation2 + $0x88] sm:$0xff]
    %v602 = vld [vmem:[#allocation2 + $0xc0] sm:$0xff]
    %v603 = vld [vmem:[#allocation2 + $0xc8] sm:$0xff]
    %v604 = vld [vmem:[#allocation2 + $0xd0] sm:$0xff]
    %v605 = vld [vmem:[#allocation2 + $0xd8] sm:$0xff]
    %v606 = vld [vmem:[#allocation2 + $0xe0] sm:$0xff]
    %v607 = vld [vmem:[#allocation2 + $0xe8] sm:$0xff]
    %v608 = vld [vmem:[#allocation2 + $0x120] sm:$0xff]
    %v609 = vld [vmem:[#allocation2 + $0x128] sm:$0xff]
    %v610 = vld [vmem:[#allocation2 + $0x130] sm:$0xff]
    %v611 = vld [vmem:[#allocation2 + $0x138] sm:$0xff]
    %v612 = vld [vmem:[#allocation2 + $0x140] sm:$0xff]
    %v613 = vld [vmem:[#allocation2 + $0x148] sm:$0xff]
    %v614 = vpack.c.bf16 %v596, %v590
    %v615 = vpack.c.bf16 %v597, %v591
    %v616 = vpack.c.bf16 %v598, %v592
    %v617 = vpack.c.bf16 %v599, %v593
    %v618 = vpack.c.bf16 %v600, %v594
    %v619 = vpack.c.bf16 %v601, %v595
    %v620 = vpack.c.bf16 %v608, %v602
    %v621 = vpack.c.bf16 %v609, %v603
    %v622 = vpack.c.bf16 %v610, %v604
    %v623 = vpack.c.bf16 %v611, %v605
    %v624 = vpack.c.bf16 %v612, %v606
    %v625 = vpack.c.bf16 %v613, %v607
    %v626 = vld [vmem:[#allocation3] sm:$0xff]
    %v627 = vld [vmem:[#allocation3 + $0x8] sm:$0xff]
    %v628 = vld [vmem:[#allocation3 + $0x10] sm:$0xff]
    %v629 = vld [vmem:[#allocation3 + $0x18] sm:$0xff]
    %v630 = vld [vmem:[#allocation3 + $0x20] sm:$0xff]
    %v631 = vld [vmem:[#allocation3 + $0x28] sm:$0xff]
    %v632 = vld [vmem:[#allocation3 + $0x30] sm:$0xff]
    %v633 = vld [vmem:[#allocation3 + $0x38] sm:$0xff]
    %v634 = vld [vmem:[#allocation3 + $0x40] sm:$0xff]
    %v635 = vld [vmem:[#allocation3 + $0x48] sm:$0xff]
    %v636 = vld [vmem:[#allocation3 + $0x50] sm:$0xff]
    %v637 = vld [vmem:[#allocation3 + $0x58] sm:$0xff]
    %v638 = vld [vmem:[#allocation3 + $0x60] sm:$0xff]
    %v639 = vld [vmem:[#allocation3 + $0x68] sm:$0xff]
    %v640 = vld [vmem:[#allocation3 + $0x70] sm:$0xff]
    %v641 = vld [vmem:[#allocation3 + $0x78] sm:$0xff]
    %v642 = vld [vmem:[#allocation3 + $0x80] sm:$0xff]
    %v643 = vld [vmem:[#allocation3 + $0x88] sm:$0xff]
    %v644 = vld [vmem:[#allocation3 + $0x90] sm:$0xff]
    %v645 = vld [vmem:[#allocation3 + $0x98] sm:$0xff]
    %v646 = vld [vmem:[#allocation3 + $0xa0] sm:$0xff]
    %v647 = vld [vmem:[#allocation3 + $0xa8] sm:$0xff]
    %v648 = vld [vmem:[#allocation3 + $0xb0] sm:$0xff]
    %v649 = vld [vmem:[#allocation3 + $0xb8] sm:$0xff]
    %v650 = vld [vmem:[#allocation3 + $0xc0] sm:$0xff]
    %v651 = vld [vmem:[#allocation3 + $0xc8] sm:$0xff]
    %v652 = vld [vmem:[#allocation3 + $0xd0] sm:$0xff]
    %v653 = vld [vmem:[#allocation3 + $0xd8] sm:$0xff]
    %v654 = vld [vmem:[#allocation3 + $0xe0] sm:$0xff]
    %v655 = vld [vmem:[#allocation3 + $0xe8] sm:$0xff]
    %v656 = vld [vmem:[#allocation3 + $0xf0] sm:$0xff]
    %v657 = vld [vmem:[#allocation3 + $0xf8] sm:$0xff]
    %v658 = vld [vmem:[#allocation3 + $0x100] sm:$0xff]
    %v659 = vld [vmem:[#allocation3 + $0x108] sm:$0xff]
    %v660 = vld [vmem:[#allocation3 + $0x110] sm:$0xff]
    %v661 = vld [vmem:[#allocation3 + $0x118] sm:$0xff]
    %v662 = vld [vmem:[#allocation3 + $0x120] sm:$0xff]
    %v663 = vld [vmem:[#allocation3 + $0x128] sm:$0xff]
    %v664 = vld [vmem:[#allocation3 + $0x130] sm:$0xff]
    %v665 = vld [vmem:[#allocation3 + $0x138] sm:$0xff]
    %v666 = vld [vmem:[#allocation3 + $0x140] sm:$0xff]
    %v667 = vld [vmem:[#allocation3 + $0x148] sm:$0xff]
    %v668 = vld [vmem:[#allocation3 + $0x150] sm:$0xff]
    %v669 = vld [vmem:[#allocation3 + $0x158] sm:$0xff]
    %v670 = vld [vmem:[#allocation3 + $0x160] sm:$0xff]
    %v671 = vld [vmem:[#allocation3 + $0x168] sm:$0xff]
    %v672 = vld [vmem:[#allocation3 + $0x170] sm:$0xff]
    %v673 = vld [vmem:[#allocation3 + $0x178] sm:$0xff]
    %v674 = vld [vmem:[#allocation3 + $0x180] sm:$0xff]
    %v675 = vld [vmem:[#allocation3 + $0x188] sm:$0xff]
    %v676 = vld [vmem:[#allocation3 + $0x190] sm:$0xff]
    %v677 = vld [vmem:[#allocation3 + $0x198] sm:$0xff]
    %v678 = vld [vmem:[#allocation3 + $0x1a0] sm:$0xff]
    %v679 = vld [vmem:[#allocation3 + $0x1a8] sm:$0xff]
    %v680 = vld [vmem:[#allocation3 + $0x1b0] sm:$0xff]
    %v681 = vld [vmem:[#allocation3 + $0x1b8] sm:$0xff]
    %v682 = vld [vmem:[#allocation3 + $0x1c0] sm:$0xff]
    %v683 = vld [vmem:[#allocation3 + $0x1c8] sm:$0xff]
    %v684 = vld [vmem:[#allocation3 + $0x1d0] sm:$0xff]
    %v685 = vld [vmem:[#allocation3 + $0x1d8] sm:$0xff]
    %v686 = vld [vmem:[#allocation3 + $0x1e0] sm:$0xff]
    %v687 = vld [vmem:[#allocation3 + $0x1e8] sm:$0xff]
    %v688 = vld [vmem:[#allocation3 + $0x1f0] sm:$0xff]
    %v689 = vld [vmem:[#allocation3 + $0x1f8] sm:$0xff]
    %v690 = vld [vmem:[#allocation3 + $0x200] sm:$0xff]
    %v691 = vld [vmem:[#allocation3 + $0x208] sm:$0xff]
    %v692 = vld [vmem:[#allocation3 + $0x210] sm:$0xff]
    %v693 = vld [vmem:[#allocation3 + $0x218] sm:$0xff]
    %v694 = vld [vmem:[#allocation3 + $0x220] sm:$0xff]
    %v695 = vld [vmem:[#allocation3 + $0x228] sm:$0xff]
    %v696 = vld [vmem:[#allocation3 + $0x230] sm:$0xff]
    %v697 = vld [vmem:[#allocation3 + $0x238] sm:$0xff]
    %v698 = vld [vmem:[#allocation3 + $0x240] sm:$0xff]
    %v699 = vld [vmem:[#allocation3 + $0x248] sm:$0xff]
    %v700 = vld [vmem:[#allocation3 + $0x250] sm:$0xff]
    %v701 = vld [vmem:[#allocation3 + $0x258] sm:$0xff]
    %v702 = vld [vmem:[#allocation3 + $0x260] sm:$0xff]
    %v703 = vld [vmem:[#allocation3 + $0x268] sm:$0xff]
    %v704 = vld [vmem:[#allocation3 + $0x270] sm:$0xff]
    %v705 = vld [vmem:[#allocation3 + $0x278] sm:$0xff]
    %v706 = vld [vmem:[#allocation3 + $0x280] sm:$0xff]
    %v707 = vld [vmem:[#allocation3 + $0x288] sm:$0xff]
    %v708 = vld [vmem:[#allocation3 + $0x290] sm:$0xff]
    %v709 = vld [vmem:[#allocation3 + $0x298] sm:$0xff]
    %v710 = vld [vmem:[#allocation3 + $0x2a0] sm:$0xff]
    %v711 = vld [vmem:[#allocation3 + $0x2a8] sm:$0xff]
    %v712 = vld [vmem:[#allocation3 + $0x2b0] sm:$0xff]
    %v713 = vld [vmem:[#allocation3 + $0x2b8] sm:$0xff]
    %v714 = vld [vmem:[#allocation3 + $0x2c0] sm:$0xff]
    %v715 = vld [vmem:[#allocation3 + $0x2c8] sm:$0xff]
    %v716 = vld [vmem:[#allocation3 + $0x2d0] sm:$0xff]
    %v717 = vld [vmem:[#allocation3 + $0x2d8] sm:$0xff]
    %v718 = vld [vmem:[#allocation3 + $0x2e0] sm:$0xff]
    %v719 = vld [vmem:[#allocation3 + $0x2e8] sm:$0xff]
    %v720 = vld [vmem:[#allocation3 + $0x2f0] sm:$0xff]
    %v721 = vld [vmem:[#allocation3 + $0x2f8] sm:$0xff]
    %v722 = vld [vmem:[#allocation3 + $0x300] sm:$0xff]
    %v723 = vld [vmem:[#allocation3 + $0x308] sm:$0xff]
    %v724 = vld [vmem:[#allocation3 + $0x310] sm:$0xff]
    %v725 = vld [vmem:[#allocation3 + $0x318] sm:$0xff]
    %v726 = vld [vmem:[#allocation3 + $0x320] sm:$0xff]
    %v727 = vld [vmem:[#allocation3 + $0x328] sm:$0xff]
    %v728 = vld [vmem:[#allocation3 + $0x330] sm:$0xff]
    %v729 = vld [vmem:[#allocation3 + $0x338] sm:$0xff]
    %v730 = vld [vmem:[#allocation3 + $0x340] sm:$0xff]
    %v731 = vld [vmem:[#allocation3 + $0x348] sm:$0xff]
    %v732 = vld [vmem:[#allocation3 + $0x350] sm:$0xff]
    %v733 = vld [vmem:[#allocation3 + $0x358] sm:$0xff]
    %v734 = vld [vmem:[#allocation3 + $0x360] sm:$0xff]
    %v735 = vld [vmem:[#allocation3 + $0x368] sm:$0xff]
    %v736 = vld [vmem:[#allocation3 + $0x370] sm:$0xff]
    %v737 = vld [vmem:[#allocation3 + $0x378] sm:$0xff]
    %v738 = vld [vmem:[#allocation3 + $0x380] sm:$0xff]
    %v739 = vld [vmem:[#allocation3 + $0x388] sm:$0xff]
    %v740 = vld [vmem:[#allocation3 + $0x390] sm:$0xff]
    %v741 = vld [vmem:[#allocation3 + $0x398] sm:$0xff]
    %v742 = vld [vmem:[#allocation3 + $0x3a0] sm:$0xff]
    %v743 = vld [vmem:[#allocation3 + $0x3a8] sm:$0xff]
    %v744 = vld [vmem:[#allocation3 + $0x3b0] sm:$0xff]
    %v745 = vld [vmem:[#allocation3 + $0x3b8] sm:$0xff]
    %v746 = vld [vmem:[#allocation3 + $0x3c0] sm:$0xff]
    %v747 = vld [vmem:[#allocation3 + $0x3c8] sm:$0xff]
    %v748 = vld [vmem:[#allocation3 + $0x3d0] sm:$0xff]
    %v749 = vld [vmem:[#allocation3 + $0x3d8] sm:$0xff]
    %v750 = vld [vmem:[#allocation3 + $0x3e0] sm:$0xff]
    %v751 = vld [vmem:[#allocation3 + $0x3e8] sm:$0xff]
    %v752 = vld [vmem:[#allocation3 + $0x3f0] sm:$0xff]
    %v753 = vld [vmem:[#allocation3 + $0x3f8] sm:$0xff]
    %v754 = vld [vmem:[#allocation3 + $0x400] sm:$0xff]
    %v755 = vld [vmem:[#allocation3 + $0x408] sm:$0xff]
    %v756 = vld [vmem:[#allocation3 + $0x410] sm:$0xff]
    %v757 = vld [vmem:[#allocation3 + $0x418] sm:$0xff]
    %v758 = vld [vmem:[#allocation3 + $0x420] sm:$0xff]
    %v759 = vld [vmem:[#allocation3 + $0x428] sm:$0xff]
    %v760 = vld [vmem:[#allocation3 + $0x430] sm:$0xff]
    %v761 = vld [vmem:[#allocation3 + $0x438] sm:$0xff]
    %v762 = vld [vmem:[#allocation3 + $0x440] sm:$0xff]
    %v763 = vld [vmem:[#allocation3 + $0x448] sm:$0xff]
    %v764 = vld [vmem:[#allocation3 + $0x450] sm:$0xff]
    %v765 = vld [vmem:[#allocation3 + $0x458] sm:$0xff]
    %v766 = vld [vmem:[#allocation3 + $0x460] sm:$0xff]
    %v767 = vld [vmem:[#allocation3 + $0x468] sm:$0xff]
    %v768 = vld [vmem:[#allocation3 + $0x470] sm:$0xff]
    %v769 = vld [vmem:[#allocation3 + $0x478] sm:$0xff]
    %v770 = vld [vmem:[#allocation3 + $0x480] sm:$0xff]
    %v771 = vld [vmem:[#allocation3 + $0x488] sm:$0xff]
    %v772 = vld [vmem:[#allocation3 + $0x490] sm:$0xff]
    %v773 = vld [vmem:[#allocation3 + $0x498] sm:$0xff]
    %v774 = vld [vmem:[#allocation3 + $0x4a0] sm:$0xff]
    %v775 = vld [vmem:[#allocation3 + $0x4a8] sm:$0xff]
    %v776 = vld [vmem:[#allocation3 + $0x4b0] sm:$0xff]
    %v777 = vld [vmem:[#allocation3 + $0x4b8] sm:$0xff]
    %v778 = vld [vmem:[#allocation3 + $0x4c0] sm:$0xff]
    %v779 = vld [vmem:[#allocation3 + $0x4c8] sm:$0xff]
    %v780 = vld [vmem:[#allocation3 + $0x4d0] sm:$0xff]
    %v781 = vld [vmem:[#allocation3 + $0x4d8] sm:$0xff]
    %v782 = vld [vmem:[#allocation3 + $0x4e0] sm:$0xff]
    %v783 = vld [vmem:[#allocation3 + $0x4e8] sm:$0xff]
    %v784 = vld [vmem:[#allocation3 + $0x4f0] sm:$0xff]
    %v785 = vld [vmem:[#allocation3 + $0x4f8] sm:$0xff]
    %v786 = vld [vmem:[#allocation3 + $0x500] sm:$0xff]
    %v787 = vld [vmem:[#allocation3 + $0x508] sm:$0xff]
    %v788 = vld [vmem:[#allocation3 + $0x510] sm:$0xff]
    %v789 = vld [vmem:[#allocation3 + $0x518] sm:$0xff]
    %v790 = vld [vmem:[#allocation3 + $0x520] sm:$0xff]
    %v791 = vld [vmem:[#allocation3 + $0x528] sm:$0xff]
    %v792 = vld [vmem:[#allocation3 + $0x530] sm:$0xff]
    %v793 = vld [vmem:[#allocation3 + $0x538] sm:$0xff]
    %v794 = vld [vmem:[#allocation3 + $0x540] sm:$0xff]
    %v795 = vld [vmem:[#allocation3 + $0x548] sm:$0xff]
    %v796 = vld [vmem:[#allocation3 + $0x550] sm:$0xff]
    %v797 = vld [vmem:[#allocation3 + $0x558] sm:$0xff]
    %v798 = vld [vmem:[#allocation3 + $0x560] sm:$0xff]
    %v799 = vld [vmem:[#allocation3 + $0x568] sm:$0xff]
    %v800 = vld [vmem:[#allocation3 + $0x570] sm:$0xff]
    %v801 = vld [vmem:[#allocation3 + $0x578] sm:$0xff]
    %v802 = vld [vmem:[#allocation3 + $0x580] sm:$0xff]
    %v803 = vld [vmem:[#allocation3 + $0x588] sm:$0xff]
    %v804 = vld [vmem:[#allocation3 + $0x590] sm:$0xff]
    %v805 = vld [vmem:[#allocation3 + $0x598] sm:$0xff]
    %v806 = vld [vmem:[#allocation3 + $0x5a0] sm:$0xff]
    %v807 = vld [vmem:[#allocation3 + $0x5a8] sm:$0xff]
    %v808 = vld [vmem:[#allocation3 + $0x5b0] sm:$0xff]
    %v809 = vld [vmem:[#allocation3 + $0x5b8] sm:$0xff]
    %v810 = vld [vmem:[#allocation3 + $0x5c0] sm:$0xff]
    %v811 = vld [vmem:[#allocation3 + $0x5c8] sm:$0xff]
    %v812 = vld [vmem:[#allocation3 + $0x5d0] sm:$0xff]
    %v813 = vld [vmem:[#allocation3 + $0x5d8] sm:$0xff]
    %v814 = vld [vmem:[#allocation3 + $0x5e0] sm:$0xff]
    %v815 = vld [vmem:[#allocation3 + $0x5e8] sm:$0xff]
    %v816 = vld [vmem:[#allocation3 + $0x5f0] sm:$0xff]
    %v817 = vld [vmem:[#allocation3 + $0x5f8] sm:$0xff]
    %v818 = vld [vmem:[%s10] sm:$0xf]
    %v820 = vlaneseq
    %v821 = vshrl.u32 %v820, 7
    %v822 = vsub.s32 0, %v821
    %v823 = vrot.slane %v818, %v822
    %v824 = vlaneseq
    %v825 = vshrl.u32 %v824, 7
    %v826 = vsub.s32 1, %v825
    %v827 = vrot.slane %v818, %v826
    %v828 = vlaneseq
    %v829 = vshrl.u32 %v828, 7
    %v830 = vsub.s32 2, %v829
    %v831 = vrot.slane %v818, %v830
    %v832 = vlaneseq
    %v833 = vshrl.u32 %v832, 7
    %v834 = vsub.s32 3, %v833
    %v835 = vrot.slane %v818, %v834
    %v1032 = vunpack.c.l.b16 %v626
    %v1033 = vunpack.c.h.b16 %v626
    %v1034 = vunpack.c.l.b16 %v627
    %v1035 = vunpack.c.h.b16 %v627
    %v1036 = vunpack.c.l.b16 %v628
    %v1037 = vunpack.c.h.b16 %v628
    %v1038 = vunpack.c.l.b16 %v629
    %v1039 = vunpack.c.h.b16 %v629
    %v1040 = vunpack.c.l.b16 %v630
    %v1041 = vunpack.c.h.b16 %v630
    %v1042 = vunpack.c.l.b16 %v631
    %v1043 = vunpack.c.h.b16 %v631
    %v1044 = vunpack.c.l.b16 %v632
    %v1045 = vunpack.c.h.b16 %v632
    %v1046 = vunpack.c.l.b16 %v633
    %v1047 = vunpack.c.h.b16 %v633
    %v1048 = vunpack.c.l.b16 %v634
    %v1049 = vunpack.c.h.b16 %v634
    %v1050 = vunpack.c.l.b16 %v635
    %v1051 = vunpack.c.h.b16 %v635
    %v1052 = vunpack.c.l.b16 %v636
    %v1053 = vunpack.c.h.b16 %v636
    %v1054 = vunpack.c.l.b16 %v637
    %v1055 = vunpack.c.h.b16 %v637
    %v1056 = vunpack.c.l.b16 %v638
    %v1057 = vunpack.c.h.b16 %v638
    %v1058 = vunpack.c.l.b16 %v639
    %v1059 = vunpack.c.h.b16 %v639
    %v1060 = vunpack.c.l.b16 %v640
    %v1061 = vunpack.c.h.b16 %v640
    %v1062 = vunpack.c.l.b16 %v641
    %v1063 = vunpack.c.h.b16 %v641
    %v1064 = vunpack.c.l.b16 %v642
    %v1065 = vunpack.c.h.b16 %v642
    %v1066 = vunpack.c.l.b16 %v643
    %v1067 = vunpack.c.h.b16 %v643
    %v1068 = vunpack.c.l.b16 %v644
    %v1069 = vunpack.c.h.b16 %v644
    %v1070 = vunpack.c.l.b16 %v645
    %v1071 = vunpack.c.h.b16 %v645
    %v1072 = vunpack.c.l.b16 %v646
    %v1073 = vunpack.c.h.b16 %v646
    %v1074 = vunpack.c.l.b16 %v647
    %v1075 = vunpack.c.h.b16 %v647
    %v1076 = vunpack.c.l.b16 %v648
    %v1077 = vunpack.c.h.b16 %v648
    %v1078 = vunpack.c.l.b16 %v649
    %v1079 = vunpack.c.h.b16 %v649
    %v1080 = vunpack.c.l.b16 %v650
    %v1081 = vunpack.c.h.b16 %v650
    %v1082 = vunpack.c.l.b16 %v651
    %v1083 = vunpack.c.h.b16 %v651
    %v1084 = vunpack.c.l.b16 %v652
    %v1085 = vunpack.c.h.b16 %v652
    %v1086 = vunpack.c.l.b16 %v653
    %v1087 = vunpack.c.h.b16 %v653
    %v1088 = vunpack.c.l.b16 %v654
    %v1089 = vunpack.c.h.b16 %v654
    %v1090 = vunpack.c.l.b16 %v655
    %v1091 = vunpack.c.h.b16 %v655
    %v1092 = vunpack.c.l.b16 %v656
    %v1093 = vunpack.c.h.b16 %v656
    %v1094 = vunpack.c.l.b16 %v657
    %v1095 = vunpack.c.h.b16 %v657
    %v1096 = vunpack.c.l.b16 %v658
    %v1097 = vunpack.c.h.b16 %v658
    %v1098 = vunpack.c.l.b16 %v659
    %v1099 = vunpack.c.h.b16 %v659
    %v1100 = vunpack.c.l.b16 %v660
    %v1101 = vunpack.c.h.b16 %v660
    %v1102 = vunpack.c.l.b16 %v661
    %v1103 = vunpack.c.h.b16 %v661
    %v1104 = vunpack.c.l.b16 %v662
    %v1105 = vunpack.c.h.b16 %v662
    %v1106 = vunpack.c.l.b16 %v663
    %v1107 = vunpack.c.h.b16 %v663
    %v1108 = vunpack.c.l.b16 %v664
    %v1109 = vunpack.c.h.b16 %v664
    %v1110 = vunpack.c.l.b16 %v665
    %v1111 = vunpack.c.h.b16 %v665
    %v1112 = vunpack.c.l.b16 %v666
    %v1113 = vunpack.c.h.b16 %v666
    %v1114 = vunpack.c.l.b16 %v667
    %v1115 = vunpack.c.h.b16 %v667
    %v1116 = vunpack.c.l.b16 %v668
    %v1117 = vunpack.c.h.b16 %v668
    %v1118 = vunpack.c.l.b16 %v669
    %v1119 = vunpack.c.h.b16 %v669
    %v1120 = vunpack.c.l.b16 %v670
    %v1121 = vunpack.c.h.b16 %v670
    %v1122 = vunpack.c.l.b16 %v671
    %v1123 = vunpack.c.h.b16 %v671
    %v1124 = vunpack.c.l.b16 %v672
    %v1125 = vunpack.c.h.b16 %v672
    %v1126 = vunpack.c.l.b16 %v673
    %v1127 = vunpack.c.h.b16 %v673
    %v1128 = vunpack.c.l.b16 %v674
    %v1129 = vunpack.c.h.b16 %v674
    %v1130 = vunpack.c.l.b16 %v675
    %v1131 = vunpack.c.h.b16 %v675
    %v1132 = vunpack.c.l.b16 %v676
    %v1133 = vunpack.c.h.b16 %v676
    %v1134 = vunpack.c.l.b16 %v677
    %v1135 = vunpack.c.h.b16 %v677
    %v1136 = vunpack.c.l.b16 %v678
    %v1137 = vunpack.c.h.b16 %v678
    %v1138 = vunpack.c.l.b16 %v679
    %v1139 = vunpack.c.h.b16 %v679
    %v1140 = vunpack.c.l.b16 %v680
    %v1141 = vunpack.c.h.b16 %v680
    %v1142 = vunpack.c.l.b16 %v681
    %v1143 = vunpack.c.h.b16 %v681
    %v1144 = vunpack.c.l.b16 %v682
    %v1145 = vunpack.c.h.b16 %v682
    %v1146 = vunpack.c.l.b16 %v683
    %v1147 = vunpack.c.h.b16 %v683
    %v1148 = vunpack.c.l.b16 %v684
    %v1149 = vunpack.c.h.b16 %v684
    %v1150 = vunpack.c.l.b16 %v685
    %v1151 = vunpack.c.h.b16 %v685
    %v1152 = vunpack.c.l.b16 %v686
    %v1153 = vunpack.c.h.b16 %v686
    %v1154 = vunpack.c.l.b16 %v687
    %v1155 = vunpack.c.h.b16 %v687
    %v1156 = vunpack.c.l.b16 %v688
    %v1157 = vunpack.c.h.b16 %v688
    %v1158 = vunpack.c.l.b16 %v689
    %v1159 = vunpack.c.h.b16 %v689
    %v1160 = vunpack.c.l.b16 %v690
    %v1161 = vunpack.c.h.b16 %v690
    %v1162 = vunpack.c.l.b16 %v691
    %v1163 = vunpack.c.h.b16 %v691
    %v1164 = vunpack.c.l.b16 %v692
    %v1165 = vunpack.c.h.b16 %v692
    %v1166 = vunpack.c.l.b16 %v693
    %v1167 = vunpack.c.h.b16 %v693
    %v1168 = vunpack.c.l.b16 %v694
    %v1169 = vunpack.c.h.b16 %v694
    %v1170 = vunpack.c.l.b16 %v695
    %v1171 = vunpack.c.h.b16 %v695
    %v1172 = vunpack.c.l.b16 %v696
    %v1173 = vunpack.c.h.b16 %v696
    %v1174 = vunpack.c.l.b16 %v697
    %v1175 = vunpack.c.h.b16 %v697
    %v1176 = vunpack.c.l.b16 %v698
    %v1177 = vunpack.c.h.b16 %v698
    %v1178 = vunpack.c.l.b16 %v699
    %v1179 = vunpack.c.h.b16 %v699
    %v1180 = vunpack.c.l.b16 %v700
    %v1181 = vunpack.c.h.b16 %v700
    %v1182 = vunpack.c.l.b16 %v701
    %v1183 = vunpack.c.h.b16 %v701
    %v1184 = vunpack.c.l.b16 %v702
    %v1185 = vunpack.c.h.b16 %v702
    %v1186 = vunpack.c.l.b16 %v703
    %v1187 = vunpack.c.h.b16 %v703
    %v1188 = vunpack.c.l.b16 %v704
    %v1189 = vunpack.c.h.b16 %v704
    %v1190 = vunpack.c.l.b16 %v705
    %v1191 = vunpack.c.h.b16 %v705
    %v1192 = vunpack.c.l.b16 %v706
    %v1193 = vunpack.c.h.b16 %v706
    %v1194 = vunpack.c.l.b16 %v707
    %v1195 = vunpack.c.h.b16 %v707
    %v1196 = vunpack.c.l.b16 %v708
    %v1197 = vunpack.c.h.b16 %v708
    %v1198 = vunpack.c.l.b16 %v709
    %v1199 = vunpack.c.h.b16 %v709
    %v1200 = vunpack.c.l.b16 %v710
    %v1201 = vunpack.c.h.b16 %v710
    %v1202 = vunpack.c.l.b16 %v711
    %v1203 = vunpack.c.h.b16 %v711
    %v1204 = vunpack.c.l.b16 %v712
    %v1205 = vunpack.c.h.b16 %v712
    %v1206 = vunpack.c.l.b16 %v713
    %v1207 = vunpack.c.h.b16 %v713
    %v1208 = vunpack.c.l.b16 %v714
    %v1209 = vunpack.c.h.b16 %v714
    %v1210 = vunpack.c.l.b16 %v715
    %v1211 = vunpack.c.h.b16 %v715
    %v1212 = vunpack.c.l.b16 %v716
    %v1213 = vunpack.c.h.b16 %v716
    %v1214 = vunpack.c.l.b16 %v717
    %v1215 = vunpack.c.h.b16 %v717
    %v1216 = vunpack.c.l.b16 %v718
    %v1217 = vunpack.c.h.b16 %v718
    %v1218 = vunpack.c.l.b16 %v719
    %v1219 = vunpack.c.h.b16 %v719
    %v1220 = vunpack.c.l.b16 %v720
    %v1221 = vunpack.c.h.b16 %v720
    %v1222 = vunpack.c.l.b16 %v721
    %v1223 = vunpack.c.h.b16 %v721
    %v1224 = vunpack.c.l.b16 %v722
    %v1225 = vunpack.c.h.b16 %v722
    %v1226 = vunpack.c.l.b16 %v723
    %v1227 = vunpack.c.h.b16 %v723
    %v1228 = vunpack.c.l.b16 %v724
    %v1229 = vunpack.c.h.b16 %v724
    %v1230 = vunpack.c.l.b16 %v725
    %v1231 = vunpack.c.h.b16 %v725
    %v1232 = vunpack.c.l.b16 %v726
    %v1233 = vunpack.c.h.b16 %v726
    %v1234 = vunpack.c.l.b16 %v727
    %v1235 = vunpack.c.h.b16 %v727
    %v1236 = vunpack.c.l.b16 %v728
    %v1237 = vunpack.c.h.b16 %v728
    %v1238 = vunpack.c.l.b16 %v729
    %v1239 = vunpack.c.h.b16 %v729
    %v1240 = vunpack.c.l.b16 %v730
    %v1241 = vunpack.c.h.b16 %v730
    %v1242 = vunpack.c.l.b16 %v731
    %v1243 = vunpack.c.h.b16 %v731
    %v1244 = vunpack.c.l.b16 %v732
    %v1245 = vunpack.c.h.b16 %v732
    %v1246 = vunpack.c.l.b16 %v733
    %v1247 = vunpack.c.h.b16 %v733
    %v1248 = vunpack.c.l.b16 %v734
    %v1249 = vunpack.c.h.b16 %v734
    %v1250 = vunpack.c.l.b16 %v735
    %v1251 = vunpack.c.h.b16 %v735
    %v1252 = vunpack.c.l.b16 %v736
    %v1253 = vunpack.c.h.b16 %v736
    %v1254 = vunpack.c.l.b16 %v737
    %v1255 = vunpack.c.h.b16 %v737
    %v1256 = vunpack.c.l.b16 %v738
    %v1257 = vunpack.c.h.b16 %v738
    %v1258 = vunpack.c.l.b16 %v739
    %v1259 = vunpack.c.h.b16 %v739
    %v1260 = vunpack.c.l.b16 %v740
    %v1261 = vunpack.c.h.b16 %v740
    %v1262 = vunpack.c.l.b16 %v741
    %v1263 = vunpack.c.h.b16 %v741
    %v1264 = vunpack.c.l.b16 %v742
    %v1265 = vunpack.c.h.b16 %v742
    %v1266 = vunpack.c.l.b16 %v743
    %v1267 = vunpack.c.h.b16 %v743
    %v1268 = vunpack.c.l.b16 %v744
    %v1269 = vunpack.c.h.b16 %v744
    %v1270 = vunpack.c.l.b16 %v745
    %v1271 = vunpack.c.h.b16 %v745
    %v1272 = vunpack.c.l.b16 %v746
    %v1273 = vunpack.c.h.b16 %v746
    %v1274 = vunpack.c.l.b16 %v747
    %v1275 = vunpack.c.h.b16 %v747
    %v1276 = vunpack.c.l.b16 %v748
    %v1277 = vunpack.c.h.b16 %v748
    %v1278 = vunpack.c.l.b16 %v749
    %v1279 = vunpack.c.h.b16 %v749
    %v1280 = vunpack.c.l.b16 %v750
    %v1281 = vunpack.c.h.b16 %v750
    %v1282 = vunpack.c.l.b16 %v751
    %v1283 = vunpack.c.h.b16 %v751
    %v1284 = vunpack.c.l.b16 %v752
    %v1285 = vunpack.c.h.b16 %v752
    %v1286 = vunpack.c.l.b16 %v753
    %v1287 = vunpack.c.h.b16 %v753
    %v1288 = vunpack.c.l.b16 %v754
    %v1289 = vunpack.c.h.b16 %v754
    %v1290 = vunpack.c.l.b16 %v755
    %v1291 = vunpack.c.h.b16 %v755
    %v1292 = vunpack.c.l.b16 %v756
    %v1293 = vunpack.c.h.b16 %v756
    %v1294 = vunpack.c.l.b16 %v757
    %v1295 = vunpack.c.h.b16 %v757
    %v1296 = vunpack.c.l.b16 %v758
    %v1297 = vunpack.c.h.b16 %v758
    %v1298 = vunpack.c.l.b16 %v759
    %v1299 = vunpack.c.h.b16 %v759
    %v1300 = vunpack.c.l.b16 %v760
    %v1301 = vunpack.c.h.b16 %v760
    %v1302 = vunpack.c.l.b16 %v761
    %v1303 = vunpack.c.h.b16 %v761
    %v1304 = vunpack.c.l.b16 %v762
    %v1305 = vunpack.c.h.b16 %v762
    %v1306 = vunpack.c.l.b16 %v763
    %v1307 = vunpack.c.h.b16 %v763
    %v1308 = vunpack.c.l.b16 %v764
    %v1309 = vunpack.c.h.b16 %v764
    %v1310 = vunpack.c.l.b16 %v765
    %v1311 = vunpack.c.h.b16 %v765
    %v1312 = vunpack.c.l.b16 %v766
    %v1313 = vunpack.c.h.b16 %v766
    %v1314 = vunpack.c.l.b16 %v767
    %v1315 = vunpack.c.h.b16 %v767
    %v1316 = vunpack.c.l.b16 %v768
    %v1317 = vunpack.c.h.b16 %v768
    %v1318 = vunpack.c.l.b16 %v769
    %v1319 = vunpack.c.h.b16 %v769
    %v1320 = vunpack.c.l.b16 %v770
    %v1321 = vunpack.c.h.b16 %v770
    %v1322 = vunpack.c.l.b16 %v771
    %v1323 = vunpack.c.h.b16 %v771
    %v1324 = vunpack.c.l.b16 %v772
    %v1325 = vunpack.c.h.b16 %v772
    %v1326 = vunpack.c.l.b16 %v773
    %v1327 = vunpack.c.h.b16 %v773
    %v1328 = vunpack.c.l.b16 %v774
    %v1329 = vunpack.c.h.b16 %v774
    %v1330 = vunpack.c.l.b16 %v775
    %v1331 = vunpack.c.h.b16 %v775
    %v1332 = vunpack.c.l.b16 %v776
    %v1333 = vunpack.c.h.b16 %v776
    %v1334 = vunpack.c.l.b16 %v777
    %v1335 = vunpack.c.h.b16 %v777
    %v1336 = vunpack.c.l.b16 %v778
    %v1337 = vunpack.c.h.b16 %v778
    %v1338 = vunpack.c.l.b16 %v779
    %v1339 = vunpack.c.h.b16 %v779
    %v1340 = vunpack.c.l.b16 %v780
    %v1341 = vunpack.c.h.b16 %v780
    %v1342 = vunpack.c.l.b16 %v781
    %v1343 = vunpack.c.h.b16 %v781
    %v1344 = vunpack.c.l.b16 %v782
    %v1345 = vunpack.c.h.b16 %v782
    %v1346 = vunpack.c.l.b16 %v783
    %v1347 = vunpack.c.h.b16 %v783
    %v1348 = vunpack.c.l.b16 %v784
    %v1349 = vunpack.c.h.b16 %v784
    %v1350 = vunpack.c.l.b16 %v785
    %v1351 = vunpack.c.h.b16 %v785
    %v1352 = vunpack.c.l.b16 %v786
    %v1353 = vunpack.c.h.b16 %v786
    %v1354 = vunpack.c.l.b16 %v787
    %v1355 = vunpack.c.h.b16 %v787
    %v1356 = vunpack.c.l.b16 %v788
    %v1357 = vunpack.c.h.b16 %v788
    %v1358 = vunpack.c.l.b16 %v789
    %v1359 = vunpack.c.h.b16 %v789
    %v1360 = vunpack.c.l.b16 %v790
    %v1361 = vunpack.c.h.b16 %v790
    %v1362 = vunpack.c.l.b16 %v791
    %v1363 = vunpack.c.h.b16 %v791
    %v1364 = vunpack.c.l.b16 %v792
    %v1365 = vunpack.c.h.b16 %v792
    %v1366 = vunpack.c.l.b16 %v793
    %v1367 = vunpack.c.h.b16 %v793
    %v1368 = vunpack.c.l.b16 %v794
    %v1369 = vunpack.c.h.b16 %v794
    %v1370 = vunpack.c.l.b16 %v795
    %v1371 = vunpack.c.h.b16 %v795
    %v1372 = vunpack.c.l.b16 %v796
    %v1373 = vunpack.c.h.b16 %v796
    %v1374 = vunpack.c.l.b16 %v797
    %v1375 = vunpack.c.h.b16 %v797
    %v1376 = vunpack.c.l.b16 %v798
    %v1377 = vunpack.c.h.b16 %v798
    %v1378 = vunpack.c.l.b16 %v799
    %v1379 = vunpack.c.h.b16 %v799
    %v1380 = vunpack.c.l.b16 %v800
    %v1381 = vunpack.c.h.b16 %v800
    %v1382 = vunpack.c.l.b16 %v801
    %v1383 = vunpack.c.h.b16 %v801
    %v1384 = vunpack.c.l.b16 %v802
    %v1385 = vunpack.c.h.b16 %v802
    %v1386 = vunpack.c.l.b16 %v803
    %v1387 = vunpack.c.h.b16 %v803
    %v1388 = vunpack.c.l.b16 %v804
    %v1389 = vunpack.c.h.b16 %v804
    %v1390 = vunpack.c.l.b16 %v805
    %v1391 = vunpack.c.h.b16 %v805
    %v1392 = vunpack.c.l.b16 %v806
    %v1393 = vunpack.c.h.b16 %v806
    %v1394 = vunpack.c.l.b16 %v807
    %v1395 = vunpack.c.h.b16 %v807
    %v1396 = vunpack.c.l.b16 %v808
    %v1397 = vunpack.c.h.b16 %v808
    %v1398 = vunpack.c.l.b16 %v809
    %v1399 = vunpack.c.h.b16 %v809
    %v1400 = vunpack.c.l.b16 %v810
    %v1401 = vunpack.c.h.b16 %v810
    %v1402 = vunpack.c.l.b16 %v811
    %v1403 = vunpack.c.h.b16 %v811
    %v1404 = vunpack.c.l.b16 %v812
    %v1405 = vunpack.c.h.b16 %v812
    %v1406 = vunpack.c.l.b16 %v813
    %v1407 = vunpack.c.h.b16 %v813
    %v1408 = vunpack.c.l.b16 %v814
    %v1409 = vunpack.c.h.b16 %v814
    %v1410 = vunpack.c.l.b16 %v815
    %v1411 = vunpack.c.h.b16 %v815
    %v1412 = vunpack.c.l.b16 %v816
    %v1413 = vunpack.c.h.b16 %v816
    %v1414 = vunpack.c.l.b16 %v817
    %v1415 = vunpack.c.h.b16 %v817
    %v1416 = vpack.c.b16 %v1036, %v1032
    %v1417 = vpack.c.b16 %v1037, %v1033
    %v1418 = vpack.c.b16 %v1038, %v1034
    %v1419 = vpack.c.b16 %v1039, %v1035
    %v1420 = vpack.c.b16 %v1044, %v1040
    %v1421 = vpack.c.b16 %v1045, %v1041
    %v1422 = vpack.c.b16 %v1046, %v1042
    %v1423 = vpack.c.b16 %v1047, %v1043
    %v1424 = vpack.c.b16 %v1052, %v1048
    %v1425 = vpack.c.b16 %v1053, %v1049
    %v1426 = vpack.c.b16 %v1054, %v1050
    %v1427 = vpack.c.b16 %v1055, %v1051
    %v1428 = vpack.c.b16 %v1060, %v1056
    %v1429 = vpack.c.b16 %v1061, %v1057
    %v1430 = vpack.c.b16 %v1062, %v1058
    %v1431 = vpack.c.b16 %v1063, %v1059
    %v1432 = vpack.c.b16 %v1068, %v1064
    %v1433 = vpack.c.b16 %v1069, %v1065
    %v1434 = vpack.c.b16 %v1070, %v1066
    %v1435 = vpack.c.b16 %v1071, %v1067
    %v1436 = vpack.c.b16 %v1076, %v1072
    %v1437 = vpack.c.b16 %v1077, %v1073
    %v1438 = vpack.c.b16 %v1078, %v1074
    %v1439 = vpack.c.b16 %v1079, %v1075
    %v1440 = vpack.c.b16 %v1084, %v1080
    %v1441 = vpack.c.b16 %v1085, %v1081
    %v1442 = vpack.c.b16 %v1086, %v1082
    %v1443 = vpack.c.b16 %v1087, %v1083
    %v1444 = vpack.c.b16 %v1092, %v1088
    %v1445 = vpack.c.b16 %v1093, %v1089
    %v1446 = vpack.c.b16 %v1094, %v1090
    %v1447 = vpack.c.b16 %v1095, %v1091
    %v1448 = vpack.c.b16 %v1100, %v1096
    %v1449 = vpack.c.b16 %v1101, %v1097
    %v1450 = vpack.c.b16 %v1102, %v1098
    %v1451 = vpack.c.b16 %v1103, %v1099
    %v1452 = vpack.c.b16 %v1108, %v1104
    %v1453 = vpack.c.b16 %v1109, %v1105
    %v1454 = vpack.c.b16 %v1110, %v1106
    %v1455 = vpack.c.b16 %v1111, %v1107
    %v1456 = vpack.c.b16 %v1116, %v1112
    %v1457 = vpack.c.b16 %v1117, %v1113
    %v1458 = vpack.c.b16 %v1118, %v1114
    %v1459 = vpack.c.b16 %v1119, %v1115
    %v1460 = vpack.c.b16 %v1124, %v1120
    %v1461 = vpack.c.b16 %v1125, %v1121
    %v1462 = vpack.c.b16 %v1126, %v1122
    %v1463 = vpack.c.b16 %v1127, %v1123
    %v1464 = vpack.c.b16 %v1132, %v1128
    %v1465 = vpack.c.b16 %v1133, %v1129
    %v1466 = vpack.c.b16 %v1134, %v1130
    %v1467 = vpack.c.b16 %v1135, %v1131
    %v1468 = vpack.c.b16 %v1140, %v1136
    %v1469 = vpack.c.b16 %v1141, %v1137
    %v1470 = vpack.c.b16 %v1142, %v1138
    %v1471 = vpack.c.b16 %v1143, %v1139
    %v1472 = vpack.c.b16 %v1148, %v1144
    %v1473 = vpack.c.b16 %v1149, %v1145
    %v1474 = vpack.c.b16 %v1150, %v1146
    %v1475 = vpack.c.b16 %v1151, %v1147
    %v1476 = vpack.c.b16 %v1156, %v1152
    %v1477 = vpack.c.b16 %v1157, %v1153
    %v1478 = vpack.c.b16 %v1158, %v1154
    %v1479 = vpack.c.b16 %v1159, %v1155
    %v1480 = vpack.c.b16 %v1164, %v1160
    %v1481 = vpack.c.b16 %v1165, %v1161
    %v1482 = vpack.c.b16 %v1166, %v1162
    %v1483 = vpack.c.b16 %v1167, %v1163
    %v1484 = vpack.c.b16 %v1172, %v1168
    %v1485 = vpack.c.b16 %v1173, %v1169
    %v1486 = vpack.c.b16 %v1174, %v1170
    %v1487 = vpack.c.b16 %v1175, %v1171
    %v1488 = vpack.c.b16 %v1180, %v1176
    %v1489 = vpack.c.b16 %v1181, %v1177
    %v1490 = vpack.c.b16 %v1182, %v1178
    %v1491 = vpack.c.b16 %v1183, %v1179
    %v1492 = vpack.c.b16 %v1188, %v1184
    %v1493 = vpack.c.b16 %v1189, %v1185
    %v1494 = vpack.c.b16 %v1190, %v1186
    %v1495 = vpack.c.b16 %v1191, %v1187
    %v1496 = vpack.c.b16 %v1196, %v1192
    %v1497 = vpack.c.b16 %v1197, %v1193
    %v1498 = vpack.c.b16 %v1198, %v1194
    %v1499 = vpack.c.b16 %v1199, %v1195
    %v1500 = vpack.c.b16 %v1204, %v1200
    %v1501 = vpack.c.b16 %v1205, %v1201
    %v1502 = vpack.c.b16 %v1206, %v1202
    %v1503 = vpack.c.b16 %v1207, %v1203
    %v1504 = vpack.c.b16 %v1212, %v1208
    %v1505 = vpack.c.b16 %v1213, %v1209
    %v1506 = vpack.c.b16 %v1214, %v1210
    %v1507 = vpack.c.b16 %v1215, %v1211
    %v1508 = vpack.c.b16 %v1220, %v1216
    %v1509 = vpack.c.b16 %v1221, %v1217
    %v1510 = vpack.c.b16 %v1222, %v1218
    %v1511 = vpack.c.b16 %v1223, %v1219
    %v1512 = vpack.c.b16 %v1228, %v1224
    %v1513 = vpack.c.b16 %v1229, %v1225
    %v1514 = vpack.c.b16 %v1230, %v1226
    %v1515 = vpack.c.b16 %v1231, %v1227
    %v1516 = vpack.c.b16 %v1236, %v1232
    %v1517 = vpack.c.b16 %v1237, %v1233
    %v1518 = vpack.c.b16 %v1238, %v1234
    %v1519 = vpack.c.b16 %v1239, %v1235
    %v1520 = vpack.c.b16 %v1244, %v1240
    %v1521 = vpack.c.b16 %v1245, %v1241
    %v1522 = vpack.c.b16 %v1246, %v1242
    %v1523 = vpack.c.b16 %v1247, %v1243
    %v1524 = vpack.c.b16 %v1252, %v1248
    %v1525 = vpack.c.b16 %v1253, %v1249
    %v1526 = vpack.c.b16 %v1254, %v1250
    %v1527 = vpack.c.b16 %v1255, %v1251
    %v1528 = vpack.c.b16 %v1260, %v1256
    %v1529 = vpack.c.b16 %v1261, %v1257
    %v1530 = vpack.c.b16 %v1262, %v1258
    %v1531 = vpack.c.b16 %v1263, %v1259
    %v1532 = vpack.c.b16 %v1268, %v1264
    %v1533 = vpack.c.b16 %v1269, %v1265
    %v1534 = vpack.c.b16 %v1270, %v1266
    %v1535 = vpack.c.b16 %v1271, %v1267
    %v1536 = vpack.c.b16 %v1276, %v1272
    %v1537 = vpack.c.b16 %v1277, %v1273
    %v1538 = vpack.c.b16 %v1278, %v1274
    %v1539 = vpack.c.b16 %v1279, %v1275
    %v1540 = vpack.c.b16 %v1284, %v1280
    %v1541 = vpack.c.b16 %v1285, %v1281
    %v1542 = vpack.c.b16 %v1286, %v1282
    %v1543 = vpack.c.b16 %v1287, %v1283
    %v1544 = vpack.c.b16 %v1292, %v1288
    %v1545 = vpack.c.b16 %v1293, %v1289
    %v1546 = vpack.c.b16 %v1294, %v1290
    %v1547 = vpack.c.b16 %v1295, %v1291
    %v1548 = vpack.c.b16 %v1300, %v1296
    %v1549 = vpack.c.b16 %v1301, %v1297
    %v1550 = vpack.c.b16 %v1302, %v1298
    %v1551 = vpack.c.b16 %v1303, %v1299
    %v1552 = vpack.c.b16 %v1308, %v1304
    %v1553 = vpack.c.b16 %v1309, %v1305
    %v1554 = vpack.c.b16 %v1310, %v1306
    %v1555 = vpack.c.b16 %v1311, %v1307
    %v1556 = vpack.c.b16 %v1316, %v1312
    %v1557 = vpack.c.b16 %v1317, %v1313
    %v1558 = vpack.c.b16 %v1318, %v1314
    %v1559 = vpack.c.b16 %v1319, %v1315
    %v1560 = vpack.c.b16 %v1324, %v1320
    %v1561 = vpack.c.b16 %v1325, %v1321
    %v1562 = vpack.c.b16 %v1326, %v1322
    %v1563 = vpack.c.b16 %v1327, %v1323
    %v1564 = vpack.c.b16 %v1332, %v1328
    %v1565 = vpack.c.b16 %v1333, %v1329
    %v1566 = vpack.c.b16 %v1334, %v1330
    %v1567 = vpack.c.b16 %v1335, %v1331
    %v1568 = vpack.c.b16 %v1340, %v1336
    %v1569 = vpack.c.b16 %v1341, %v1337
    %v1570 = vpack.c.b16 %v1342, %v1338
    %v1571 = vpack.c.b16 %v1343, %v1339
    %v1572 = vpack.c.b16 %v1348, %v1344
    %v1573 = vpack.c.b16 %v1349, %v1345
    %v1574 = vpack.c.b16 %v1350, %v1346
    %v1575 = vpack.c.b16 %v1351, %v1347
    %v1576 = vpack.c.b16 %v1356, %v1352
    %v1577 = vpack.c.b16 %v1357, %v1353
    %v1578 = vpack.c.b16 %v1358, %v1354
    %v1579 = vpack.c.b16 %v1359, %v1355
    %v1580 = vpack.c.b16 %v1364, %v1360
    %v1581 = vpack.c.b16 %v1365, %v1361
    %v1582 = vpack.c.b16 %v1366, %v1362
    %v1583 = vpack.c.b16 %v1367, %v1363
    %v1584 = vpack.c.b16 %v1372, %v1368
    %v1585 = vpack.c.b16 %v1373, %v1369
    %v1586 = vpack.c.b16 %v1374, %v1370
    %v1587 = vpack.c.b16 %v1375, %v1371
    %v1588 = vpack.c.b16 %v1380, %v1376
    %v1589 = vpack.c.b16 %v1381, %v1377
    %v1590 = vpack.c.b16 %v1382, %v1378
    %v1591 = vpack.c.b16 %v1383, %v1379
    %v1592 = vpack.c.b16 %v1388, %v1384
    %v1593 = vpack.c.b16 %v1389, %v1385
    %v1594 = vpack.c.b16 %v1390, %v1386
    %v1595 = vpack.c.b16 %v1391, %v1387
    %v1596 = vpack.c.b16 %v1396, %v1392
    %v1597 = vpack.c.b16 %v1397, %v1393
    %v1598 = vpack.c.b16 %v1398, %v1394
    %v1599 = vpack.c.b16 %v1399, %v1395
    %v1600 = vpack.c.b16 %v1404, %v1400
    %v1601 = vpack.c.b16 %v1405, %v1401
    %v1602 = vpack.c.b16 %v1406, %v1402
    %v1603 = vpack.c.b16 %v1407, %v1403
    %v1604 = vpack.c.b16 %v1412, %v1408
    %v1605 = vpack.c.b16 %v1413, %v1409
    %v1606 = vpack.c.b16 %v1414, %v1410
    %v1607 = vpack.c.b16 %v1415, %v1411
    %1800 = vmatprep.subr.bf16.mxu0 %v1417
    %1801 = vmatpush1.bf16.msra.mxu0 %v1416
    %1802 = vmatprep.subr.bf16.mxu0 %v1421
    %1803 = vmatpush1.bf16.msra.mxu0 %v1420
    %1804 = vmatprep.subr.bf16.mxu0 %v1425
    %1805 = vmatpush1.bf16.msra.mxu0 %v1424
    %1806 = vmatprep.subr.bf16.mxu0 %v1429
    %1807 = vmatpush1.bf16.msra.mxu0 %v1428
    %1808 = vmatprep.subr.bf16.mxu0 %v1433
    %1809 = vmatpush1.bf16.msra.mxu0 %v1432
    %1810 = vmatprep.subr.bf16.mxu0 %v1437
    %1811 = vmatpush1.bf16.msra.mxu0 %v1436
    %1812 = vmatprep.subr.bf16.mxu0 %v1441
    %1813 = vmatpush1.bf16.msra.mxu0 %v1440
    %1814 = vmatprep.subr.bf16.mxu0 %v1445
    %1815 = vmatpush1.bf16.msra.mxu0 %v1444
    %1816 = vmatprep.subr.bf16.mxu0 %v1449
    %1817 = vmatpush1.bf16.msra.mxu0 %v1448
    %1818 = vmatprep.subr.bf16.mxu0 %v1453
    %1819 = vmatpush1.bf16.msra.mxu0 %v1452
    %1820 = vmatprep.subr.bf16.mxu0 %v1457
    %1821 = vmatpush1.bf16.msra.mxu0 %v1456
    %1822 = vmatprep.subr.bf16.mxu0 %v1461
    %1823 = vmatpush1.bf16.msra.mxu0 %v1460
    %1824 = vmatprep.subr.bf16.mxu0 %v1465
    %1825 = vmatpush1.bf16.msra.mxu0 %v1464
    %1826 = vmatprep.subr.bf16.mxu0 %v1469
    %1827 = vmatpush1.bf16.msra.mxu0 %v1468
    %1828 = vmatprep.subr.bf16.mxu0 %v1473
    %1829 = vmatpush1.bf16.msra.mxu0 %v1472
    %1830 = vmatprep.subr.bf16.mxu0 %v1477
    %1831 = vmatpush1.bf16.msra.mxu0 %v1476
    %1832 = vmatprep.mubr.bf16.mxu0 %v615
    %1833 = vmatmul.mubr.bf16.gmra.mrb[0].mxu0 %v614
    %v1834 = vpop.f32.mrb[0].mxu0
    %v1835 = vadd.f32 %v823, %v1834
    %v1836 = vpop.f32.mrb[0].mxu0
    %v1837 = vadd.f32 %v827, %v1836
    %v1838 = vpop.f32.mrb[0].mxu0
    %v1839 = vadd.f32 %v823, %v1838
    %v1840 = vpop.f32.mrb[0].mxu0
    %v1841 = vadd.f32 %v827, %v1840
    %1842 = vmatprep.mubr.bf16.mxu0 %v621
    %1843 = vmatmul.mubr.bf16.gmra.mrb[0].mxu0 %v620
    %v1844 = vpop.f32.mrb[0].mxu0
    %v1845 = vadd.f32 %v823, %v1844
    %v1846 = vpop.f32.mrb[0].mxu0
    %v1847 = vadd.f32 %v827, %v1846
    %v1848 = vpop.f32.mrb[0].mxu0
    %v1849 = vadd.f32 %v823, %v1848
    %v1850 = vpop.f32.mrb[0].mxu0
    %v1851 = vadd.f32 %v827, %v1850
    %1852 = vdwg.mxu0
    %1853 = vmatprep.subr.bf16.mxu0 %v1481
    %1854 = vmatpush1.bf16.msra.mxu0 %v1480
    %1855 = vmatprep.subr.bf16.mxu0 %v1485
    %1856 = vmatpush1.bf16.msra.mxu0 %v1484
    %1857 = vmatprep.subr.bf16.mxu0 %v1489
    %1858 = vmatpush1.bf16.msra.mxu0 %v1488
    %1859 = vmatprep.subr.bf16.mxu0 %v1493
    %1860 = vmatpush1.bf16.msra.mxu0 %v1492
    %1861 = vmatprep.subr.bf16.mxu0 %v1497
    %1862 = vmatpush1.bf16.msra.mxu0 %v1496
    %1863 = vmatprep.subr.bf16.mxu0 %v1501
    %1864 = vmatpush1.bf16.msra.mxu0 %v1500
    %1865 = vmatprep.subr.bf16.mxu0 %v1505
    %1866 = vmatpush1.bf16.msra.mxu0 %v1504
    %1867 = vmatprep.subr.bf16.mxu0 %v1509
    %1868 = vmatpush1.bf16.msra.mxu0 %v1508
    %1869 = vmatprep.subr.bf16.mxu0 %v1513
    %1870 = vmatpush1.bf16.msra.mxu0 %v1512
    %1871 = vmatprep.subr.bf16.mxu0 %v1517
    %1872 = vmatpush1.bf16.msra.mxu0 %v1516
    %1873 = vmatprep.subr.bf16.mxu0 %v1521
    %1874 = vmatpush1.bf16.msra.mxu0 %v1520
    %1875 = vmatprep.subr.bf16.mxu0 %v1525
    %1876 = vmatpush1.bf16.msra.mxu0 %v1524
    %1877 = vmatprep.subr.bf16.mxu0 %v1529
    %1878 = vmatpush1.bf16.msra.mxu0 %v1528
    %1879 = vmatprep.subr.bf16.mxu0 %v1533
    %1880 = vmatpush1.bf16.msra.mxu0 %v1532
    %1881 = vmatprep.subr.bf16.mxu0 %v1537
    %1882 = vmatpush1.bf16.msra.mxu0 %v1536
    %1883 = vmatprep.subr.bf16.mxu0 %v1541
    %1884 = vmatpush1.bf16.msra.mxu0 %v1540
    %1885 = vmatprep.mubr.bf16.mxu0 %v617
    %1886 = vmatmul.mubr.bf16.gmra.mrb[0].mxu0 %v616
    %v1887 = vpop.f32.mrb[0].mxu0
    %v1888 = vadd.f32 %v1835, %v1887
    %v1889 = vpop.f32.mrb[0].mxu0
    %v1890 = vadd.f32 %v1837, %v1889
    %v1891 = vpop.f32.mrb[0].mxu0
    %v1892 = vadd.f32 %v1839, %v1891
    %v1893 = vpop.f32.mrb[0].mxu0
    %v1894 = vadd.f32 %v1841, %v1893
    %1895 = vmatprep.mubr.bf16.mxu0 %v623
    %1896 = vmatmul.mubr.bf16.gmra.mrb[0].mxu0 %v622
    %v1897 = vpop.f32.mrb[0].mxu0
    %v1898 = vadd.f32 %v1845, %v1897
    %v1899 = vpop.f32.mrb[0].mxu0
    %v1900 = vadd.f32 %v1847, %v1899
    %v1901 = vpop.f32.mrb[0].mxu0
    %v1902 = vadd.f32 %v1849, %v1901
    %v1903 = vpop.f32.mrb[0].mxu0
    %v1904 = vadd.f32 %v1851, %v1903
    %1905 = vdwg.mxu0
    %1906 = vmatprep.subr.bf16.mxu0 %v1545
    %1907 = vmatpush1.bf16.msra.mxu0 %v1544
    %1908 = vmatprep.subr.bf16.mxu0 %v1549
    %1909 = vmatpush1.bf16.msra.mxu0 %v1548
    %1910 = vmatprep.subr.bf16.mxu0 %v1553
    %1911 = vmatpush1.bf16.msra.mxu0 %v1552
    %1912 = vmatprep.subr.bf16.mxu0 %v1557
    %1913 = vmatpush1.bf16.msra.mxu0 %v1556
    %1914 = vmatprep.subr.bf16.mxu0 %v1561
    %1915 = vmatpush1.bf16.msra.mxu0 %v1560
    %1916 = vmatprep.subr.bf16.mxu0 %v1565
    %1917 = vmatpush1.bf16.msra.mxu0 %v1564
    %1918 = vmatprep.subr.bf16.mxu0 %v1569
    %1919 = vmatpush1.bf16.msra.mxu0 %v1568
    %1920 = vmatprep.subr.bf16.mxu0 %v1573
    %1921 = vmatpush1.bf16.msra.mxu0 %v1572
    %1922 = vmatprep.subr.bf16.mxu0 %v1577
    %1923 = vmatpush1.bf16.msra.mxu0 %v1576
    %1924 = vmatprep.subr.bf16.mxu0 %v1581
    %1925 = vmatpush1.bf16.msra.mxu0 %v1580
    %1926 = vmatprep.subr.bf16.mxu0 %v1585
    %1927 = vmatpush1.bf16.msra.mxu0 %v1584
    %1928 = vmatprep.subr.bf16.mxu0 %v1589
    %1929 = vmatpush1.bf16.msra.mxu0 %v1588
    %1930 = vmatprep.subr.bf16.mxu0 %v1593
    %1931 = vmatpush1.bf16.msra.mxu0 %v1592
    %1932 = vmatprep.subr.bf16.mxu0 %v1597
    %1933 = vmatpush1.bf16.msra.mxu0 %v1596
    %1934 = vmatprep.subr.bf16.mxu0 %v1601
    %1935 = vmatpush1.bf16.msra.mxu0 %v1600
    %1936 = vmatprep.subr.bf16.mxu0 %v1605
    %1937 = vmatpush1.bf16.msra.mxu0 %v1604
    %1938 = vmatprep.mubr.bf16.mxu0 %v619
    %1939 = vmatmul.mubr.bf16.gmra.mrb[0].mxu0 %v618
    %v1940 = vpop.f32.mrb[0].mxu0
    %v1941 = vadd.f32 %v1888, %v1940
    %v1942 = vpop.f32.mrb[0].mxu0
    %v1943 = vadd.f32 %v1890, %v1942
    %v1944 = vpop.f32.mrb[0].mxu0
    %v1945 = vadd.f32 %v1892, %v1944
    %v1946 = vpop.f32.mrb[0].mxu0
    %v1947 = vadd.f32 %v1894, %v1946
    %1948 = vmatprep.mubr.bf16.mxu0 %v625
    %1949 = vmatmul.mubr.bf16.gmra.mrb[0].mxu0 %v624
    %v1950 = vpop.f32.mrb[0].mxu0
    %v1951 = vadd.f32 %v1898, %v1950
    %v1952 = vpop.f32.mrb[0].mxu0
    %v1953 = vadd.f32 %v1900, %v1952
    %v1954 = vpop.f32.mrb[0].mxu0
    %v1955 = vadd.f32 %v1902, %v1954
    %v1956 = vpop.f32.mrb[0].mxu0
    %v1957 = vadd.f32 %v1904, %v1956
    %1958 = vdwg.mxu0
    %1959 = vmatprep.subr.bf16.mxu0 %v1419
    %1960 = vmatpush1.bf16.msra.mxu0 %v1418
    %1961 = vmatprep.subr.bf16.mxu0 %v1423
    %1962 = vmatpush1.bf16.msra.mxu0 %v1422
    %1963 = vmatprep.subr.bf16.mxu0 %v1427
    %1964 = vmatpush1.bf16.msra.mxu0 %v1426
    %1965 = vmatprep.subr.bf16.mxu0 %v1431
    %1966 = vmatpush1.bf16.msra.mxu0 %v1430
    %1967 = vmatprep.subr.bf16.mxu0 %v1435
    %1968 = vmatpush1.bf16.msra.mxu0 %v1434
    %1969 = vmatprep.subr.bf16.mxu0 %v1439
    %1970 = vmatpush1.bf16.msra.mxu0 %v1438
    %1971 = vmatprep.subr.bf16.mxu0 %v1443
    %1972 = vmatpush1.bf16.msra.mxu0 %v1442
    %1973 = vmatprep.subr.bf16.mxu0 %v1447
    %1974 = vmatpush1.bf16.msra.mxu0 %v1446
    %1975 = vmatprep.subr.bf16.mxu0 %v1451
    %1976 = vmatpush1.bf16.msra.mxu0 %v1450
    %1977 = vmatprep.subr.bf16.mxu0 %v1455
    %1978 = vmatpush1.bf16.msra.mxu0 %v1454
    %1979 = vmatprep.subr.bf16.mxu0 %v1459
    %1980 = vmatpush1.bf16.msra.mxu0 %v1458
    %1981 = vmatprep.subr.bf16.mxu0 %v1463
    %1982 = vmatpush1.bf16.msra.mxu0 %v1462
    %1983 = vmatprep.subr.bf16.mxu0 %v1467
    %1984 = vmatpush1.bf16.msra.mxu0 %v1466
    %1985 = vmatprep.subr.bf16.mxu0 %v1471
    %1986 = vmatpush1.bf16.msra.mxu0 %v1470
    %1987 = vmatprep.subr.bf16.mxu0 %v1475
    %1988 = vmatpush1.bf16.msra.mxu0 %v1474
    %1989 = vmatprep.subr.bf16.mxu0 %v1479
    %1990 = vmatpush1.bf16.msra.mxu0 %v1478
    %1991 = vmatprep.mubr.bf16.mxu0 %v615
    %1992 = vmatmul.mubr.bf16.gmra.mrb[0].mxu0 %v614
    %v1993 = vpop.f32.mrb[0].mxu0
    %v1994 = vadd.f32 %v831, %v1993
    %v1995 = vpop.f32.mrb[0].mxu0
    %v1996 = vadd.f32 %v835, %v1995
    %v1997 = vpop.f32.mrb[0].mxu0
    %v1998 = vadd.f32 %v831, %v1997
    %v1999 = vpop.f32.mrb[0].mxu0
    %v2000 = vadd.f32 %v835, %v1999
    %2001 = vmatprep.mubr.bf16.mxu0 %v621
    %2002 = vmatmul.mubr.bf16.gmra.mrb[0].mxu0 %v620
    %v2003 = vpop.f32.mrb[0].mxu0
    %v2004 = vadd.f32 %v831, %v2003
    %v2005 = vpop.f32.mrb[0].mxu0
    %v2006 = vadd.f32 %v835, %v2005
    %v2007 = vpop.f32.mrb[0].mxu0
    %v2008 = vadd.f32 %v831, %v2007
    %v2009 = vpop.f32.mrb[0].mxu0
    %v2010 = vadd.f32 %v835, %v2009
    %2011 = vdwg.mxu0
    %2012 = vmatprep.subr.bf16.mxu0 %v1483
    %2013 = vmatpush1.bf16.msra.mxu0 %v1482
    %2014 = vmatprep.subr.bf16.mxu0 %v1487
    %2015 = vmatpush1.bf16.msra.mxu0 %v1486
    %2016 = vmatprep.subr.bf16.mxu0 %v1491
    %2017 = vmatpush1.bf16.msra.mxu0 %v1490
    %2018 = vmatprep.subr.bf16.mxu0 %v1495
    %2019 = vmatpush1.bf16.msra.mxu0 %v1494
    %2020 = vmatprep.subr.bf16.mxu0 %v1499
    %2021 = vmatpush1.bf16.msra.mxu0 %v1498
    %2022 = vmatprep.subr.bf16.mxu0 %v1503
    %2023 = vmatpush1.bf16.msra.mxu0 %v1502
    %2024 = vmatprep.subr.bf16.mxu0 %v1507
    %2025 = vmatpush1.bf16.msra.mxu0 %v1506
    %2026 = vmatprep.subr.bf16.mxu0 %v1511
    %2027 = vmatpush1.bf16.msra.mxu0 %v1510
    %2028 = vmatprep.subr.bf16.mxu0 %v1515
    %2029 = vmatpush1.bf16.msra.mxu0 %v1514
    %2030 = vmatprep.subr.bf16.mxu0 %v1519
    %2031 = vmatpush1.bf16.msra.mxu0 %v1518
    %2032 = vmatprep.subr.bf16.mxu0 %v1523
    %2033 = vmatpush1.bf16.msra.mxu0 %v1522
    %2034 = vmatprep.subr.bf16.mxu0 %v1527
    %2035 = vmatpush1.bf16.msra.mxu0 %v1526
    %2036 = vmatprep.subr.bf16.mxu0 %v1531
    %2037 = vmatpush1.bf16.msra.mxu0 %v1530
    %2038 = vmatprep.subr.bf16.mxu0 %v1535
    %2039 = vmatpush1.bf16.msra.mxu0 %v1534
    %2040 = vmatprep.subr.bf16.mxu0 %v1539
    %2041 = vmatpush1.bf16.msra.mxu0 %v1538
    %2042 = vmatprep.subr.bf16.mxu0 %v1543
    %2043 = vmatpush1.bf16.msra.mxu0 %v1542
    %2044 = vmatprep.mubr.bf16.mxu0 %v617
    %2045 = vmatmul.mubr.bf16.gmra.mrb[0].mxu0 %v616
    %v2046 = vpop.f32.mrb[0].mxu0
    %v2047 = vadd.f32 %v1994, %v2046
    %v2048 = vpop.f32.mrb[0].mxu0
    %v2049 = vadd.f32 %v1996, %v2048
    %v2050 = vpop.f32.mrb[0].mxu0
    %v2051 = vadd.f32 %v1998, %v2050
    %v2052 = vpop.f32.mrb[0].mxu0
    %v2053 = vadd.f32 %v2000, %v2052
    %2054 = vmatprep.mubr.bf16.mxu0 %v623
    %2055 = vmatmul.mubr.bf16.gmra.mrb[0].mxu0 %v622
    %v2056 = vpop.f32.mrb[0].mxu0
    %v2057 = vadd.f32 %v2004, %v2056
    %v2058 = vpop.f32.mrb[0].mxu0
    %v2059 = vadd.f32 %v2006, %v2058
    %v2060 = vpop.f32.mrb[0].mxu0
    %v2061 = vadd.f32 %v2008, %v2060
    %v2062 = vpop.f32.mrb[0].mxu0
    %v2063 = vadd.f32 %v2010, %v2062
    %2064 = vdwg.mxu0
    %2065 = vmatprep.subr.bf16.mxu0 %v1547
    %2066 = vmatpush1.bf16.msra.mxu0 %v1546
    %2067 = vmatprep.subr.bf16.mxu0 %v1551
    %2068 = vmatpush1.bf16.msra.mxu0 %v1550
    %2069 = vmatprep.subr.bf16.mxu0 %v1555
    %2070 = vmatpush1.bf16.msra.mxu0 %v1554
    %2071 = vmatprep.subr.bf16.mxu0 %v1559
    %2072 = vmatpush1.bf16.msra.mxu0 %v1558
    %2073 = vmatprep.subr.bf16.mxu0 %v1563
    %2074 = vmatpush1.bf16.msra.mxu0 %v1562
    %2075 = vmatprep.subr.bf16.mxu0 %v1567
    %2076 = vmatpush1.bf16.msra.mxu0 %v1566
    %2077 = vmatprep.subr.bf16.mxu0 %v1571
    %2078 = vmatpush1.bf16.msra.mxu0 %v1570
    %2079 = vmatprep.subr.bf16.mxu0 %v1575
    %2080 = vmatpush1.bf16.msra.mxu0 %v1574
    %2081 = vmatprep.subr.bf16.mxu0 %v1579
    %2082 = vmatpush1.bf16.msra.mxu0 %v1578
    %2083 = vmatprep.subr.bf16.mxu0 %v1583
    %2084 = vmatpush1.bf16.msra.mxu0 %v1582
    %2085 = vmatprep.subr.bf16.mxu0 %v1587
    %2086 = vmatpush1.bf16.msra.mxu0 %v1586
    %2087 = vmatprep.subr.bf16.mxu0 %v1591
    %2088 = vmatpush1.bf16.msra.mxu0 %v1590
    %2089 = vmatprep.subr.bf16.mxu0 %v1595
    %2090 = vmatpush1.bf16.msra.mxu0 %v1594
    %2091 = vmatprep.subr.bf16.mxu0 %v1599
    %2092 = vmatpush1.bf16.msra.mxu0 %v1598
    %2093 = vmatprep.subr.bf16.mxu0 %v1603
    %2094 = vmatpush1.bf16.msra.mxu0 %v1602
    %2095 = vmatprep.subr.bf16.mxu0 %v1607
    %2096 = vmatpush1.bf16.msra.mxu0 %v1606
    %2097 = vmatprep.mubr.bf16.mxu0 %v619
    %2098 = vmatmul.mubr.bf16.gmra.mrb[0].mxu0 %v618
    %v2099 = vpop.f32.mrb[0].mxu0
    %v2100 = vadd.f32 %v2047, %v2099
    %v2101 = vpop.f32.mrb[0].mxu0
    %v2102 = vadd.f32 %v2049, %v2101
    %v2103 = vpop.f32.mrb[0].mxu0
    %v2104 = vadd.f32 %v2051, %v2103
    %v2105 = vpop.f32.mrb[0].mxu0
    %v2106 = vadd.f32 %v2053, %v2105
    %2107 = vmatprep.mubr.bf16.mxu0 %v625
    %2108 = vmatmul.mubr.bf16.gmra.mrb[0].mxu0 %v624
    %v2109 = vpop.f32.mrb[0].mxu0
    %v2110 = vadd.f32 %v2057, %v2109
    %v2111 = vpop.f32.mrb[0].mxu0
    %v2112 = vadd.f32 %v2059, %v2111
    %v2113 = vpop.f32.mrb[0].mxu0
    %v2114 = vadd.f32 %v2061, %v2113
    %v2115 = vpop.f32.mrb[0].mxu0
    %v2116 = vadd.f32 %v2063, %v2115
    %2117 = vdwg.mxu0
    %v2118 = vmax.f32 %v1941, 0.0
    %v2119 = vmax.f32 %v1943, 0.0
    %v2120 = vmax.f32 %v2100, 0.0
    %v2121 = vmax.f32 %v2102, 0.0
    %v2122 = vmax.f32 %v1945, 0.0
    %v2123 = vmax.f32 %v1947, 0.0
    %v2124 = vmax.f32 %v2104, 0.0
    %v2125 = vmax.f32 %v2106, 0.0
    %v2126 = vmax.f32 %v1951, 0.0
    %v2127 = vmax.f32 %v1953, 0.0
    %v2128 = vmax.f32 %v2110, 0.0
    %v2129 = vmax.f32 %v2112, 0.0
    %v2130 = vmax.f32 %v1955, 0.0
    %v2131 = vmax.f32 %v1957, 0.0
    %v2132 = vmax.f32 %v2114, 0.0
    %v2133 = vmax.f32 %v2116, 0.0
    %v2134 = vrot.slane %v2118, 7
    %v2135 = vrot.slane %v2119, 7
    %v2136 = vrot.slane %v2120, 7
    %v2137 = vrot.slane %v2121, 7
    %v2138 = vrot.slane %v2122, 7
    %v2139 = vrot.slane %v2123, 7
    %v2140 = vrot.slane %v2124, 7
    %v2141 = vrot.slane %v2125, 7
    %v2142 = vrot.slane %v2126, 7
    %v2143 = vrot.slane %v2127, 7
    %v2144 = vrot.slane %v2128, 7
    %v2145 = vrot.slane %v2129, 7
    %v2146 = vrot.slane %v2130, 7
    %v2147 = vrot.slane %v2131, 7
    %v2148 = vrot.slane %v2132, 7
    %v2149 = vrot.slane %v2133, 7
    %v2150 = vsel %vm292, %v2142, %v2146
    %v2151 = vsel %vm292, %v2143, %v2147
    %v2152 = vsel %vm292, %v2144, %v2148
    %v2153 = vsel %vm292, %v2145, %v2149
    %v2154 = vsel %vm292, %v2138, %v2142
    %v2155 = vsel %vm292, %v2139, %v2143
    %v2156 = vsel %vm292, %v2140, %v2144
    %v2157 = vsel %vm292, %v2141, %v2145
    %v2158 = vsel %vm292, %v2134, %v2138
    %v2159 = vsel %vm292, %v2135, %v2139
    %v2160 = vsel %vm292, %v2136, %v2140
    %v2161 = vsel %vm292, %v2137, %v2141
    %v2162 = vsel %vm292, %v2146, %v2134
    %v2163 = vsel %vm292, %v2147, %v2135
    %v2164 = vsel %vm292, %v2148, %v2136
    %v2165 = vsel %vm292, %v2149, %v2137
    %v2166 = vmul.f32 %v2162, %v300
    %v2167 = vmul.f32 %v2163, %v300
    %v2168 = vmul.f32 %v2164, %v300
    %v2169 = vmul.f32 %v2165, %v300
    %v2170 = vmul.f32 %v2158, %v305
    %v2171 = vmul.f32 %v2159, %v305
    %v2172 = vmul.f32 %v2160, %v305
    %v2173 = vmul.f32 %v2161, %v305
    %v2174 = vmul.f32 %v2154, %v310
    %v2175 = vmul.f32 %v2155, %v310
    %v2176 = vmul.f32 %v2156, %v310
    %v2177 = vmul.f32 %v2157, %v310
    %v2178 = vmul.f32 %v2150, %v315
    %v2179 = vmul.f32 %v2151, %v315
    %v2180 = vmul.f32 %v2152, %v315
    %v2181 = vmul.f32 %v2153, %v315
    %2182 = vst [vmem:[#allocation2] sm:$0xff] %v2166
    %2183 = vst [vmem:[#allocation2 + $0x8] sm:$0xff] %v2167
    %2184 = vst [vmem:[#allocation2 + $0x10] sm:$0xff] %v2168
    %2185 = vst [vmem:[#allocation2 + $0x18] sm:$0xff] %v2169
    %2186 = vst [vmem:[#allocation2 + $0x60] sm:$0xff] %v2170
    %2187 = vst [vmem:[#allocation2 + $0x68] sm:$0xff] %v2171
    %2188 = vst [vmem:[#allocation2 + $0x70] sm:$0xff] %v2172
    %2189 = vst [vmem:[#allocation2 + $0x78] sm:$0xff] %v2173
    %2190 = vst [vmem:[#allocation2 + $0xc0] sm:$0xff] %v2174
    %2191 = vst [vmem:[#allocation2 + $0xc8] sm:$0xff] %v2175
    %2192 = vst [vmem:[#allocation2 + $0xd0] sm:$0xff] %v2176
    %2193 = vst [vmem:[#allocation2 + $0xd8] sm:$0xff] %v2177
    %2194 = vst [vmem:[#allocation2 + $0x120] sm:$0xff] %v2178
    %2195 = vst [vmem:[#allocation2 + $0x128] sm:$0xff] %v2179
    %2196 = vst [vmem:[#allocation2 + $0x130] sm:$0xff] %v2180
    %2197 = vst [vmem:[#allocation2 + $0x138] sm:$0xff] %v2181
    %2198 = vst [vmem:[#allocation2 + $0x20] sm:$0xff] %v2118
    %2199 = vst [vmem:[#allocation2 + $0x28] sm:$0xff] %v2119
    %2200 = vst [vmem:[#allocation2 + $0x30] sm:$0xff] %v2120
    %2201 = vst [vmem:[#allocation2 + $0x38] sm:$0xff] %v2121
    %2202 = vst [vmem:[#allocation2 + $0x80] sm:$0xff] %v2122
    %2203 = vst [vmem:[#allocation2 + $0x88] sm:$0xff] %v2123
    %2204 = vst [vmem:[#allocation2 + $0x90] sm:$0xff] %v2124
    %2205 = vst [vmem:[#allocation2 + $0x98] sm:$0xff] %v2125
    %2206 = vst [vmem:[#allocation2 + $0xe0] sm:$0xff] %v2126
    %2207 = vst [vmem:[#allocation2 + $0xe8] sm:$0xff] %v2127
    %2208 = vst [vmem:[#allocation2 + $0xf0] sm:$0xff] %v2128
    %2209 = vst [vmem:[#allocation2 + $0xf8] sm:$0xff] %v2129
    %2210 = vst [vmem:[#allocation2 + $0x140] sm:$0xff] %v2130
    %2211 = vst [vmem:[#allocation2 + $0x148] sm:$0xff] %v2131
    %2212 = vst [vmem:[#allocation2 + $0x150] sm:$0xff] %v2132
    %2213 = vst [vmem:[#allocation2 + $0x158] sm:$0xff] %v2133
    %v2214 = vrot.slane %v2118, 1
    %v2215 = vrot.slane %v2119, 1
    %v2216 = vrot.slane %v2120, 1
    %v2217 = vrot.slane %v2121, 1
    %v2218 = vrot.slane %v2122, 1
    %v2219 = vrot.slane %v2123, 1
    %v2220 = vrot.slane %v2124, 1
    %v2221 = vrot.slane %v2125, 1
    %v2222 = vrot.slane %v2126, 1
    %v2223 = vrot.slane %v2127, 1
    %v2224 = vrot.slane %v2128, 1
    %v2225 = vrot.slane %v2129, 1
    %v2226 = vrot.slane %v2130, 1
    %v2227 = vrot.slane %v2131, 1
    %v2228 = vrot.slane %v2132, 1
    %v2229 = vrot.slane %v2133, 1
    %v2230 = vsel %vm350, %v2222, %v2226
    %v2231 = vsel %vm350, %v2223, %v2227
    %v2232 = vsel %vm350, %v2224, %v2228
    %v2233 = vsel %vm350, %v2225, %v2229
    %v2234 = vsel %vm350, %v2218, %v2222
    %v2235 = vsel %vm350, %v2219, %v2223
    %v2236 = vsel %vm350, %v2220, %v2224
    %v2237 = vsel %vm350, %v2221, %v2225
    %v2238 = vsel %vm350, %v2214, %v2218
    %v2239 = vsel %vm350, %v2215, %v2219
    %v2240 = vsel %vm350, %v2216, %v2220
    %v2241 = vsel %vm350, %v2217, %v2221
    %v2242 = vsel %vm350, %v2226, %v2214
    %v2243 = vsel %vm350, %v2227, %v2215
    %v2244 = vsel %vm350, %v2228, %v2216
    %v2245 = vsel %vm350, %v2229, %v2217
    %v2246 = vmul.f32 %v2238, %v357
    %v2247 = vmul.f32 %v2239, %v357
    %v2248 = vmul.f32 %v2240, %v357
    %v2249 = vmul.f32 %v2241, %v357
    %v2250 = vmul.f32 %v2234, %v361
    %v2251 = vmul.f32 %v2235, %v361
    %v2252 = vmul.f32 %v2236, %v361
    %v2253 = vmul.f32 %v2237, %v361
    %v2254 = vmul.f32 %v2230, %v365
    %v2255 = vmul.f32 %v2231, %v365
    %v2256 = vmul.f32 %v2232, %v365
    %v2257 = vmul.f32 %v2233, %v365
    %v2258 = vmul.f32 %v2242, %v369
    %v2259 = vmul.f32 %v2243, %v369
    %v2260 = vmul.f32 %v2244, %v369
    %v2261 = vmul.f32 %v2245, %v369
    %2262 = vst [vmem:[#allocation2 + $0x40] sm:$0xff] %v2246
    %2263 = vst [vmem:[#allocation2 + $0x48] sm:$0xff] %v2247
    %2264 = vst [vmem:[#allocation2 + $0x50] sm:$0xff] %v2248
    %2265 = vst [vmem:[#allocation2 + $0x58] sm:$0xff] %v2249
    %2266 = vst [vmem:[#allocation2 + $0xa0] sm:$0xff] %v2250
    %2267 = vst [vmem:[#allocation2 + $0xa8] sm:$0xff] %v2251
    %2268 = vst [vmem:[#allocation2 + $0xb0] sm:$0xff] %v2252
    %2269 = vst [vmem:[#allocation2 + $0xb8] sm:$0xff] %v2253
    %2270 = vst [vmem:[#allocation2 + $0x100] sm:$0xff] %v2254
    %2271 = vst [vmem:[#allocation2 + $0x108] sm:$0xff] %v2255
    %2272 = vst [vmem:[#allocation2 + $0x110] sm:$0xff] %v2256
    %2273 = vst [vmem:[#allocation2 + $0x118] sm:$0xff] %v2257
    %2274 = vst [vmem:[#allocation2 + $0x160] sm:$0xff] %v2258
    %2275 = vst [vmem:[#allocation2 + $0x168] sm:$0xff] %v2259
    %2276 = vst [vmem:[#allocation2 + $0x170] sm:$0xff] %v2260
    %2277 = vst [vmem:[#allocation2 + $0x178] sm:$0xff] %v2261
    %v2278 = vld [vmem:[#allocation2] sm:$0xff]
    %v2279 = vld [vmem:[#allocation2 + $0x8] sm:$0xff]
    %v2280 = vld [vmem:[#allocation2 + $0x10] sm:$0xff]
    %v2281 = vld [vmem:[#allocation2 + $0x18] sm:$0xff]
    %v2282 = vld [vmem:[#allocation2 + $0x20] sm:$0xff]
    %v2283 = vld [vmem:[#allocation2 + $0x28] sm:$0xff]
    %v2284 = vld [vmem:[#allocation2 + $0x30] sm:$0xff]
    %v2285 = vld [vmem:[#allocation2 + $0x38] sm:$0xff]
    %v2286 = vld [vmem:[#allocation2 + $0x40] sm:$0xff]
    %v2287 = vld [vmem:[#allocation2 + $0x48] sm:$0xff]
    %v2288 = vld [vmem:[#allocation2 + $0x50] sm:$0xff]
    %v2289 = vld [vmem:[#allocation2 + $0x58] sm:$0xff]
    %v2290 = vld [vmem:[#allocation2 + $0x60] sm:$0xff]
    %v2291 = vld [vmem:[#allocation2 + $0x68] sm:$0xff]
    %v2292 = vld [vmem:[#allocation2 + $0x70] sm:$0xff]
    %v2293 = vld [vmem:[#allocation2 + $0x78] sm:$0xff]
    %v2294 = vld [vmem:[#allocation2 + $0x80] sm:$0xff]
    %v2295 = vld [vmem:[#allocation2 + $0x88] sm:$0xff]
    %v2296 = vld [vmem:[#allocation2 + $0x90] sm:$0xff]
    %v2297 = vld [vmem:[#allocation2 + $0x98] sm:$0xff]
    %v2298 = vld [vmem:[#allocation2 + $0xa0] sm:$0xff]
    %v2299 = vld [vmem:[#allocation2 + $0xa8] sm:$0xff]
    %v2300 = vld [vmem:[#allocation2 + $0xb0] sm:$0xff]
    %v2301 = vld [vmem:[#allocation2 + $0xb8] sm:$0xff]
    %v2302 = vld [vmem:[#allocation2 + $0xc0] sm:$0xff]
    %v2303 = vld [vmem:[#allocation2 + $0xc8] sm:$0xff]
    %v2304 = vld [vmem:[#allocation2 + $0xd0] sm:$0xff]
    %v2305 = vld [vmem:[#allocation2 + $0xd8] sm:$0xff]
    %v2306 = vld [vmem:[#allocation2 + $0xe0] sm:$0xff]
    %v2307 = vld [vmem:[#allocation2 + $0xe8] sm:$0xff]
    %v2308 = vld [vmem:[#allocation2 + $0xf0] sm:$0xff]
    %v2309 = vld [vmem:[#allocation2 + $0xf8] sm:$0xff]
    %v2310 = vld [vmem:[#allocation2 + $0x100] sm:$0xff]
    %v2311 = vld [vmem:[#allocation2 + $0x108] sm:$0xff]
    %v2312 = vld [vmem:[#allocation2 + $0x110] sm:$0xff]
    %v2313 = vld [vmem:[#allocation2 + $0x118] sm:$0xff]
    %v2314 = vld [vmem:[#allocation2 + $0x120] sm:$0xff]
    %v2315 = vld [vmem:[#allocation2 + $0x128] sm:$0xff]
    %v2316 = vld [vmem:[#allocation2 + $0x130] sm:$0xff]
    %v2317 = vld [vmem:[#allocation2 + $0x138] sm:$0xff]
    %v2318 = vld [vmem:[#allocation2 + $0x140] sm:$0xff]
    %v2319 = vld [vmem:[#allocation2 + $0x148] sm:$0xff]
    %v2320 = vld [vmem:[#allocation2 + $0x150] sm:$0xff]
    %v2321 = vld [vmem:[#allocation2 + $0x158] sm:$0xff]
    %v2322 = vld [vmem:[#allocation2 + $0x160] sm:$0xff]
    %v2323 = vld [vmem:[#allocation2 + $0x168] sm:$0xff]
    %v2324 = vld [vmem:[#allocation2 + $0x170] sm:$0xff]
    %v2325 = vld [vmem:[#allocation2 + $0x178] sm:$0xff]
    %v2326 = vpack.c.bf16 %v2290, %v2278
    %v2327 = vpack.c.bf16 %v2291, %v2279
    %v2328 = vpack.c.bf16 %v2292, %v2280
    %v2329 = vpack.c.bf16 %v2293, %v2281
    %v2330 = vpack.c.bf16 %v2294, %v2282
    %v2331 = vpack.c.bf16 %v2295, %v2283
    %v2332 = vpack.c.bf16 %v2296, %v2284
    %v2333 = vpack.c.bf16 %v2297, %v2285
    %v2334 = vpack.c.bf16 %v2298, %v2286
    %v2335 = vpack.c.bf16 %v2299, %v2287
    %v2336 = vpack.c.bf16 %v2300, %v2288
    %v2337 = vpack.c.bf16 %v2301, %v2289
    %v2338 = vpack.c.bf16 %v2314, %v2302
    %v2339 = vpack.c.bf16 %v2315, %v2303
    %v2340 = vpack.c.bf16 %v2316, %v2304
    %v2341 = vpack.c.bf16 %v2317, %v2305
    %v2342 = vpack.c.bf16 %v2318, %v2306
    %v2343 = vpack.c.bf16 %v2319, %v2307
    %v2344 = vpack.c.bf16 %v2320, %v2308
    %v2345 = vpack.c.bf16 %v2321, %v2309
    %v2346 = vpack.c.bf16 %v2322, %v2310
    %v2347 = vpack.c.bf16 %v2323, %v2311
    %v2348 = vpack.c.bf16 %v2324, %v2312
    %v2349 = vpack.c.bf16 %v2325, %v2313
    %v2350 = vld [vmem:[%s11] sm:$0xf]
    %v2351 = vld [vmem:[%s11 + $0x4] sm:$0xf]
    %v2352 = vld [vmem:[%s11 + $0x8] sm:$0xf]
    %v2353 = vld [vmem:[%s11 + $0xc] sm:$0xf]
    %v2354 = vld [vmem:[%s11 + $0x10] sm:$0xf]
    %v2355 = vld [vmem:[%s11 + $0x14] sm:$0xf]
    %v2356 = vld [vmem:[%s11 + $0x18] sm:$0xf]
    %v2357 = vld [vmem:[%s11 + $0x1c] sm:$0xf]
    %v2358 = vld [vmem:[%s11 + $0x20] sm:$0xf]
    %v2359 = vld [vmem:[%s11 + $0x24] sm:$0xf]
    %v2360 = vld [vmem:[%s11 + $0x28] sm:$0xf]
    %v2361 = vld [vmem:[%s11 + $0x2c] sm:$0xf]
    %v2362 = vld [vmem:[%s11 + $0x30] sm:$0xf]
    %v2363 = vld [vmem:[%s11 + $0x34] sm:$0xf]
    %v2364 = vld [vmem:[%s11 + $0x38] sm:$0xf]
    %v2365 = vld [vmem:[%s11 + $0x3c] sm:$0xf]
    %v2366 = vld [vmem:[%s11 + $0x40] sm:$0xf]
    %v2367 = vld [vmem:[%s11 + $0x44] sm:$0xf]
    %v2368 = vld [vmem:[%s11 + $0x48] sm:$0xf]
    %v2369 = vld [vmem:[%s11 + $0x4c] sm:$0xf]
    %v2370 = vld [vmem:[%s11 + $0x50] sm:$0xf]
    %v2371 = vld [vmem:[%s11 + $0x54] sm:$0xf]
    %v2372 = vld [vmem:[%s11 + $0x58] sm:$0xf]
    %v2373 = vld [vmem:[%s11 + $0x5c] sm:$0xf]
    %v2374 = vld [vmem:[%s11 + $0x60] sm:$0xf]
    %v2375 = vld [vmem:[%s11 + $0x64] sm:$0xf]
    %v2376 = vld [vmem:[%s11 + $0x68] sm:$0xf]
    %v2377 = vld [vmem:[%s11 + $0x6c] sm:$0xf]
    %v2378 = vld [vmem:[%s11 + $0x70] sm:$0xf]
    %v2379 = vld [vmem:[%s11 + $0x74] sm:$0xf]
    %v2380 = vld [vmem:[%s11 + $0x78] sm:$0xf]
    %v2381 = vld [vmem:[%s11 + $0x7c] sm:$0xf]
    %v2382 = vld [vmem:[%s11 + $0x80] sm:$0xf]
    %v2383 = vld [vmem:[%s11 + $0x84] sm:$0xf]
    %v2384 = vld [vmem:[%s11 + $0x88] sm:$0xf]
    %v2385 = vld [vmem:[%s11 + $0x8c] sm:$0xf]
    %v2386 = vld [vmem:[%s11 + $0x90] sm:$0xf]
    %v2387 = vld [vmem:[%s11 + $0x94] sm:$0xf]
    %v2388 = vld [vmem:[%s11 + $0x98] sm:$0xf]
    %v2389 = vld [vmem:[%s11 + $0x9c] sm:$0xf]
    %v2390 = vld [vmem:[%s11 + $0xa0] sm:$0xf]
    %v2391 = vld [vmem:[%s11 + $0xa4] sm:$0xf]
    %v2392 = vld [vmem:[%s11 + $0xa8] sm:$0xf]
    %v2393 = vld [vmem:[%s11 + $0xac] sm:$0xf]
    %v2394 = vld [vmem:[%s11 + $0xb0] sm:$0xf]
    %v2395 = vld [vmem:[%s11 + $0xb4] sm:$0xf]
    %v2396 = vld [vmem:[%s11 + $0xb8] sm:$0xf]
    %v2397 = vld [vmem:[%s11 + $0xbc] sm:$0xf]
    %v2398 = vld [vmem:[%s11 + $0xc0] sm:$0xf]
    %v2399 = vld [vmem:[%s11 + $0xc4] sm:$0xf]
    %v2400 = vld [vmem:[%s11 + $0xc8] sm:$0xf]
    %v2401 = vld [vmem:[%s11 + $0xcc] sm:$0xf]
    %v2402 = vld [vmem:[%s11 + $0xd0] sm:$0xf]
    %v2403 = vld [vmem:[%s11 + $0xd4] sm:$0xf]
    %v2404 = vld [vmem:[%s11 + $0xd8] sm:$0xf]
    %v2405 = vld [vmem:[%s11 + $0xdc] sm:$0xf]
    %v2406 = vld [vmem:[%s11 + $0xe0] sm:$0xf]
    %v2407 = vld [vmem:[%s11 + $0xe4] sm:$0xf]
    %v2408 = vld [vmem:[%s11 + $0xe8] sm:$0xf]
    %v2409 = vld [vmem:[%s11 + $0xec] sm:$0xf]
    %v2410 = vld [vmem:[%s11 + $0xf0] sm:$0xf]
    %v2411 = vld [vmem:[%s11 + $0xf4] sm:$0xf]
    %v2412 = vld [vmem:[%s11 + $0xf8] sm:$0xf]
    %v2413 = vld [vmem:[%s11 + $0xfc] sm:$0xf]
    %v2414 = vld [vmem:[%s11 + $0x100] sm:$0xf]
    %v2415 = vld [vmem:[%s11 + $0x104] sm:$0xf]
    %v2416 = vld [vmem:[%s11 + $0x108] sm:$0xf]
    %v2417 = vld [vmem:[%s11 + $0x10c] sm:$0xf]
    %v2418 = vld [vmem:[%s11 + $0x110] sm:$0xf]
    %v2419 = vld [vmem:[%s11 + $0x114] sm:$0xf]
    %v2420 = vld [vmem:[%s11 + $0x118] sm:$0xf]
    %v2421 = vld [vmem:[%s11 + $0x11c] sm:$0xf]
    %v2422 = vld [vmem:[%s11 + $0x120] sm:$0xf]
    %v2423 = vld [vmem:[%s11 + $0x124] sm:$0xf]
    %v2424 = vld [vmem:[%s11 + $0x128] sm:$0xf]
    %v2425 = vld [vmem:[%s11 + $0x12c] sm:$0xf]
    %v2426 = vld [vmem:[%s11 + $0x130] sm:$0xf]
    %v2427 = vld [vmem:[%s11 + $0x134] sm:$0xf]
    %v2428 = vld [vmem:[%s11 + $0x138] sm:$0xf]
    %v2429 = vld [vmem:[%s11 + $0x13c] sm:$0xf]
    %v2430 = vld [vmem:[%s11 + $0x140] sm:$0xf]
    %v2431 = vld [vmem:[%s11 + $0x144] sm:$0xf]
    %v2432 = vld [vmem:[%s11 + $0x148] sm:$0xf]
    %v2433 = vld [vmem:[%s11 + $0x14c] sm:$0xf]
    %v2434 = vld [vmem:[%s11 + $0x150] sm:$0xf]
    %v2435 = vld [vmem:[%s11 + $0x154] sm:$0xf]
    %v2436 = vld [vmem:[%s11 + $0x158] sm:$0xf]
    %v2437 = vld [vmem:[%s11 + $0x15c] sm:$0xf]
    %v2438 = vld [vmem:[%s11 + $0x160] sm:$0xf]
    %v2439 = vld [vmem:[%s11 + $0x164] sm:$0xf]
    %v2440 = vld [vmem:[%s11 + $0x168] sm:$0xf]
    %v2441 = vld [vmem:[%s11 + $0x16c] sm:$0xf]
    %v2442 = vld [vmem:[%s11 + $0x170] sm:$0xf]
    %v2443 = vld [vmem:[%s11 + $0x174] sm:$0xf]
    %v2444 = vld [vmem:[%s11 + $0x178] sm:$0xf]
    %v2445 = vld [vmem:[%s11 + $0x17c] sm:$0xf]
    %v2446 = vld [vmem:[%s11 + $0x180] sm:$0xf]
    %v2447 = vld [vmem:[%s11 + $0x184] sm:$0xf]
    %v2448 = vld [vmem:[%s11 + $0x188] sm:$0xf]
    %v2449 = vld [vmem:[%s11 + $0x18c] sm:$0xf]
    %v2450 = vld [vmem:[%s11 + $0x190] sm:$0xf]
    %v2451 = vld [vmem:[%s11 + $0x194] sm:$0xf]
    %v2452 = vld [vmem:[%s11 + $0x198] sm:$0xf]
    %v2453 = vld [vmem:[%s11 + $0x19c] sm:$0xf]
    %v2454 = vld [vmem:[%s11 + $0x1a0] sm:$0xf]
    %v2455 = vld [vmem:[%s11 + $0x1a4] sm:$0xf]
    %v2456 = vld [vmem:[%s11 + $0x1a8] sm:$0xf]
    %v2457 = vld [vmem:[%s11 + $0x1ac] sm:$0xf]
    %v2458 = vld [vmem:[%s11 + $0x1b0] sm:$0xf]
    %v2459 = vld [vmem:[%s11 + $0x1b4] sm:$0xf]
    %v2460 = vld [vmem:[%s11 + $0x1b8] sm:$0xf]
    %v2461 = vld [vmem:[%s11 + $0x1bc] sm:$0xf]
    %v2462 = vld [vmem:[%s11 + $0x1c0] sm:$0xf]
    %v2463 = vld [vmem:[%s11 + $0x1c4] sm:$0xf]
    %v2464 = vld [vmem:[%s11 + $0x1c8] sm:$0xf]
    %v2465 = vld [vmem:[%s11 + $0x1cc] sm:$0xf]
    %v2466 = vld [vmem:[%s11 + $0x1d0] sm:$0xf]
    %v2467 = vld [vmem:[%s11 + $0x1d4] sm:$0xf]
    %v2468 = vld [vmem:[%s11 + $0x1d8] sm:$0xf]
    %v2469 = vld [vmem:[%s11 + $0x1dc] sm:$0xf]
    %v2470 = vld [vmem:[%s11 + $0x1e0] sm:$0xf]
    %v2471 = vld [vmem:[%s11 + $0x1e4] sm:$0xf]
    %v2472 = vld [vmem:[%s11 + $0x1e8] sm:$0xf]
    %v2473 = vld [vmem:[%s11 + $0x1ec] sm:$0xf]
    %v2474 = vld [vmem:[%s11 + $0x1f0] sm:$0xf]
    %v2475 = vld [vmem:[%s11 + $0x1f4] sm:$0xf]
    %v2476 = vld [vmem:[%s11 + $0x1f8] sm:$0xf]
    %v2477 = vld [vmem:[%s11 + $0x1fc] sm:$0xf]
    %v2478 = vld [vmem:[%s11 + $0x200] sm:$0xf]
    %v2479 = vld [vmem:[%s11 + $0x204] sm:$0xf]
    %v2480 = vld [vmem:[%s11 + $0x208] sm:$0xf]
    %v2481 = vld [vmem:[%s11 + $0x20c] sm:$0xf]
    %v2482 = vld [vmem:[%s11 + $0x210] sm:$0xf]
    %v2483 = vld [vmem:[%s11 + $0x214] sm:$0xf]
    %v2484 = vld [vmem:[%s11 + $0x218] sm:$0xf]
    %v2485 = vld [vmem:[%s11 + $0x21c] sm:$0xf]
    %v2486 = vld [vmem:[%s11 + $0x220] sm:$0xf]
    %v2487 = vld [vmem:[%s11 + $0x224] sm:$0xf]
    %v2488 = vld [vmem:[%s11 + $0x228] sm:$0xf]
    %v2489 = vld [vmem:[%s11 + $0x22c] sm:$0xf]
    %v2490 = vld [vmem:[%s11 + $0x230] sm:$0xf]
    %v2491 = vld [vmem:[%s11 + $0x234] sm:$0xf]
    %v2492 = vld [vmem:[%s11 + $0x238] sm:$0xf]
    %v2493 = vld [vmem:[%s11 + $0x23c] sm:$0xf]
    %v2494 = vld [vmem:[%s11 + $0x240] sm:$0xf]
    %v2495 = vld [vmem:[%s11 + $0x244] sm:$0xf]
    %v2496 = vld [vmem:[%s11 + $0x248] sm:$0xf]
    %v2497 = vld [vmem:[%s11 + $0x24c] sm:$0xf]
    %v2498 = vld [vmem:[%s11 + $0x250] sm:$0xf]
    %v2499 = vld [vmem:[%s11 + $0x254] sm:$0xf]
    %v2500 = vld [vmem:[%s11 + $0x258] sm:$0xf]
    %v2501 = vld [vmem:[%s11 + $0x25c] sm:$0xf]
    %v2502 = vld [vmem:[%s11 + $0x260] sm:$0xf]
    %v2503 = vld [vmem:[%s11 + $0x264] sm:$0xf]
    %v2504 = vld [vmem:[%s11 + $0x268] sm:$0xf]
    %v2505 = vld [vmem:[%s11 + $0x26c] sm:$0xf]
    %v2506 = vld [vmem:[%s11 + $0x270] sm:$0xf]
    %v2507 = vld [vmem:[%s11 + $0x274] sm:$0xf]
    %v2508 = vld [vmem:[%s11 + $0x278] sm:$0xf]
    %v2509 = vld [vmem:[%s11 + $0x27c] sm:$0xf]
    %v2510 = vld [vmem:[%s11 + $0x280] sm:$0xf]
    %v2511 = vld [vmem:[%s11 + $0x284] sm:$0xf]
    %v2512 = vld [vmem:[%s11 + $0x288] sm:$0xf]
    %v2513 = vld [vmem:[%s11 + $0x28c] sm:$0xf]
    %v2514 = vld [vmem:[%s11 + $0x290] sm:$0xf]
    %v2515 = vld [vmem:[%s11 + $0x294] sm:$0xf]
    %v2516 = vld [vmem:[%s11 + $0x298] sm:$0xf]
    %v2517 = vld [vmem:[%s11 + $0x29c] sm:$0xf]
    %v2518 = vld [vmem:[%s11 + $0x2a0] sm:$0xf]
    %v2519 = vld [vmem:[%s11 + $0x2a4] sm:$0xf]
    %v2520 = vld [vmem:[%s11 + $0x2a8] sm:$0xf]
    %v2521 = vld [vmem:[%s11 + $0x2ac] sm:$0xf]
    %v2522 = vld [vmem:[%s11 + $0x2b0] sm:$0xf]
    %v2523 = vld [vmem:[%s11 + $0x2b4] sm:$0xf]
    %v2524 = vld [vmem:[%s11 + $0x2b8] sm:$0xf]
    %v2525 = vld [vmem:[%s11 + $0x2bc] sm:$0xf]
    %v2526 = vld [vmem:[%s11 + $0x2c0] sm:$0xf]
    %v2527 = vld [vmem:[%s11 + $0x2c4] sm:$0xf]
    %v2528 = vld [vmem:[%s11 + $0x2c8] sm:$0xf]
    %v2529 = vld [vmem:[%s11 + $0x2cc] sm:$0xf]
    %v2530 = vld [vmem:[%s11 + $0x2d0] sm:$0xf]
    %v2531 = vld [vmem:[%s11 + $0x2d4] sm:$0xf]
    %v2532 = vld [vmem:[%s11 + $0x2d8] sm:$0xf]
    %v2533 = vld [vmem:[%s11 + $0x2dc] sm:$0xf]
    %v2534 = vld [vmem:[%s11 + $0x2e0] sm:$0xf]
    %v2535 = vld [vmem:[%s11 + $0x2e4] sm:$0xf]
    %v2536 = vld [vmem:[%s11 + $0x2e8] sm:$0xf]
    %v2537 = vld [vmem:[%s11 + $0x2ec] sm:$0xf]
    %v2538 = vld [vmem:[%s11 + $0x2f0] sm:$0xf]
    %v2539 = vld [vmem:[%s11 + $0x2f4] sm:$0xf]
    %v2540 = vld [vmem:[%s11 + $0x2f8] sm:$0xf]
    %v2541 = vld [vmem:[%s11 + $0x2fc] sm:$0xf]
    %v2542 = vld [vmem:[%s12] sm:$0x1]
    %v2544 = vlaneseq
    %v2545 = vshrl.u32 %v2544, 7
    %v2546 = vsub.s32 0, %v2545
    %v2547 = vrot.slane %v2542, %v2546
    %v2741 = vunpack.c.l.b16 %v2350
    %v2742 = vunpack.c.l.b16 %v2351
    %v2743 = vunpack.c.l.b16 %v2352
    %v2744 = vunpack.c.l.b16 %v2353
    %v2745 = vunpack.c.l.b16 %v2354
    %v2746 = vunpack.c.l.b16 %v2355
    %v2747 = vunpack.c.l.b16 %v2356
    %v2748 = vunpack.c.l.b16 %v2357
    %v2749 = vunpack.c.l.b16 %v2358
    %v2750 = vunpack.c.l.b16 %v2359
    %v2751 = vunpack.c.l.b16 %v2360
    %v2752 = vunpack.c.l.b16 %v2361
    %v2753 = vunpack.c.l.b16 %v2362
    %v2754 = vunpack.c.l.b16 %v2363
    %v2755 = vunpack.c.l.b16 %v2364
    %v2756 = vunpack.c.l.b16 %v2365
    %v2757 = vunpack.c.l.b16 %v2366
    %v2758 = vunpack.c.l.b16 %v2367
    %v2759 = vunpack.c.l.b16 %v2368
    %v2760 = vunpack.c.l.b16 %v2369
    %v2761 = vunpack.c.l.b16 %v2370
    %v2762 = vunpack.c.l.b16 %v2371
    %v2763 = vunpack.c.l.b16 %v2372
    %v2764 = vunpack.c.l.b16 %v2373
    %v2765 = vunpack.c.l.b16 %v2374
    %v2766 = vunpack.c.l.b16 %v2375
    %v2767 = vunpack.c.l.b16 %v2376
    %v2768 = vunpack.c.l.b16 %v2377
    %v2769 = vunpack.c.l.b16 %v2378
    %v2770 = vunpack.c.l.b16 %v2379
    %v2771 = vunpack.c.l.b16 %v2380
    %v2772 = vunpack.c.l.b16 %v2381
    %v2773 = vunpack.c.l.b16 %v2382
    %v2774 = vunpack.c.l.b16 %v2383
    %v2775 = vunpack.c.l.b16 %v2384
    %v2776 = vunpack.c.l.b16 %v2385
    %v2777 = vunpack.c.l.b16 %v2386
    %v2778 = vunpack.c.l.b16 %v2387
    %v2779 = vunpack.c.l.b16 %v2388
    %v2780 = vunpack.c.l.b16 %v2389
    %v2781 = vunpack.c.l.b16 %v2390
    %v2782 = vunpack.c.l.b16 %v2391
    %v2783 = vunpack.c.l.b16 %v2392
    %v2784 = vunpack.c.l.b16 %v2393
    %v2785 = vunpack.c.l.b16 %v2394
    %v2786 = vunpack.c.l.b16 %v2395
    %v2787 = vunpack.c.l.b16 %v2396
    %v2788 = vunpack.c.l.b16 %v2397
    %v2789 = vunpack.c.l.b16 %v2398
    %v2790 = vunpack.c.l.b16 %v2399
    %v2791 = vunpack.c.l.b16 %v2400
    %v2792 = vunpack.c.l.b16 %v2401
    %v2793 = vunpack.c.l.b16 %v2402
    %v2794 = vunpack.c.l.b16 %v2403
    %v2795 = vunpack.c.l.b16 %v2404
    %v2796 = vunpack.c.l.b16 %v2405
    %v2797 = vunpack.c.l.b16 %v2406
    %v2798 = vunpack.c.l.b16 %v2407
    %v2799 = vunpack.c.l.b16 %v2408
    %v2800 = vunpack.c.l.b16 %v2409
    %v2801 = vunpack.c.l.b16 %v2410
    %v2802 = vunpack.c.l.b16 %v2411
    %v2803 = vunpack.c.l.b16 %v2412
    %v2804 = vunpack.c.l.b16 %v2413
    %v2805 = vunpack.c.l.b16 %v2414
    %v2806 = vunpack.c.l.b16 %v2415
    %v2807 = vunpack.c.l.b16 %v2416
    %v2808 = vunpack.c.l.b16 %v2417
    %v2809 = vunpack.c.l.b16 %v2418
    %v2810 = vunpack.c.l.b16 %v2419
    %v2811 = vunpack.c.l.b16 %v2420
    %v2812 = vunpack.c.l.b16 %v2421
    %v2813 = vunpack.c.l.b16 %v2422
    %v2814 = vunpack.c.l.b16 %v2423
    %v2815 = vunpack.c.l.b16 %v2424
    %v2816 = vunpack.c.l.b16 %v2425
    %v2817 = vunpack.c.l.b16 %v2426
    %v2818 = vunpack.c.l.b16 %v2427
    %v2819 = vunpack.c.l.b16 %v2428
    %v2820 = vunpack.c.l.b16 %v2429
    %v2821 = vunpack.c.l.b16 %v2430
    %v2822 = vunpack.c.l.b16 %v2431
    %v2823 = vunpack.c.l.b16 %v2432
    %v2824 = vunpack.c.l.b16 %v2433
    %v2825 = vunpack.c.l.b16 %v2434
    %v2826 = vunpack.c.l.b16 %v2435
    %v2827 = vunpack.c.l.b16 %v2436
    %v2828 = vunpack.c.l.b16 %v2437
    %v2829 = vunpack.c.l.b16 %v2438
    %v2830 = vunpack.c.l.b16 %v2439
    %v2831 = vunpack.c.l.b16 %v2440
    %v2832 = vunpack.c.l.b16 %v2441
    %v2833 = vunpack.c.l.b16 %v2442
    %v2834 = vunpack.c.l.b16 %v2443
    %v2835 = vunpack.c.l.b16 %v2444
    %v2836 = vunpack.c.l.b16 %v2445
    %v2837 = vunpack.c.l.b16 %v2446
    %v2838 = vunpack.c.l.b16 %v2447
    %v2839 = vunpack.c.l.b16 %v2448
    %v2840 = vunpack.c.l.b16 %v2449
    %v2841 = vunpack.c.l.b16 %v2450
    %v2842 = vunpack.c.l.b16 %v2451
    %v2843 = vunpack.c.l.b16 %v2452
    %v2844 = vunpack.c.l.b16 %v2453
    %v2845 = vunpack.c.l.b16 %v2454
    %v2846 = vunpack.c.l.b16 %v2455
    %v2847 = vunpack.c.l.b16 %v2456
    %v2848 = vunpack.c.l.b16 %v2457
    %v2849 = vunpack.c.l.b16 %v2458
    %v2850 = vunpack.c.l.b16 %v2459
    %v2851 = vunpack.c.l.b16 %v2460
    %v2852 = vunpack.c.l.b16 %v2461
    %v2853 = vunpack.c.l.b16 %v2462
    %v2854 = vunpack.c.l.b16 %v2463
    %v2855 = vunpack.c.l.b16 %v2464
    %v2856 = vunpack.c.l.b16 %v2465
    %v2857 = vunpack.c.l.b16 %v2466
    %v2858 = vunpack.c.l.b16 %v2467
    %v2859 = vunpack.c.l.b16 %v2468
    %v2860 = vunpack.c.l.b16 %v2469
    %v2861 = vunpack.c.l.b16 %v2470
    %v2862 = vunpack.c.l.b16 %v2471
    %v2863 = vunpack.c.l.b16 %v2472
    %v2864 = vunpack.c.l.b16 %v2473
    %v2865 = vunpack.c.l.b16 %v2474
    %v2866 = vunpack.c.l.b16 %v2475
    %v2867 = vunpack.c.l.b16 %v2476
    %v2868 = vunpack.c.l.b16 %v2477
    %v2869 = vunpack.c.l.b16 %v2478
    %v2870 = vunpack.c.l.b16 %v2479
    %v2871 = vunpack.c.l.b16 %v2480
    %v2872 = vunpack.c.l.b16 %v2481
    %v2873 = vunpack.c.l.b16 %v2482
    %v2874 = vunpack.c.l.b16 %v2483
    %v2875 = vunpack.c.l.b16 %v2484
    %v2876 = vunpack.c.l.b16 %v2485
    %v2877 = vunpack.c.l.b16 %v2486
    %v2878 = vunpack.c.l.b16 %v2487
    %v2879 = vunpack.c.l.b16 %v2488
    %v2880 = vunpack.c.l.b16 %v2489
    %v2881 = vunpack.c.l.b16 %v2490
    %v2882 = vunpack.c.l.b16 %v2491
    %v2883 = vunpack.c.l.b16 %v2492
    %v2884 = vunpack.c.l.b16 %v2493
    %v2885 = vunpack.c.l.b16 %v2494
    %v2886 = vunpack.c.l.b16 %v2495
    %v2887 = vunpack.c.l.b16 %v2496
    %v2888 = vunpack.c.l.b16 %v2497
    %v2889 = vunpack.c.l.b16 %v2498
    %v2890 = vunpack.c.l.b16 %v2499
    %v2891 = vunpack.c.l.b16 %v2500
    %v2892 = vunpack.c.l.b16 %v2501
    %v2893 = vunpack.c.l.b16 %v2502
    %v2894 = vunpack.c.l.b16 %v2503
    %v2895 = vunpack.c.l.b16 %v2504
    %v2896 = vunpack.c.l.b16 %v2505
    %v2897 = vunpack.c.l.b16 %v2506
    %v2898 = vunpack.c.l.b16 %v2507
    %v2899 = vunpack.c.l.b16 %v2508
    %v2900 = vunpack.c.l.b16 %v2509
    %v2901 = vunpack.c.l.b16 %v2510
    %v2902 = vunpack.c.l.b16 %v2511
    %v2903 = vunpack.c.l.b16 %v2512
    %v2904 = vunpack.c.l.b16 %v2513
    %v2905 = vunpack.c.l.b16 %v2514
    %v2906 = vunpack.c.l.b16 %v2515
    %v2907 = vunpack.c.l.b16 %v2516
    %v2908 = vunpack.c.l.b16 %v2517
    %v2909 = vunpack.c.l.b16 %v2518
    %v2910 = vunpack.c.l.b16 %v2519
    %v2911 = vunpack.c.l.b16 %v2520
    %v2912 = vunpack.c.l.b16 %v2521
    %v2913 = vunpack.c.l.b16 %v2522
    %v2914 = vunpack.c.l.b16 %v2523
    %v2915 = vunpack.c.l.b16 %v2524
    %v2916 = vunpack.c.l.b16 %v2525
    %v2917 = vunpack.c.l.b16 %v2526
    %v2918 = vunpack.c.l.b16 %v2527
    %v2919 = vunpack.c.l.b16 %v2528
    %v2920 = vunpack.c.l.b16 %v2529
    %v2921 = vunpack.c.l.b16 %v2530
    %v2922 = vunpack.c.l.b16 %v2531
    %v2923 = vunpack.c.l.b16 %v2532
    %v2924 = vunpack.c.l.b16 %v2533
    %v2925 = vunpack.c.l.b16 %v2534
    %v2926 = vunpack.c.l.b16 %v2535
    %v2927 = vunpack.c.l.b16 %v2536
    %v2928 = vunpack.c.l.b16 %v2537
    %v2929 = vunpack.c.l.b16 %v2538
    %v2930 = vunpack.c.l.b16 %v2539
    %v2931 = vunpack.c.l.b16 %v2540
    %v2932 = vunpack.c.l.b16 %v2541
    %v2933 = vpack.c.b16 %v2742, %v2741
    %v2934 = vpack.c.b16 %v2744, %v2743
    %v2935 = vpack.c.b16 %v2746, %v2745
    %v2936 = vpack.c.b16 %v2748, %v2747
    %v2937 = vpack.c.b16 %v2750, %v2749
    %v2938 = vpack.c.b16 %v2752, %v2751
    %v2939 = vpack.c.b16 %v2754, %v2753
    %v2940 = vpack.c.b16 %v2756, %v2755
    %v2941 = vpack.c.b16 %v2758, %v2757
    %v2942 = vpack.c.b16 %v2760, %v2759
    %v2943 = vpack.c.b16 %v2762, %v2761
    %v2944 = vpack.c.b16 %v2764, %v2763
    %v2945 = vpack.c.b16 %v2766, %v2765
    %v2946 = vpack.c.b16 %v2768, %v2767
    %v2947 = vpack.c.b16 %v2770, %v2769
    %v2948 = vpack.c.b16 %v2772, %v2771
    %v2949 = vpack.c.b16 %v2774, %v2773
    %v2950 = vpack.c.b16 %v2776, %v2775
    %v2951 = vpack.c.b16 %v2778, %v2777
    %v2952 = vpack.c.b16 %v2780, %v2779
    %v2953 = vpack.c.b16 %v2782, %v2781
    %v2954 = vpack.c.b16 %v2784, %v2783
    %v2955 = vpack.c.b16 %v2786, %v2785
    %v2956 = vpack.c.b16 %v2788, %v2787
    %v2957 = vpack.c.b16 %v2790, %v2789
    %v2958 = vpack.c.b16 %v2792, %v2791
    %v2959 = vpack.c.b16 %v2794, %v2793
    %v2960 = vpack.c.b16 %v2796, %v2795
    %v2961 = vpack.c.b16 %v2798, %v2797
    %v2962 = vpack.c.b16 %v2800, %v2799
    %v2963 = vpack.c.b16 %v2802, %v2801
    %v2964 = vpack.c.b16 %v2804, %v2803
    %v2965 = vpack.c.b16 %v2806, %v2805
    %v2966 = vpack.c.b16 %v2808, %v2807
    %v2967 = vpack.c.b16 %v2810, %v2809
    %v2968 = vpack.c.b16 %v2812, %v2811
    %v2969 = vpack.c.b16 %v2814, %v2813
    %v2970 = vpack.c.b16 %v2816, %v2815
    %v2971 = vpack.c.b16 %v2818, %v2817
    %v2972 = vpack.c.b16 %v2820, %v2819
    %v2973 = vpack.c.b16 %v2822, %v2821
    %v2974 = vpack.c.b16 %v2824, %v2823
    %v2975 = vpack.c.b16 %v2826, %v2825
    %v2976 = vpack.c.b16 %v2828, %v2827
    %v2977 = vpack.c.b16 %v2830, %v2829
    %v2978 = vpack.c.b16 %v2832, %v2831
    %v2979 = vpack.c.b16 %v2834, %v2833
    %v2980 = vpack.c.b16 %v2836, %v2835
    %v2981 = vpack.c.b16 %v2838, %v2837
    %v2982 = vpack.c.b16 %v2840, %v2839
    %v2983 = vpack.c.b16 %v2842, %v2841
    %v2984 = vpack.c.b16 %v2844, %v2843
    %v2985 = vpack.c.b16 %v2846, %v2845
    %v2986 = vpack.c.b16 %v2848, %v2847
    %v2987 = vpack.c.b16 %v2850, %v2849
    %v2988 = vpack.c.b16 %v2852, %v2851
    %v2989 = vpack.c.b16 %v2854, %v2853
    %v2990 = vpack.c.b16 %v2856, %v2855
    %v2991 = vpack.c.b16 %v2858, %v2857
    %v2992 = vpack.c.b16 %v2860, %v2859
    %v2993 = vpack.c.b16 %v2862, %v2861
    %v2994 = vpack.c.b16 %v2864, %v2863
    %v2995 = vpack.c.b16 %v2866, %v2865
    %v2996 = vpack.c.b16 %v2868, %v2867
    %v2997 = vpack.c.b16 %v2870, %v2869
    %v2998 = vpack.c.b16 %v2872, %v2871
    %v2999 = vpack.c.b16 %v2874, %v2873
    %v3000 = vpack.c.b16 %v2876, %v2875
    %v3001 = vpack.c.b16 %v2878, %v2877
    %v3002 = vpack.c.b16 %v2880, %v2879
    %v3003 = vpack.c.b16 %v2882, %v2881
    %v3004 = vpack.c.b16 %v2884, %v2883
    %v3005 = vpack.c.b16 %v2886, %v2885
    %v3006 = vpack.c.b16 %v2888, %v2887
    %v3007 = vpack.c.b16 %v2890, %v2889
    %v3008 = vpack.c.b16 %v2892, %v2891
    %v3009 = vpack.c.b16 %v2894, %v2893
    %v3010 = vpack.c.b16 %v2896, %v2895
    %v3011 = vpack.c.b16 %v2898, %v2897
    %v3012 = vpack.c.b16 %v2900, %v2899
    %v3013 = vpack.c.b16 %v2902, %v2901
    %v3014 = vpack.c.b16 %v2904, %v2903
    %v3015 = vpack.c.b16 %v2906, %v2905
    %v3016 = vpack.c.b16 %v2908, %v2907
    %v3017 = vpack.c.b16 %v2910, %v2909
    %v3018 = vpack.c.b16 %v2912, %v2911
    %v3019 = vpack.c.b16 %v2914, %v2913
    %v3020 = vpack.c.b16 %v2916, %v2915
    %v3021 = vpack.c.b16 %v2918, %v2917
    %v3022 = vpack.c.b16 %v2920, %v2919
    %v3023 = vpack.c.b16 %v2922, %v2921
    %v3024 = vpack.c.b16 %v2924, %v2923
    %v3025 = vpack.c.b16 %v2926, %v2925
    %v3026 = vpack.c.b16 %v2928, %v2927
    %v3027 = vpack.c.b16 %v2930, %v2929
    %v3028 = vpack.c.b16 %v2932, %v2931
    %3125 = vmatprep.subr.bf16.mxu0 0
    %3126 = vmatpush1.bf16.msra.mxu0 %v2933
    %3127 = vmatprep.subr.bf16.mxu0 0
    %3128 = vmatpush1.bf16.msra.mxu0 %v2934
    %3129 = vmatprep.subr.bf16.mxu0 0
    %3130 = vmatpush1.bf16.msra.mxu0 %v2935
    %3131 = vmatprep.subr.bf16.mxu0 0
    %3132 = vmatpush1.bf16.msra.mxu0 %v2936
    %3133 = vmatprep.subr.bf16.mxu0 0
    %3134 = vmatpush1.bf16.msra.mxu0 %v2937
    %3135 = vmatprep.subr.bf16.mxu0 0
    %3136 = vmatpush1.bf16.msra.mxu0 %v2938
    %3137 = vmatprep.subr.bf16.mxu0 0
    %3138 = vmatpush1.bf16.msra.mxu0 %v2939
    %3139 = vmatprep.subr.bf16.mxu0 0
    %3140 = vmatpush1.bf16.msra.mxu0 %v2940
    %3141 = vmatprep.subr.bf16.mxu0 0
    %3142 = vmatpush1.bf16.msra.mxu0 %v2941
    %3143 = vmatprep.subr.bf16.mxu0 0
    %3144 = vmatpush1.bf16.msra.mxu0 %v2942
    %3145 = vmatprep.subr.bf16.mxu0 0
    %3146 = vmatpush1.bf16.msra.mxu0 %v2943
    %3147 = vmatprep.subr.bf16.mxu0 0
    %3148 = vmatpush1.bf16.msra.mxu0 %v2944
    %3149 = vmatprep.subr.bf16.mxu0 0
    %3150 = vmatpush1.bf16.msra.mxu0 %v2945
    %3151 = vmatprep.subr.bf16.mxu0 0
    %3152 = vmatpush1.bf16.msra.mxu0 %v2946
    %3153 = vmatprep.subr.bf16.mxu0 0
    %3154 = vmatpush1.bf16.msra.mxu0 %v2947
    %3155 = vmatprep.subr.bf16.mxu0 0
    %3156 = vmatpush1.bf16.msra.mxu0 %v2948
    %3157 = vmatprep.mubr.bf16.mxu0 %v2327
    %3158 = vmatmul.mubr.bf16.gmra.mrb[0].mxu0 %v2326
    %v3159 = vpop.f32.mrb[0].mxu0
    %v3160 = vadd.f32 %v2547, %v3159
    %v3161 = vpop.f32.mrb[0].mxu0
    %v3162 = vpop.f32.mrb[0].mxu0
    %v3163 = vadd.f32 %v2547, %v3162
    %v3164 = vpop.f32.mrb[0].mxu0
    %3165 = vmatprep.mubr.bf16.mxu0 %v2339
    %3166 = vmatmul.mubr.bf16.gmra.mrb[0].mxu0 %v2338
    %v3167 = vpop.f32.mrb[0].mxu0
    %v3168 = vadd.f32 %v2547, %v3167
    %v3169 = vpop.f32.mrb[0].mxu0
    %v3170 = vpop.f32.mrb[0].mxu0
    %v3171 = vadd.f32 %v2547, %v3170
    %v3172 = vpop.f32.mrb[0].mxu0
    %3173 = vdwg.mxu0
    %3174 = vmatprep.subr.bf16.mxu0 0
    %3175 = vmatpush1.bf16.msra.mxu0 %v2949
    %3176 = vmatprep.subr.bf16.mxu0 0
    %3177 = vmatpush1.bf16.msra.mxu0 %v2950
    %3178 = vmatprep.subr.bf16.mxu0 0
    %3179 = vmatpush1.bf16.msra.mxu0 %v2951
    %3180 = vmatprep.subr.bf16.mxu0 0
    %3181 = vmatpush1.bf16.msra.mxu0 %v2952
    %3182 = vmatprep.subr.bf16.mxu0 0
    %3183 = vmatpush1.bf16.msra.mxu0 %v2953
    %3184 = vmatprep.subr.bf16.mxu0 0
    %3185 = vmatpush1.bf16.msra.mxu0 %v2954
    %3186 = vmatprep.subr.bf16.mxu0 0
    %3187 = vmatpush1.bf16.msra.mxu0 %v2955
    %3188 = vmatprep.subr.bf16.mxu0 0
    %3189 = vmatpush1.bf16.msra.mxu0 %v2956
    %3190 = vmatprep.subr.bf16.mxu0 0
    %3191 = vmatpush1.bf16.msra.mxu0 %v2957
    %3192 = vmatprep.subr.bf16.mxu0 0
    %3193 = vmatpush1.bf16.msra.mxu0 %v2958
    %3194 = vmatprep.subr.bf16.mxu0 0
    %3195 = vmatpush1.bf16.msra.mxu0 %v2959
    %3196 = vmatprep.subr.bf16.mxu0 0
    %3197 = vmatpush1.bf16.msra.mxu0 %v2960
    %3198 = vmatprep.subr.bf16.mxu0 0
    %3199 = vmatpush1.bf16.msra.mxu0 %v2961
    %3200 = vmatprep.subr.bf16.mxu0 0
    %3201 = vmatpush1.bf16.msra.mxu0 %v2962
    %3202 = vmatprep.subr.bf16.mxu0 0
    %3203 = vmatpush1.bf16.msra.mxu0 %v2963
    %3204 = vmatprep.subr.bf16.mxu0 0
    %3205 = vmatpush1.bf16.msra.mxu0 %v2964
    %3206 = vmatprep.mubr.bf16.mxu0 %v2329
    %3207 = vmatmul.mubr.bf16.gmra.mrb[0].mxu0 %v2328
    %v3208 = vpop.f32.mrb[0].mxu0
    %v3209 = vadd.f32 %v3160, %v3208
    %v3210 = vpop.f32.mrb[0].mxu0
    %v3211 = vpop.f32.mrb[0].mxu0
    %v3212 = vadd.f32 %v3163, %v3211
    %v3213 = vpop.f32.mrb[0].mxu0
    %3214 = vmatprep.mubr.bf16.mxu0 %v2341
    %3215 = vmatmul.mubr.bf16.gmra.mrb[0].mxu0 %v2340
    %v3216 = vpop.f32.mrb[0].mxu0
    %v3217 = vadd.f32 %v3168, %v3216
    %v3218 = vpop.f32.mrb[0].mxu0
    %v3219 = vpop.f32.mrb[0].mxu0
    %v3220 = vadd.f32 %v3171, %v3219
    %v3221 = vpop.f32.mrb[0].mxu0
    %3222 = vdwg.mxu0
    %3223 = vmatprep.subr.bf16.mxu0 0
    %3224 = vmatpush1.bf16.msra.mxu0 %v2965
    %3225 = vmatprep.subr.bf16.mxu0 0
    %3226 = vmatpush1.bf16.msra.mxu0 %v2966
    %3227 = vmatprep.subr.bf16.mxu0 0
    %3228 = vmatpush1.bf16.msra.mxu0 %v2967
    %3229 = vmatprep.subr.bf16.mxu0 0
    %3230 = vmatpush1.bf16.msra.mxu0 %v2968
    %3231 = vmatprep.subr.bf16.mxu0 0
    %3232 = vmatpush1.bf16.msra.mxu0 %v2969
    %3233 = vmatprep.subr.bf16.mxu0 0
    %3234 = vmatpush1.bf16.msra.mxu0 %v2970
    %3235 = vmatprep.subr.bf16.mxu0 0
    %3236 = vmatpush1.bf16.msra.mxu0 %v2971
    %3237 = vmatprep.subr.bf16.mxu0 0
    %3238 = vmatpush1.bf16.msra.mxu0 %v2972
    %3239 = vmatprep.subr.bf16.mxu0 0
    %3240 = vmatpush1.bf16.msra.mxu0 %v2973
    %3241 = vmatprep.subr.bf16.mxu0 0
    %3242 = vmatpush1.bf16.msra.mxu0 %v2974
    %3243 = vmatprep.subr.bf16.mxu0 0
    %3244 = vmatpush1.bf16.msra.mxu0 %v2975
    %3245 = vmatprep.subr.bf16.mxu0 0
    %3246 = vmatpush1.bf16.msra.mxu0 %v2976
    %3247 = vmatprep.subr.bf16.mxu0 0
    %3248 = vmatpush1.bf16.msra.mxu0 %v2977
    %3249 = vmatprep.subr.bf16.mxu0 0
    %3250 = vmatpush1.bf16.msra.mxu0 %v2978
    %3251 = vmatprep.subr.bf16.mxu0 0
    %3252 = vmatpush1.bf16.msra.mxu0 %v2979
    %3253 = vmatprep.subr.bf16.mxu0 0
    %3254 = vmatpush1.bf16.msra.mxu0 %v2980
    %3255 = vmatprep.mubr.bf16.mxu0 %v2331
    %3256 = vmatmul.mubr.bf16.gmra.mrb[0].mxu0 %v2330
    %v3257 = vpop.f32.mrb[0].mxu0
    %v3258 = vadd.f32 %v3209, %v3257
    %v3259 = vpop.f32.mrb[0].mxu0
    %v3260 = vpop.f32.mrb[0].mxu0
    %v3261 = vadd.f32 %v3212, %v3260
    %v3262 = vpop.f32.mrb[0].mxu0
    %3263 = vmatprep.mubr.bf16.mxu0 %v2343
    %3264 = vmatmul.mubr.bf16.gmra.mrb[0].mxu0 %v2342
    %v3265 = vpop.f32.mrb[0].mxu0
    %v3266 = vadd.f32 %v3217, %v3265
    %v3267 = vpop.f32.mrb[0].mxu0
    %v3268 = vpop.f32.mrb[0].mxu0
    %v3269 = vadd.f32 %v3220, %v3268
    %v3270 = vpop.f32.mrb[0].mxu0
    %3271 = vdwg.mxu0
    %3272 = vmatprep.subr.bf16.mxu0 0
    %3273 = vmatpush1.bf16.msra.mxu0 %v2981
    %3274 = vmatprep.subr.bf16.mxu0 0
    %3275 = vmatpush1.bf16.msra.mxu0 %v2982
    %3276 = vmatprep.subr.bf16.mxu0 0
    %3277 = vmatpush1.bf16.msra.mxu0 %v2983
    %3278 = vmatprep.subr.bf16.mxu0 0
    %3279 = vmatpush1.bf16.msra.mxu0 %v2984
    %3280 = vmatprep.subr.bf16.mxu0 0
    %3281 = vmatpush1.bf16.msra.mxu0 %v2985
    %3282 = vmatprep.subr.bf16.mxu0 0
    %3283 = vmatpush1.bf16.msra.mxu0 %v2986
    %3284 = vmatprep.subr.bf16.mxu0 0
    %3285 = vmatpush1.bf16.msra.mxu0 %v2987
    %3286 = vmatprep.subr.bf16.mxu0 0
    %3287 = vmatpush1.bf16.msra.mxu0 %v2988
    %3288 = vmatprep.subr.bf16.mxu0 0
    %3289 = vmatpush1.bf16.msra.mxu0 %v2989
    %3290 = vmatprep.subr.bf16.mxu0 0
    %3291 = vmatpush1.bf16.msra.mxu0 %v2990
    %3292 = vmatprep.subr.bf16.mxu0 0
    %3293 = vmatpush1.bf16.msra.mxu0 %v2991
    %3294 = vmatprep.subr.bf16.mxu0 0
    %3295 = vmatpush1.bf16.msra.mxu0 %v2992
    %3296 = vmatprep.subr.bf16.mxu0 0
    %3297 = vmatpush1.bf16.msra.mxu0 %v2993
    %3298 = vmatprep.subr.bf16.mxu0 0
    %3299 = vmatpush1.bf16.msra.mxu0 %v2994
    %3300 = vmatprep.subr.bf16.mxu0 0
    %3301 = vmatpush1.bf16.msra.mxu0 %v2995
    %3302 = vmatprep.subr.bf16.mxu0 0
    %3303 = vmatpush1.bf16.msra.mxu0 %v2996
    %3304 = vmatprep.mubr.bf16.mxu0 %v2333
    %3305 = vmatmul.mubr.bf16.gmra.mrb[0].mxu0 %v2332
    %v3306 = vpop.f32.mrb[0].mxu0
    %v3307 = vadd.f32 %v3258, %v3306
    %v3308 = vpop.f32.mrb[0].mxu0
    %v3309 = vpop.f32.mrb[0].mxu0
    %v3310 = vadd.f32 %v3261, %v3309
    %v3311 = vpop.f32.mrb[0].mxu0
    %3312 = vmatprep.mubr.bf16.mxu0 %v2345
    %3313 = vmatmul.mubr.bf16.gmra.mrb[0].mxu0 %v2344
    %v3314 = vpop.f32.mrb[0].mxu0
    %v3315 = vadd.f32 %v3266, %v3314
    %v3316 = vpop.f32.mrb[0].mxu0
    %v3317 = vpop.f32.mrb[0].mxu0
    %v3318 = vadd.f32 %v3269, %v3317
    %v3319 = vpop.f32.mrb[0].mxu0
    %3320 = vdwg.mxu0
    %3321 = vmatprep.subr.bf16.mxu0 0
    %3322 = vmatpush1.bf16.msra.mxu0 %v2997
    %3323 = vmatprep.subr.bf16.mxu0 0
    %3324 = vmatpush1.bf16.msra.mxu0 %v2998
    %3325 = vmatprep.subr.bf16.mxu0 0
    %3326 = vmatpush1.bf16.msra.mxu0 %v2999
    %3327 = vmatprep.subr.bf16.mxu0 0
    %3328 = vmatpush1.bf16.msra.mxu0 %v3000
    %3329 = vmatprep.subr.bf16.mxu0 0
    %3330 = vmatpush1.bf16.msra.mxu0 %v3001
    %3331 = vmatprep.subr.bf16.mxu0 0
    %3332 = vmatpush1.bf16.msra.mxu0 %v3002
    %3333 = vmatprep.subr.bf16.mxu0 0
    %3334 = vmatpush1.bf16.msra.mxu0 %v3003
    %3335 = vmatprep.subr.bf16.mxu0 0
    %3336 = vmatpush1.bf16.msra.mxu0 %v3004
    %3337 = vmatprep.subr.bf16.mxu0 0
    %3338 = vmatpush1.bf16.msra.mxu0 %v3005
    %3339 = vmatprep.subr.bf16.mxu0 0
    %3340 = vmatpush1.bf16.msra.mxu0 %v3006
    %3341 = vmatprep.subr.bf16.mxu0 0
    %3342 = vmatpush1.bf16.msra.mxu0 %v3007
    %3343 = vmatprep.subr.bf16.mxu0 0
    %3344 = vmatpush1.bf16.msra.mxu0 %v3008
    %3345 = vmatprep.subr.bf16.mxu0 0
    %3346 = vmatpush1.bf16.msra.mxu0 %v3009
    %3347 = vmatprep.subr.bf16.mxu0 0
    %3348 = vmatpush1.bf16.msra.mxu0 %v3010
    %3349 = vmatprep.subr.bf16.mxu0 0
    %3350 = vmatpush1.bf16.msra.mxu0 %v3011
    %3351 = vmatprep.subr.bf16.mxu0 0
    %3352 = vmatpush1.bf16.msra.mxu0 %v3012
    %3353 = vmatprep.mubr.bf16.mxu0 %v2335
    %3354 = vmatmul.mubr.bf16.gmra.mrb[0].mxu0 %v2334
    %v3355 = vpop.f32.mrb[0].mxu0
    %v3356 = vadd.f32 %v3307, %v3355
    %v3357 = vpop.f32.mrb[0].mxu0
    %v3358 = vpop.f32.mrb[0].mxu0
    %v3359 = vadd.f32 %v3310, %v3358
    %v3360 = vpop.f32.mrb[0].mxu0
    %3361 = vmatprep.mubr.bf16.mxu0 %v2347
    %3362 = vmatmul.mubr.bf16.gmra.mrb[0].mxu0 %v2346
    %v3363 = vpop.f32.mrb[0].mxu0
    %v3364 = vadd.f32 %v3315, %v3363
    %v3365 = vpop.f32.mrb[0].mxu0
    %v3366 = vpop.f32.mrb[0].mxu0
    %v3367 = vadd.f32 %v3318, %v3366
    %v3368 = vpop.f32.mrb[0].mxu0
    %3369 = vdwg.mxu0
    %3370 = vmatprep.subr.bf16.mxu0 0
    %3371 = vmatpush1.bf16.msra.mxu0 %v3013
    %3372 = vmatprep.subr.bf16.mxu0 0
    %3373 = vmatpush1.bf16.msra.mxu0 %v3014
    %3374 = vmatprep.subr.bf16.mxu0 0
    %3375 = vmatpush1.bf16.msra.mxu0 %v3015
    %3376 = vmatprep.subr.bf16.mxu0 0
    %3377 = vmatpush1.bf16.msra.mxu0 %v3016
    %3378 = vmatprep.subr.bf16.mxu0 0
    %3379 = vmatpush1.bf16.msra.mxu0 %v3017
    %3380 = vmatprep.subr.bf16.mxu0 0
    %3381 = vmatpush1.bf16.msra.mxu0 %v3018
    %3382 = vmatprep.subr.bf16.mxu0 0
    %3383 = vmatpush1.bf16.msra.mxu0 %v3019
    %3384 = vmatprep.subr.bf16.mxu0 0
    %3385 = vmatpush1.bf16.msra.mxu0 %v3020
    %3386 = vmatprep.subr.bf16.mxu0 0
    %3387 = vmatpush1.bf16.msra.mxu0 %v3021
    %3388 = vmatprep.subr.bf16.mxu0 0
    %3389 = vmatpush1.bf16.msra.mxu0 %v3022
    %3390 = vmatprep.subr.bf16.mxu0 0
    %3391 = vmatpush1.bf16.msra.mxu0 %v3023
    %3392 = vmatprep.subr.bf16.mxu0 0
    %3393 = vmatpush1.bf16.msra.mxu0 %v3024
    %3394 = vmatprep.subr.bf16.mxu0 0
    %3395 = vmatpush1.bf16.msra.mxu0 %v3025
    %3396 = vmatprep.subr.bf16.mxu0 0
    %3397 = vmatpush1.bf16.msra.mxu0 %v3026
    %3398 = vmatprep.subr.bf16.mxu0 0
    %3399 = vmatpush1.bf16.msra.mxu0 %v3027
    %3400 = vmatprep.subr.bf16.mxu0 0
    %3401 = vmatpush1.bf16.msra.mxu0 %v3028
    %3402 = vmatprep.mubr.bf16.mxu0 %v2337
    %3403 = vmatmul.mubr.bf16.gmra.mrb[0].mxu0 %v2336
    %v3404 = vpop.f32.mrb[0].mxu0
    %v3405 = vadd.f32 %v3356, %v3404
    %v3406 = vpop.f32.mrb[0].mxu0
    %v3407 = vpop.f32.mrb[0].mxu0
    %v3408 = vadd.f32 %v3359, %v3407
    %v3409 = vpop.f32.mrb[0].mxu0
    %3410 = vmatprep.mubr.bf16.mxu0 %v2349
    %3411 = vmatmul.mubr.bf16.gmra.mrb[0].mxu0 %v2348
    %v3412 = vpop.f32.mrb[0].mxu0
    %v3413 = vadd.f32 %v3364, %v3412
    %v3414 = vpop.f32.mrb[0].mxu0
    %v3415 = vpop.f32.mrb[0].mxu0
    %v3416 = vadd.f32 %v3367, %v3415
    %v3417 = vpop.f32.mrb[0].mxu0
    %3418 = vdwg.mxu0
    %3419 = vst.msk [vmem:[#allocation6] sm:$0xff] %vm157, %v3405
    %3420 = vst.msk [vmem:[#allocation6 + $0x8] sm:$0xff] %vm157, %v3408
    %3421 = vst.msk [vmem:[#allocation6 + $0x10] sm:$0xff] %vm157, %v3413
    %3422 = vst.msk [vmem:[#allocation6 + $0x18] sm:$0xff] %vm157, %v3416
    // Predicated region
    $region58: #{tpu_custom_call.1} parent=1 // pred_check
      _
    $region59: #{tpu_custom_call.1} parent=1 // pred_check_branch
      %3424 = sbr.rel (0) target = $region61
    $region60: #{tpu_custom_call.1} parent=1 // pred_region
      %s3426 = ssub.s32 512, 512
      %3427 = vsyncadd [#allocation5], %s3426
      %s3428 = sshll.u32 [#allocation6], 4
      %s3429 = int_to_ptr.vmem [resolvable:$true] %s3428
      %3434 = dma.vmem_to_hbm [thread:$0]  %s3429, 512, %s13, [#allocation5], 128, 128, 8
    $region61: #{tpu_custom_call.1} parent=1 // pred_fallthru
      _
    // Predicated region
    $region62: #{tpu_custom_call.1} parent=1 // pred_check
      _
    $region63: #{tpu_custom_call.1} parent=1 // pred_check_branch
      %3436 = sbr.rel (0) target = $region65
    $region64: #{tpu_custom_call.1} parent=1 // pred_region
      %3437 = dma.done [#allocation5], 512
    $region65: #{tpu_custom_call.1} parent=1 // pred_fallthru
      _
    %3438 = vsyncpa [#allocation4], 1
    %3439 = vsyncpa [#allocation5], 1

</llo_original>
